<compile_context>
chip_gen: v7x
topology: tpu7x:2x2x1
jax: 0.10.0
libtpu: 0.0.40
codegen_flags: <defaults>
</compile_context>

<pallas_src>
import functools
import math

import jax
import jax.numpy as jnp
from jax.experimental import pallas as pl
from jax.experimental.pallas import tpu as pltpu


_LEAKY_SLOPE = 0.2  # matches nn.LeakyReLU(0.2) in the reference module


# ----------------------------------------------------------------------------
# In-kernel math helpers (traced inline into the kernel bodies).
# ----------------------------------------------------------------------------
def _leaky_relu(a):
    return jnp.where(a >= 0.0, a, _LEAKY_SLOPE * a)


def _sigmoid_exact(a):
    # Numerically stable sigmoid with an *exact* divide (review correctness note).
    e = jnp.exp(-jnp.abs(a))
    s = 1.0 / (1.0 + e)
    return jnp.where(a >= 0.0, s, 1.0 - s)


def _sin_poly(t):
    """sin(t) via range reduction to [-pi/2, pi/2] + odd polynomial (max err ~3e-6)."""
    two_pi = 2.0 * math.pi
    half_pi = 0.5 * math.pi
    n = jnp.round(t * (1.0 / two_pi))
    r = t - n * two_pi                               # r in [-pi, pi]
    r = jnp.where(r > half_pi, math.pi - r, r)
    r = jnp.where(r < -half_pi, -math.pi - r, r)     # r in [-pi/2, pi/2]
    r2 = r * r
    return r * (1.0 + r2 * (-1.0 / 6.0 + r2 * (1.0 / 120.0
                + r2 * (-1.0 / 5040.0 + r2 * (1.0 / 362880.0)))))


# ----------------------------------------------------------------------------
# Padded-scratch helpers.
# ----------------------------------------------------------------------------
def _zero_border4(ref):
    """[R2] zero only the 1-pixel border strips of a (Bt, H+2, W+2, C) scratch."""
    bt, hp, wp, c = ref.shape
    z_row = jnp.zeros((bt, 1, wp, c), ref.dtype)
    z_col = jnp.zeros((bt, hp, 1, c), ref.dtype)
    ref[:, 0:1, :, :] = z_row
    ref[:, hp - 1:hp, :, :] = z_row
    ref[:, :, 0:1, :] = z_col
    ref[:, :, wp - 1:wp, :] = z_col


def _zero_border3(ref):
    """[R2] zero only the border strips of a (Bt, H+2, W+2) scratch."""
    bt, hp, wp = ref.shape
    z_row = jnp.zeros((bt, 1, wp), ref.dtype)
    z_col = jnp.zeros((bt, hp, 1), ref.dtype)
    ref[:, 0:1, :] = z_row
    ref[:, hp - 1:hp, :] = z_row
    ref[:, :, 0:1] = z_col
    ref[:, :, wp - 1:wp] = z_col


def _patch_from_ref(p_ref, ksize, Ho, Wo, stride=1, off_h=0, off_w=0):
    """[R3, R4] im2col patch matrix (Bt*Ho*Wo, ksize*ksize*Cin) in bf16.

    Taps are read directly from the padded scratch ref: static slices for
    stride-1, strided pl.ds reads for stride-2 (no whole-slab load, no
    reshape-based even-phase extraction).  Column order is (kh, kw, ci) to match
    the init-time weight reshape.
    """
    bt = p_ref.shape[0]
    cin = p_ref.shape[-1]
    cols = []
    for kh in range(ksize):
        for kw in range(ksize):
            if stride == 1:
                tap = p_ref[:, off_h + kh:off_h + kh + Ho,
                            off_w + kw:off_w + kw + Wo, :]
            else:
                tap = p_ref[:, pl.ds(off_h + kh, Ho, stride),
                            pl.ds(off_w + kw, Wo, stride), :]
            cols.append(tap.astype(jnp.bfloat16).reshape(bt * Ho * Wo, cin))
    return jnp.concatenate(cols, axis=-1)


def _conv3x3(p_ref, w_ref, b_ref, Ho, Wo, stride, activation):
    """3x3 conv over a padded scratch ref as one MXU matmul (bf16 in, f32 acc)."""
    patch = _patch_from_ref(p_ref, 3, Ho, Wo, stride)
    acc = jnp.dot(patch, w_ref[...], preferred_element_type=jnp.float32) + b_ref[...]
    bt = p_ref.shape[0]
    return activation(acc).reshape(bt, Ho, Wo, w_ref.shape[-1])


def _convT4x4_s2_to_ref(src_ref, w_ref, b_ref, dst_ref, Hi, Wi, activation):
    """[R6] 4x4 / stride-2 / pad-1 transposed conv via 4-phase decomposition.

    Each phase result is stored straight into the padded destination scratch at
    its stride-2 positions (strided pl.ds stores), so there is no stack/reshape
    interleave and no extra padded-slab copy.
    """
    bt = src_ref.shape[0]
    cout = w_ref.shape[-1]
    for ph in range(2):
        for pw in range(2):
            patch = _patch_from_ref(src_ref, 2, Hi, Wi, 1, off_h=ph, off_w=pw)
            o = jnp.dot(patch, w_ref[ph, pw],
                        preferred_element_type=jnp.float32) + b_ref[...]
            o = activation(o).reshape(bt, Hi, Wi, cout)
            dst_ref[:, pl.ds(1 + ph, Hi, 2), pl.ds(1 + pw, Wi, 2), :] = o


def _convT4x4_s2_value(src_ref, w_ref, b_ref, Hi, Wi, activation):
    """Same transposed conv, returning the interleaved (Bt, 2Hi, 2Wi, Cout) value
    (used for the final layer, whose result immediately feeds the artifact math)."""
    bt = src_ref.shape[0]
    cout = w_ref.shape[-1]
    rows = []
    for ph in range(2):
        cols = []
        for pw in range(2):
            patch = _patch_from_ref(src_ref, 2, Hi, Wi, 1, off_h=ph, off_w=pw)
            o = jnp.dot(patch, w_ref[ph, pw],
                        preferred_element_type=jnp.float32) + b_ref[...]
            cols.append(activation(o).reshape(bt, Hi, Wi, cout))
        rows.append(jnp.stack(cols, axis=3).reshape(bt, Hi, 2 * Wi, cout))
    return jnp.stack(rows, axis=2).reshape(bt, 2 * Hi, 2 * Wi, cout)


# ----------------------------------------------------------------------------
# Fused encoder kernel: e1 -> e2 -> e3 -> quantize (eval) -> bpp.
# ----------------------------------------------------------------------------
def _encoder_kernel(x_ref, w1_ref, b1_ref, w2_ref, b2_ref, w3_ref, b3_ref,
                    lat_ref, bpp_ref,
                    p0_ref, p1_ref, p2_ref,
                    *, H, W, scale, num_pixels):
    bt = x_ref.shape[0]
    h1, w1 = H // 2, W // 2
    hl, wl = H // 4, W // 4

    # [R2] border strips only; the interiors below are fully overwritten each step.
    _zero_border4(p0_ref)
    _zero_border4(p1_ref)
    _zero_border4(p2_ref)

    # e1: 3x3 stride-2 conv, C -> 32, LeakyReLU(0.2)
    p0_ref[:, 1:H + 1, 1:W + 1, :] = x_ref[...]
    a1 = _conv3x3(p0_ref, w1_ref, b1_ref, h1, w1, stride=2, activation=_leaky_relu)

    # e2: 3x3 stride-2 conv, 32 -> 48
    p1_ref[:, 1:h1 + 1, 1:w1 + 1, :] = a1
    a2 = _conv3x3(p1_ref, w2_ref, b2_ref, hl, wl, stride=2, activation=_leaky_relu)

    # e3: 3x3 stride-1 conv, 48 -> latent_channels
    p2_ref[:, 1:hl + 1, 1:wl + 1, :] = a2
    lat = _conv3x3(p2_ref, w3_ref, b3_ref, hl, wl, stride=1, activation=_leaky_relu)

    # eval-mode quantization (round to the quant grid) + per-image bpp estimate
    q = jnp.round(lat * scale) / scale
    lat_ref[...] = q
    for b in range(bt):
        l1 = jnp.sum(jnp.abs(q[b]))
        bpp_ref[b, 0] = jnp.clip(l1 / num_pixels * 0.1, 0.01, 2.0)


def _pick_batch_tile(batch, requested=None):
    """[R5] images processed per grid step (keeps matmul M >= 128 at demo sizes)."""
    if requested is not None:
        assert batch % requested == 0
        return requested
    for bt in (8, 4, 2, 1):
        if bt <= batch and batch % bt == 0:
            return bt
    return 1


def _replicated_spec(shape):
    return pl.BlockSpec(shape, lambda i: (0,) * len(shape))


def encode_quantize(x_nhwc, params, qp_val, batch_tile=None):
    """x_nhwc: [B, H, W, C] -> (latent_q [B, H/4, W/4, Cl], bpp [B])."""
    B, H, W, C = x_nhwc.shape
    assert H % 4 == 0 and W % 4 == 0, "demo requires H, W multiples of 4"
    h1, w1 = H // 2, W // 2
    hl, wl = H // 4, W // 4
    bt = _pick_batch_tile(B, batch_tile)

    we1, be1 = params["e1"]
    we2, be2 = params["e2"]
    we3, be3 = params["e3"]
    c1 = we1.shape[-1]        # 32
    c2 = we2.shape[-1]        # 48
    Cl = we3.shape[-1]        # latent channels

    noise_level = 0.02 + qp_val / 51.0 * 0.1
    scale = 1.0 / noise_level
    num_pixels = float(hl * wl * 4 * 4)

    kern = functools.partial(_encoder_kernel, H=H, W=W,
                             scale=scale, num_pixels=num_pixels)

    lat, bpp = pl.pallas_call(
        kern,
        out_shape=(jax.ShapeDtypeStruct((B, hl, wl, Cl), jnp.float32),
                   jax.ShapeDtypeStruct((B, 1), jnp.float32)),
        grid=(B // bt,),
        in_specs=[
            pl.BlockSpec((bt, H, W, C), lambda i: (i, 0, 0, 0)),
            _replicated_spec(we1.shape), _replicated_spec(be1.shape),
            _replicated_spec(we2.shape), _replicated_spec(be2.shape),
            _replicated_spec(we3.shape), _replicated_spec(be3.shape),
        ],
        out_specs=(pl.BlockSpec((bt, hl, wl, Cl), lambda i: (i, 0, 0, 0)),
                   pl.BlockSpec((bt, 1), lambda i: (i, 0),
                                memory_space=pltpu.MemorySpace.SMEM)),
        scratch_shapes=[
            pltpu.VMEM((bt, H + 2, W + 2, C), jnp.float32),
            pltpu.VMEM((bt, h1 + 2, w1 + 2, c1), jnp.float32),
            pltpu.VMEM((bt, hl + 2, wl + 2, c2), jnp.float32),
        ],
        compiler_params=pltpu.CompilerParams(dimension_semantics=("parallel",)),
    )(x_nhwc, we1, be1, we2, be2, we3, be3)
    return lat, bpp[:, 0]


# ----------------------------------------------------------------------------
# Fused decoder kernel: d1 -> d2(convT) -> d3(convT)+sigmoid -> codec artifacts.
# ----------------------------------------------------------------------------
def _decoder_kernel(lat_ref, wd1_ref, bd1_ref, wd2_ref, bd2_ref, wd3_ref, bd3_ref,
                    out_ref,
                    q0_ref, q1_ref, q2_ref, g_ref,
                    *, H, W, hl, wl, strength, block_size, apply_artifacts):
    bt = lat_ref.shape[0]
    h1, w1 = 2 * hl, 2 * wl
    C = wd3_ref.shape[-1]

    _zero_border4(q0_ref)
    _zero_border4(q1_ref)
    _zero_border4(q2_ref)

    # d1: 3x3 stride-1 conv, Cl -> 48
    q0_ref[:, 1:hl + 1, 1:wl + 1, :] = lat_ref[...]
    a1 = _conv3x3(q0_ref, wd1_ref, bd1_ref, hl, wl, stride=1, activation=_leaky_relu)

    # d2: 4x4 stride-2 transposed conv, 48 -> 32, phases stored straight into the
    # padded q2 scratch with strided stores [R6].
    q1_ref[:, 1:hl + 1, 1:wl + 1, :] = a1
    _convT4x4_s2_to_ref(q1_ref, wd2_ref, bd2_ref, q2_ref, hl, wl,
                        activation=_leaky_relu)

    # d3: 4x4 stride-2 transposed conv, 32 -> C, exact Sigmoid
    recon = _convT4x4_s2_value(q2_ref, wd3_ref, bd3_ref, h1, w1,
                               activation=_sigmoid_exact)            # (bt, H, W, C)

    if apply_artifacts:
        # channel-mean gray image, zero-padded for the 3x3 Laplacian edge detector;
        # Laplacian taps read the scratch ref directly [R3].
        _zero_border3(g_ref)
        g_ref[:, 1:H + 1, 1:W + 1] = jnp.mean(recon, axis=-1)
        lap = ((-1.0, -1.0, -1.0), (-1.0, 8.0, -1.0), (-1.0, -1.0, -1.0))
        edge = jnp.zeros((bt, H, W), jnp.float32)
        for kh in range(3):
            for kw in range(3):
                edge = edge + lap[kh][kw] * g_ref[:, kh:kh + H, kw:kw + W]
        edge_mask = (jnp.abs(edge) > 0.2).astype(jnp.float32)

        # block-boundary darkening mask (cheap iota/mod/compare on the VPU)
        row = jax.lax.broadcasted_iota(jnp.int32, (H, W), 0)
        col = jax.lax.broadcasted_iota(jnp.int32, (H, W), 1)
        boundary = (((row % block_size) == 0) & (row > 0)) | \
                   (((col % block_size) == 0) & (col > 0))
        block_scale = jnp.where(boundary, 1.0 - strength * 0.2, 1.0)

        block_artifact = recon * block_scale[None, :, :, None]
        ringing = _sin_poly(recon * (8.0 * math.pi)) * (0.1 * strength)
        ringing_artifact = recon + edge_mask[:, :, :, None] * ringing
        recon = jnp.clip(block_artifact * 0.7 + ringing_artifact * 0.3, 0.0, 1.0)

    # [R1] lane-dense store: one (Bt, H, W*C) slab instead of a 3-lane masked store.
    out_ref[...] = recon.reshape(bt, H, W * C)


def decode_with_artifacts(lat_q, params, strength, block_size, apply_artifacts,
                          batch_tile=None):
    """lat_q: [B, H/4, W/4, Cl] -> recon [B, H, W*C] (lane-dense NHWC slab)."""
    B, hl, wl, Cl = lat_q.shape
    H, W = 4 * hl, 4 * wl
    bt = _pick_batch_tile(B, batch_tile)

    wd1, bd1 = params["d1"]
    wd2, bd2 = params["d2"]
    wd3, bd3 = params["d3"]
    c48 = wd1.shape[-1]
    c32 = wd2.shape[-1]
    C = wd3.shape[-1]

    kern = functools.partial(_decoder_kernel, H=H, W=W, hl=hl, wl=wl,
                             strength=float(strength), block_size=int(block_size),
                             apply_artifacts=bool(apply_artifacts))

    return pl.pallas_call(
        kern,
        out_shape=jax.ShapeDtypeStruct((B, H, W * C), jnp.float32),
        grid=(B // bt,),
        in_specs=[
            pl.BlockSpec((bt, hl, wl, Cl), lambda i: (i, 0, 0, 0)),
            _replicated_spec(wd1.shape), _replicated_spec(bd1.shape),
            _replicated_spec(wd2.shape), _replicated_spec(bd2.shape),
            _replicated_spec(wd3.shape), _replicated_spec(bd3.shape),
        ],
        out_specs=pl.BlockSpec((bt, H, W * C), lambda i: (i, 0, 0)),
        scratch_shapes=[
            pltpu.VMEM((bt, hl + 2, wl + 2, Cl), jnp.float32),
            pltpu.VMEM((bt, hl + 2, wl + 2, c48), jnp.float32),
            pltpu.VMEM((bt, 2 * hl + 2, 2 * wl + 2, c32), jnp.float32),
            pltpu.VMEM((bt, H + 2, W + 2), jnp.float32),
        ],
        compiler_params=pltpu.CompilerParams(dimension_semantics=("parallel",)),
    )(lat_q, wd1, bd1, wd2, bd2, wd3, bd3)


# ----------------------------------------------------------------------------
# Parameter init (torch-like uniform fan-in bounds).  All weight re-layouts
# (im2col reshape, transposed-conv flip + 4-phase split) are hoisted here; MXU
# weight matrices are stored as bf16 [R4], biases stay f32.
# ----------------------------------------------------------------------------
def _uniform(key, shape, bound):
    return jax.random.uniform(key, shape, jnp.float32, minval=-bound, maxval=bound)


def init_params(key, channels=3, latent_channels=64):
    ks = jax.random.split(key, 12)

    def conv_im2col(kw_, kb_, cin, cout, ksz):
        bound = 1.0 / math.sqrt(cin * ksz * ksz)
        w_torch = _uniform(kw_, (cout, cin, ksz, ksz), bound)       # torch Conv2d layout
        b = _uniform(kb_, (1, cout), bound)
        # (KH*KW*Cin, Cout), rows ordered (kh, kw, ci) -> matches in-kernel im2col
        wmat = jnp.transpose(w_torch, (2, 3, 1, 0)).reshape(ksz * ksz * cin, cout)
        return wmat.astype(jnp.bfloat16), b

    def convT_phases(kw_, kb_, cin, cout, ksz=4):
        bound = 1.0 / math.sqrt(cin * ksz * ksz)
        w_torch = _uniform(kw_, (cin, cout, ksz, ksz), bound)       # torch ConvTranspose2d layout
        b = _uniform(kb_, (1, cout), bound)
        w = jnp.transpose(w_torch, (2, 3, 0, 1))                    # (KH, KW, Cin, Cout)
        # output phase (ph, pw), 2x2 tap (dh, dw) uses original tap
        # kh = 3 - ph - 2*dh, kw = 3 - pw - 2*dw  (stride 2, pad 1, K = 4)
        phases = []
        for ph in range(2):
            row = []
            for pw in range(2):
                taps = []
                for dh in range(2):
                    for dw in range(2):
                        taps.append(w[3 - ph - 2 * dh, 3 - pw - 2 * dw])   # (Cin, Cout)
                row.append(jnp.concatenate(taps, axis=0))                  # (4*Cin, Cout)
            phases.append(jnp.stack(row, axis=0))                          # (2, 4*Cin, Cout)
        return jnp.stack(phases, axis=0).astype(jnp.bfloat16), b           # (2, 2, 4*Cin, Cout)

    return {
        "e1": conv_im2col(ks[0], ks[1], channels, 32, 3),
        "e2": conv_im2col(ks[2], ks[3], 32, 48, 3),
        "e3": conv_im2col(ks[4], ks[5], 48, latent_channels, 3),
        "d1": conv_im2col(ks[6], ks[7], latent_channels, 48, 3),
        "d2": convT_phases(ks[8], ks[9], 48, 32, 4),
        "d3": convT_phases(ks[10], ks[11], 32, channels, 4),
    }


# ----------------------------------------------------------------------------
# Public forward pass (mirrors ProxyCodec.forward in eval mode).
# ----------------------------------------------------------------------------
def proxy_codec_forward(params, x_nchw, qp=None, add_artifacts_flag=True,
                        block_size=8, batch_tile=None):
    """x_nchw: [B, C, H, W] float32 -> (recon [B, C, H, W], bpp [B])."""
    B, C, H, W = x_nchw.shape
    # forward_transform_2d / inverse_transform_2d are exact identities, so coeff == x.
    x = jnp.transpose(x_nchw, (0, 2, 3, 1))                 # NHWC for the kernels

    qp_val = 10.0 if qp is None else float(qp)
    latent_q, bpp = encode_quantize(x, params, qp_val, batch_tile)

    apply_art = bool(add_artifacts_flag) and (qp is not None)
    strength = (float(qp) / 51.0) if apply_art else 0.0
    recon_flat = decode_with_artifacts(latent_q, params, strength, block_size,
                                       apply_art, batch_tile)   # (B, H, W*C)

    recon = recon_flat.reshape(B, H, W, C)
    recon = jnp.transpose(recon, (0, 3, 1, 2))              # back to NCHW
    return recon, bpp


if __name__ == "__main__":
    key = jax.random.PRNGKey(0)
    k_param, k_x = jax.random.split(key)

    channels, latent_channels, block_size = 3, 64, 8
    params = init_params(k_param, channels=channels, latent_channels=latent_channels)

    # Small NCHW input consistent with the module (B=2, C=3, H=W=16)
    x = jax.random.uniform(k_x, (2, channels, 16, 16), jnp.float32)

    recon, bpp = proxy_codec_forward(params, x, qp=20.0,
                                     add_artifacts_flag=True, block_size=block_size)
    jax.block_until_ready((recon, bpp))

    assert recon.shape == x.shape, recon.shape
    assert bpp.shape == (x.shape[0],), bpp.shape
    assert bool(jnp.all(jnp.isfinite(recon))) and bool(jnp.all(jnp.isfinite(bpp)))
    print("KERNEL_OK")
</pallas_src>

<mosaic_0001>
module attributes {stable_mosaic.version = 11 : i64} {
  func.func @_encoder_kernel(%arg0: i32, %arg1: memref<2x16x16x3xf32, #tpu.memory_space<vmem>>, %arg2: memref<27x32xbf16, #tpu.memory_space<vmem>>, %arg3: memref<1x32xf32, #tpu.memory_space<vmem>>, %arg4: memref<288x48xbf16, #tpu.memory_space<vmem>>, %arg5: memref<1x48xf32, #tpu.memory_space<vmem>>, %arg6: memref<432x64xbf16, #tpu.memory_space<vmem>>, %arg7: memref<1x64xf32, #tpu.memory_space<vmem>>, %arg8: memref<2x4x4x64xf32, #tpu.memory_space<vmem>>, %arg9: memref<2x1xf32, #tpu.memory_space<smem>>, %arg10: memref<2x18x18x3xf32, #tpu.memory_space<vmem>>, %arg11: memref<2x10x10x32xf32, #tpu.memory_space<vmem>>, %arg12: memref<2x6x6x48xf32, #tpu.memory_space<vmem>>) attributes {dimension_semantics = [#tpu.dimension_semantics<parallel>], iteration_bounds = array<i64: 1>, scalar_prefetch = 0 : i64, scratch_operands = 3 : i64, tpu.core_type = #tpu.core_type<tc>, window_params = [{transform_indices = @transform_0, window_bounds = array<i64: 2, 16, 16, 3>}, {pipeline_mode = #tpu.pipeline_mode<synchronous>, transform_indices = @transform_1, window_bounds = array<i64: 27, 32>}, {pipeline_mode = #tpu.pipeline_mode<synchronous>, transform_indices = @transform_2, window_bounds = array<i64: 1, 32>}, {pipeline_mode = #tpu.pipeline_mode<synchronous>, transform_indices = @transform_3, window_bounds = array<i64: 288, 48>}, {pipeline_mode = #tpu.pipeline_mode<synchronous>, transform_indices = @transform_4, window_bounds = array<i64: 1, 48>}, {pipeline_mode = #tpu.pipeline_mode<synchronous>, transform_indices = @transform_5, window_bounds = array<i64: 432, 64>}, {pipeline_mode = #tpu.pipeline_mode<synchronous>, transform_indices = @transform_6, window_bounds = array<i64: 1, 64>}, {transform_indices = @transform_7, window_bounds = array<i64: 2, 4, 4, 64>}, {transform_indices = @transform_8, window_bounds = array<i64: 2, 1>}]} {
    %cst = arith.constant 0.000000e+00 : f32
    %0 = vector.broadcast %cst : f32 to vector<2x1x18x3xf32>
    %cst_0 = arith.constant 0.000000e+00 : f32
    %1 = vector.broadcast %cst_0 : f32 to vector<2x18x1x3xf32>
    %c0 = arith.constant 0 : index
    %c0_1 = arith.constant 0 : index
    %c0_2 = arith.constant 0 : index
    %c0_3 = arith.constant 0 : index
    %2 = vector.load %arg10[%c0, %c0_1, %c0_2, %c0_3] : memref<2x18x18x3xf32, #tpu.memory_space<vmem>>, vector<2x1x18x3xf32>
    tpu.vector_store %arg10[%c0, %c0_1, %c0_2, %c0_3], %0 {strides = array<i32>} : memref<2x18x18x3xf32, #tpu.memory_space<vmem>>, vector<2x1x18x3xf32>,
    %c0_4 = arith.constant 0 : index
    %c17 = arith.constant 17 : index
    %c0_5 = arith.constant 0 : index
    %c0_6 = arith.constant 0 : index
    %3 = vector.load %arg10[%c0_4, %c17, %c0_5, %c0_6] : memref<2x18x18x3xf32, #tpu.memory_space<vmem>>, vector<2x1x18x3xf32>
    tpu.vector_store %arg10[%c0_4, %c17, %c0_5, %c0_6], %0 {strides = array<i32>} : memref<2x18x18x3xf32, #tpu.memory_space<vmem>>, vector<2x1x18x3xf32>,
    %c0_7 = arith.constant 0 : index
    %c0_8 = arith.constant 0 : index
    %c0_9 = arith.constant 0 : index
    %c0_10 = arith.constant 0 : index
    %4 = vector.load %arg10[%c0_7, %c0_8, %c0_9, %c0_10] : memref<2x18x18x3xf32, #tpu.memory_space<vmem>>, vector<2x18x1x3xf32>
    tpu.vector_store %arg10[%c0_7, %c0_8, %c0_9, %c0_10], %1 {strides = array<i32>} : memref<2x18x18x3xf32, #tpu.memory_space<vmem>>, vector<2x18x1x3xf32>,
    %c0_11 = arith.constant 0 : index
    %c0_12 = arith.constant 0 : index
    %c17_13 = arith.constant 17 : index
    %c0_14 = arith.constant 0 : index
    %5 = vector.load %arg10[%c0_11, %c0_12, %c17_13, %c0_14] : memref<2x18x18x3xf32, #tpu.memory_space<vmem>>, vector<2x18x1x3xf32>
    tpu.vector_store %arg10[%c0_11, %c0_12, %c17_13, %c0_14], %1 {strides = array<i32>} : memref<2x18x18x3xf32, #tpu.memory_space<vmem>>, vector<2x18x1x3xf32>,
    %cst_15 = arith.constant 0.000000e+00 : f32
    %6 = vector.broadcast %cst_15 : f32 to vector<2x1x10x32xf32>
    %cst_16 = arith.constant 0.000000e+00 : f32
    %7 = vector.broadcast %cst_16 : f32 to vector<2x10x1x32xf32>
    %c0_17 = arith.constant 0 : index
    %c0_18 = arith.constant 0 : index
    %c0_19 = arith.constant 0 : index
    %c0_20 = arith.constant 0 : index
    %8 = vector.load %arg11[%c0_17, %c0_18, %c0_19, %c0_20] : memref<2x10x10x32xf32, #tpu.memory_space<vmem>>, vector<2x1x10x32xf32>
    tpu.vector_store %arg11[%c0_17, %c0_18, %c0_19, %c0_20], %6 {strides = array<i32>} : memref<2x10x10x32xf32, #tpu.memory_space<vmem>>, vector<2x1x10x32xf32>,
    %c0_21 = arith.constant 0 : index
    %c9 = arith.constant 9 : index
    %c0_22 = arith.constant 0 : index
    %c0_23 = arith.constant 0 : index
    %9 = vector.load %arg11[%c0_21, %c9, %c0_22, %c0_23] : memref<2x10x10x32xf32, #tpu.memory_space<vmem>>, vector<2x1x10x32xf32>
    tpu.vector_store %arg11[%c0_21, %c9, %c0_22, %c0_23], %6 {strides = array<i32>} : memref<2x10x10x32xf32, #tpu.memory_space<vmem>>, vector<2x1x10x32xf32>,
    %c0_24 = arith.constant 0 : index
    %c0_25 = arith.constant 0 : index
    %c0_26 = arith.constant 0 : index
    %c0_27 = arith.constant 0 : index
    %10 = vector.load %arg11[%c0_24, %c0_25, %c0_26, %c0_27] : memref<2x10x10x32xf32, #tpu.memory_space<vmem>>, vector<2x10x1x32xf32>
    tpu.vector_store %arg11[%c0_24, %c0_25, %c0_26, %c0_27], %7 {strides = array<i32>} : memref<2x10x10x32xf32, #tpu.memory_space<vmem>>, vector<2x10x1x32xf32>,
    %c0_28 = arith.constant 0 : index
    %c0_29 = arith.constant 0 : index
    %c9_30 = arith.constant 9 : index
    %c0_31 = arith.constant 0 : index
    %11 = vector.load %arg11[%c0_28, %c0_29, %c9_30, %c0_31] : memref<2x10x10x32xf32, #tpu.memory_space<vmem>>, vector<2x10x1x32xf32>
    tpu.vector_store %arg11[%c0_28, %c0_29, %c9_30, %c0_31], %7 {strides = array<i32>} : memref<2x10x10x32xf32, #tpu.memory_space<vmem>>, vector<2x10x1x32xf32>,
    %cst_32 = arith.constant 0.000000e+00 : f32
    %12 = vector.broadcast %cst_32 : f32 to vector<2x1x6x48xf32>
    %cst_33 = arith.constant 0.000000e+00 : f32
    %13 = vector.broadcast %cst_33 : f32 to vector<2x6x1x48xf32>
    %c0_34 = arith.constant 0 : index
    %c0_35 = arith.constant 0 : index
    %c0_36 = arith.constant 0 : index
    %c0_37 = arith.constant 0 : index
    %14 = vector.load %arg12[%c0_34, %c0_35, %c0_36, %c0_37] : memref<2x6x6x48xf32, #tpu.memory_space<vmem>>, vector<2x1x6x48xf32>
    tpu.vector_store %arg12[%c0_34, %c0_35, %c0_36, %c0_37], %12 {strides = array<i32>} : memref<2x6x6x48xf32, #tpu.memory_space<vmem>>, vector<2x1x6x48xf32>,
    %c0_38 = arith.constant 0 : index
    %c5 = arith.constant 5 : index
    %c0_39 = arith.constant 0 : index
    %c0_40 = arith.constant 0 : index
    %15 = vector.load %arg12[%c0_38, %c5, %c0_39, %c0_40] : memref<2x6x6x48xf32, #tpu.memory_space<vmem>>, vector<2x1x6x48xf32>
    tpu.vector_store %arg12[%c0_38, %c5, %c0_39, %c0_40], %12 {strides = array<i32>} : memref<2x6x6x48xf32, #tpu.memory_space<vmem>>, vector<2x1x6x48xf32>,
    %c0_41 = arith.constant 0 : index
    %c0_42 = arith.constant 0 : index
    %c0_43 = arith.constant 0 : index
    %c0_44 = arith.constant 0 : index
    %16 = vector.load %arg12[%c0_41, %c0_42, %c0_43, %c0_44] : memref<2x6x6x48xf32, #tpu.memory_space<vmem>>, vector<2x6x1x48xf32>
    tpu.vector_store %arg12[%c0_41, %c0_42, %c0_43, %c0_44], %13 {strides = array<i32>} : memref<2x6x6x48xf32, #tpu.memory_space<vmem>>, vector<2x6x1x48xf32>,
    %c0_45 = arith.constant 0 : index
    %c0_46 = arith.constant 0 : index
    %c5_47 = arith.constant 5 : index
    %c0_48 = arith.constant 0 : index
    %17 = vector.load %arg12[%c0_45, %c0_46, %c5_47, %c0_48] : memref<2x6x6x48xf32, #tpu.memory_space<vmem>>, vector<2x6x1x48xf32>
    tpu.vector_store %arg12[%c0_45, %c0_46, %c5_47, %c0_48], %13 {strides = array<i32>} : memref<2x6x6x48xf32, #tpu.memory_space<vmem>>, vector<2x6x1x48xf32>,
    %c0_49 = arith.constant 0 : index
    %c0_50 = arith.constant 0 : index
    %c0_51 = arith.constant 0 : index
    %c0_52 = arith.constant 0 : index
    %18 = vector.load %arg1[%c0_49, %c0_50, %c0_51, %c0_52] : memref<2x16x16x3xf32, #tpu.memory_space<vmem>>, vector<2x16x16x3xf32>
    %c0_53 = arith.constant 0 : index
    %c1 = arith.constant 1 : index
    %c1_54 = arith.constant 1 : index
    %c0_55 = arith.constant 0 : index
    %19 = vector.load %arg10[%c0_53, %c1, %c1_54, %c0_55] : memref<2x18x18x3xf32, #tpu.memory_space<vmem>>, vector<2x16x16x3xf32>
    tpu.vector_store %arg10[%c0_53, %c1, %c1_54, %c0_55], %18 {strides = array<i32>} : memref<2x18x18x3xf32, #tpu.memory_space<vmem>>, vector<2x16x16x3xf32>,
    %c0_56 = arith.constant 0 : index
    %c0_57 = arith.constant 0 : index
    %c0_58 = arith.constant 0 : index
    %c0_59 = arith.constant 0 : index
    %20 = tpu.strided_load %arg10[%c0_56, %c0_57, %c0_58, %c0_59] {strides = array<i32: 1, 2, 2, 1>} : memref<2x18x18x3xf32, #tpu.memory_space<vmem>>, vector<2x8x8x3xf32>
    %21 = arith.truncf %20 : vector<2x8x8x3xf32> to vector<2x8x8x3xbf16>
    %22 = vector.shape_cast %21 : vector<2x8x8x3xbf16> to vector<128x3xbf16>
    %c0_60 = arith.constant 0 : index
    %c0_61 = arith.constant 0 : index
    %c1_62 = arith.constant 1 : index
    %c0_63 = arith.constant 0 : index
    %23 = tpu.strided_load %arg10[%c0_60, %c0_61, %c1_62, %c0_63] {strides = array<i32: 1, 2, 2, 1>} : memref<2x18x18x3xf32, #tpu.memory_space<vmem>>, vector<2x8x8x3xf32>
    %24 = arith.truncf %23 : vector<2x8x8x3xf32> to vector<2x8x8x3xbf16>
    %25 = vector.shape_cast %24 : vector<2x8x8x3xbf16> to vector<128x3xbf16>
    %c0_64 = arith.constant 0 : index
    %c0_65 = arith.constant 0 : index
    %c2 = arith.constant 2 : index
    %c0_66 = arith.constant 0 : index
    %26 = tpu.strided_load %arg10[%c0_64, %c0_65, %c2, %c0_66] {strides = array<i32: 1, 2, 2, 1>} : memref<2x18x18x3xf32, #tpu.memory_space<vmem>>, vector<2x8x8x3xf32>
    %27 = arith.truncf %26 : vector<2x8x8x3xf32> to vector<2x8x8x3xbf16>
    %28 = vector.shape_cast %27 : vector<2x8x8x3xbf16> to vector<128x3xbf16>
    %c0_67 = arith.constant 0 : index
    %c1_68 = arith.constant 1 : index
    %c0_69 = arith.constant 0 : index
    %c0_70 = arith.constant 0 : index
    %29 = tpu.strided_load %arg10[%c0_67, %c1_68, %c0_69, %c0_70] {strides = array<i32: 1, 2, 2, 1>} : memref<2x18x18x3xf32, #tpu.memory_space<vmem>>, vector<2x8x8x3xf32>
    %30 = arith.truncf %29 : vector<2x8x8x3xf32> to vector<2x8x8x3xbf16>
    %31 = vector.shape_cast %30 : vector<2x8x8x3xbf16> to vector<128x3xbf16>
    %c0_71 = arith.constant 0 : index
    %c1_72 = arith.constant 1 : index
    %c1_73 = arith.constant 1 : index
    %c0_74 = arith.constant 0 : index
    %32 = tpu.strided_load %arg10[%c0_71, %c1_72, %c1_73, %c0_74] {strides = array<i32: 1, 2, 2, 1>} : memref<2x18x18x3xf32, #tpu.memory_space<vmem>>, vector<2x8x8x3xf32>
    %33 = arith.truncf %32 : vector<2x8x8x3xf32> to vector<2x8x8x3xbf16>
    %34 = vector.shape_cast %33 : vector<2x8x8x3xbf16> to vector<128x3xbf16>
    %c0_75 = arith.constant 0 : index
    %c1_76 = arith.constant 1 : index
    %c2_77 = arith.constant 2 : index
    %c0_78 = arith.constant 0 : index
    %35 = tpu.strided_load %arg10[%c0_75, %c1_76, %c2_77, %c0_78] {strides = array<i32: 1, 2, 2, 1>} : memref<2x18x18x3xf32, #tpu.memory_space<vmem>>, vector<2x8x8x3xf32>
    %36 = arith.truncf %35 : vector<2x8x8x3xf32> to vector<2x8x8x3xbf16>
    %37 = vector.shape_cast %36 : vector<2x8x8x3xbf16> to vector<128x3xbf16>
    %c0_79 = arith.constant 0 : index
    %c2_80 = arith.constant 2 : index
    %c0_81 = arith.constant 0 : index
    %c0_82 = arith.constant 0 : index
    %38 = tpu.strided_load %arg10[%c0_79, %c2_80, %c0_81, %c0_82] {strides = array<i32: 1, 2, 2, 1>} : memref<2x18x18x3xf32, #tpu.memory_space<vmem>>, vector<2x8x8x3xf32>
    %39 = arith.truncf %38 : vector<2x8x8x3xf32> to vector<2x8x8x3xbf16>
    %40 = vector.shape_cast %39 : vector<2x8x8x3xbf16> to vector<128x3xbf16>
    %c0_83 = arith.constant 0 : index
    %c2_84 = arith.constant 2 : index
    %c1_85 = arith.constant 1 : index
    %c0_86 = arith.constant 0 : index
    %41 = tpu.strided_load %arg10[%c0_83, %c2_84, %c1_85, %c0_86] {strides = array<i32: 1, 2, 2, 1>} : memref<2x18x18x3xf32, #tpu.memory_space<vmem>>, vector<2x8x8x3xf32>
    %42 = arith.truncf %41 : vector<2x8x8x3xf32> to vector<2x8x8x3xbf16>
    %43 = vector.shape_cast %42 : vector<2x8x8x3xbf16> to vector<128x3xbf16>
    %c0_87 = arith.constant 0 : index
    %c2_88 = arith.constant 2 : index
    %c2_89 = arith.constant 2 : index
    %c0_90 = arith.constant 0 : index
    %44 = tpu.strided_load %arg10[%c0_87, %c2_88, %c2_89, %c0_90] {strides = array<i32: 1, 2, 2, 1>} : memref<2x18x18x3xf32, #tpu.memory_space<vmem>>, vector<2x8x8x3xf32>
    %45 = arith.truncf %44 : vector<2x8x8x3xf32> to vector<2x8x8x3xbf16>
    %46 = vector.shape_cast %45 : vector<2x8x8x3xbf16> to vector<128x3xbf16>
    %47 = tpu.concatenate %22, %25, %28, %31, %34, %37, %40, %43, %46 in 1 : vector<128x3xbf16>, vector<128x3xbf16>, vector<128x3xbf16>, vector<128x3xbf16>, vector<128x3xbf16>, vector<128x3xbf16>, vector<128x3xbf16>, vector<128x3xbf16>, vector<128x3xbf16> -> vector<128x27xbf16>
    %c0_91 = arith.constant 0 : index
    %c0_92 = arith.constant 0 : index
    %48 = vector.load %arg2[%c0_91, %c0_92] : memref<27x32xbf16, #tpu.memory_space<vmem>>, vector<27x32xbf16>
    %cst_93 = arith.constant dense<0.000000e+00> : vector<128x32xf32>
    %49 = tpu.matmul %47, %48, %cst_93 {dimension_numbers = #tpu.dot_dimension_numbers<[1], [0], [0], [1], [0, 0, 1, 1], [], []>} : vector<128x27xbf16>, vector<27x32xbf16>, vector<128x32xf32> -> vector<128x32xf32>
    %c0_94 = arith.constant 0 : index
    %c0_95 = arith.constant 0 : index
    %50 = vector.load %arg3[%c0_94, %c0_95] : memref<1x32xf32, #tpu.memory_space<vmem>>, vector<1x32xf32>
    %51 = vector.broadcast %50 : vector<1x32xf32> to vector<128x32xf32>
    %52 = arith.addf %49, %51 : vector<128x32xf32>
    %cst_96 = arith.constant 0.000000e+00 : f32
    %53 = vector.broadcast %cst_96 : f32 to vector<128x32xf32>
    %54 = arith.cmpf oge, %52, %53 : vector<128x32xf32>
    %cst_97 = arith.constant 2.000000e-01 : f32
    %55 = vector.broadcast %cst_97 : f32 to vector<128x32xf32>
    %56 = arith.mulf %55, %52 : vector<128x32xf32>
    %57 = arith.select %54, %52, %56 : vector<128x32xi1>, vector<128x32xf32>
    %58 = vector.shape_cast %57 : vector<128x32xf32> to vector<2x8x8x32xf32>
    %c0_98 = arith.constant 0 : index
    %c1_99 = arith.constant 1 : index
    %c1_100 = arith.constant 1 : index
    %c0_101 = arith.constant 0 : index
    %59 = vector.load %arg11[%c0_98, %c1_99, %c1_100, %c0_101] : memref<2x10x10x32xf32, #tpu.memory_space<vmem>>, vector<2x8x8x32xf32>
    tpu.vector_store %arg11[%c0_98, %c1_99, %c1_100, %c0_101], %58 {strides = array<i32>} : memref<2x10x10x32xf32, #tpu.memory_space<vmem>>, vector<2x8x8x32xf32>,
    %c0_102 = arith.constant 0 : index
    %c0_103 = arith.constant 0 : index
    %c0_104 = arith.constant 0 : index
    %c0_105 = arith.constant 0 : index
    %60 = tpu.strided_load %arg11[%c0_102, %c0_103, %c0_104, %c0_105] {strides = array<i32: 1, 2, 2, 1>} : memref<2x10x10x32xf32, #tpu.memory_space<vmem>>, vector<2x4x4x32xf32>
    %61 = arith.truncf %60 : vector<2x4x4x32xf32> to vector<2x4x4x32xbf16>
    %62 = vector.shape_cast %61 : vector<2x4x4x32xbf16> to vector<32x32xbf16>
    %c0_106 = arith.constant 0 : index
    %c0_107 = arith.constant 0 : index
    %c1_108 = arith.constant 1 : index
    %c0_109 = arith.constant 0 : index
    %63 = tpu.strided_load %arg11[%c0_106, %c0_107, %c1_108, %c0_109] {strides = array<i32: 1, 2, 2, 1>} : memref<2x10x10x32xf32, #tpu.memory_space<vmem>>, vector<2x4x4x32xf32>
    %64 = arith.truncf %63 : vector<2x4x4x32xf32> to vector<2x4x4x32xbf16>
    %65 = vector.shape_cast %64 : vector<2x4x4x32xbf16> to vector<32x32xbf16>
    %c0_110 = arith.constant 0 : index
    %c0_111 = arith.constant 0 : index
    %c2_112 = arith.constant 2 : index
    %c0_113 = arith.constant 0 : index
    %66 = tpu.strided_load %arg11[%c0_110, %c0_111, %c2_112, %c0_113] {strides = array<i32: 1, 2, 2, 1>} : memref<2x10x10x32xf32, #tpu.memory_space<vmem>>, vector<2x4x4x32xf32>
    %67 = arith.truncf %66 : vector<2x4x4x32xf32> to vector<2x4x4x32xbf16>
    %68 = vector.shape_cast %67 : vector<2x4x4x32xbf16> to vector<32x32xbf16>
    %c0_114 = arith.constant 0 : index
    %c1_115 = arith.constant 1 : index
    %c0_116 = arith.constant 0 : index
    %c0_117 = arith.constant 0 : index
    %69 = tpu.strided_load %arg11[%c0_114, %c1_115, %c0_116, %c0_117] {strides = array<i32: 1, 2, 2, 1>} : memref<2x10x10x32xf32, #tpu.memory_space<vmem>>, vector<2x4x4x32xf32>
    %70 = arith.truncf %69 : vector<2x4x4x32xf32> to vector<2x4x4x32xbf16>
    %71 = vector.shape_cast %70 : vector<2x4x4x32xbf16> to vector<32x32xbf16>
    %c0_118 = arith.constant 0 : index
    %c1_119 = arith.constant 1 : index
    %c1_120 = arith.constant 1 : index
    %c0_121 = arith.constant 0 : index
    %72 = tpu.strided_load %arg11[%c0_118, %c1_119, %c1_120, %c0_121] {strides = array<i32: 1, 2, 2, 1>} : memref<2x10x10x32xf32, #tpu.memory_space<vmem>>, vector<2x4x4x32xf32>
    %73 = arith.truncf %72 : vector<2x4x4x32xf32> to vector<2x4x4x32xbf16>
    %74 = vector.shape_cast %73 : vector<2x4x4x32xbf16> to vector<32x32xbf16>
    %c0_122 = arith.constant 0 : index
    %c1_123 = arith.constant 1 : index
    %c2_124 = arith.constant 2 : index
    %c0_125 = arith.constant 0 : index
    %75 = tpu.strided_load %arg11[%c0_122, %c1_123, %c2_124, %c0_125] {strides = array<i32: 1, 2, 2, 1>} : memref<2x10x10x32xf32, #tpu.memory_space<vmem>>, vector<2x4x4x32xf32>
    %76 = arith.truncf %75 : vector<2x4x4x32xf32> to vector<2x4x4x32xbf16>
    %77 = vector.shape_cast %76 : vector<2x4x4x32xbf16> to vector<32x32xbf16>
    %c0_126 = arith.constant 0 : index
    %c2_127 = arith.constant 2 : index
    %c0_128 = arith.constant 0 : index
    %c0_129 = arith.constant 0 : index
    %78 = tpu.strided_load %arg11[%c0_126, %c2_127, %c0_128, %c0_129] {strides = array<i32: 1, 2, 2, 1>} : memref<2x10x10x32xf32, #tpu.memory_space<vmem>>, vector<2x4x4x32xf32>
    %79 = arith.truncf %78 : vector<2x4x4x32xf32> to vector<2x4x4x32xbf16>
    %80 = vector.shape_cast %79 : vector<2x4x4x32xbf16> to vector<32x32xbf16>
    %c0_130 = arith.constant 0 : index
    %c2_131 = arith.constant 2 : index
    %c1_132 = arith.constant 1 : index
    %c0_133 = arith.constant 0 : index
    %81 = tpu.strided_load %arg11[%c0_130, %c2_131, %c1_132, %c0_133] {strides = array<i32: 1, 2, 2, 1>} : memref<2x10x10x32xf32, #tpu.memory_space<vmem>>, vector<2x4x4x32xf32>
    %82 = arith.truncf %81 : vector<2x4x4x32xf32> to vector<2x4x4x32xbf16>
    %83 = vector.shape_cast %82 : vector<2x4x4x32xbf16> to vector<32x32xbf16>
    %c0_134 = arith.constant 0 : index
    %c2_135 = arith.constant 2 : index
    %c2_136 = arith.constant 2 : index
    %c0_137 = arith.constant 0 : index
    %84 = tpu.strided_load %arg11[%c0_134, %c2_135, %c2_136, %c0_137] {strides = array<i32: 1, 2, 2, 1>} : memref<2x10x10x32xf32, #tpu.memory_space<vmem>>, vector<2x4x4x32xf32>
    %85 = arith.truncf %84 : vector<2x4x4x32xf32> to vector<2x4x4x32xbf16>
    %86 = vector.shape_cast %85 : vector<2x4x4x32xbf16> to vector<32x32xbf16>
    %87 = tpu.concatenate %62, %65, %68, %71, %74, %77, %80, %83, %86 in 1 : vector<32x32xbf16>, vector<32x32xbf16>, vector<32x32xbf16>, vector<32x32xbf16>, vector<32x32xbf16>, vector<32x32xbf16>, vector<32x32xbf16>, vector<32x32xbf16>, vector<32x32xbf16> -> vector<32x288xbf16>
    %c0_138 = arith.constant 0 : index
    %c0_139 = arith.constant 0 : index
    %88 = vector.load %arg4[%c0_138, %c0_139] : memref<288x48xbf16, #tpu.memory_space<vmem>>, vector<288x48xbf16>
    %cst_140 = arith.constant dense<0.000000e+00> : vector<32x48xf32>
    %89 = tpu.matmul %87, %88, %cst_140 {dimension_numbers = #tpu.dot_dimension_numbers<[1], [0], [0], [1], [0, 0, 1, 1], [], []>} : vector<32x288xbf16>, vector<288x48xbf16>, vector<32x48xf32> -> vector<32x48xf32>
    %c0_141 = arith.constant 0 : index
    %c0_142 = arith.constant 0 : index
    %90 = vector.load %arg5[%c0_141, %c0_142] : memref<1x48xf32, #tpu.memory_space<vmem>>, vector<1x48xf32>
    %91 = vector.broadcast %90 : vector<1x48xf32> to vector<32x48xf32>
    %92 = arith.addf %89, %91 : vector<32x48xf32>
    %cst_143 = arith.constant 0.000000e+00 : f32
    %93 = vector.broadcast %cst_143 : f32 to vector<32x48xf32>
    %94 = arith.cmpf oge, %92, %93 : vector<32x48xf32>
    %cst_144 = arith.constant 2.000000e-01 : f32
    %95 = vector.broadcast %cst_144 : f32 to vector<32x48xf32>
    %96 = arith.mulf %95, %92 : vector<32x48xf32>
    %97 = arith.select %94, %92, %96 : vector<32x48xi1>, vector<32x48xf32>
    %98 = vector.shape_cast %97 : vector<32x48xf32> to vector<2x4x4x48xf32>
    %c0_145 = arith.constant 0 : index
    %c1_146 = arith.constant 1 : index
    %c1_147 = arith.constant 1 : index
    %c0_148 = arith.constant 0 : index
    %99 = vector.load %arg12[%c0_145, %c1_146, %c1_147, %c0_148] : memref<2x6x6x48xf32, #tpu.memory_space<vmem>>, vector<2x4x4x48xf32>
    tpu.vector_store %arg12[%c0_145, %c1_146, %c1_147, %c0_148], %98 {strides = array<i32>} : memref<2x6x6x48xf32, #tpu.memory_space<vmem>>, vector<2x4x4x48xf32>,
    %c0_149 = arith.constant 0 : index
    %c0_150 = arith.constant 0 : index
    %c0_151 = arith.constant 0 : index
    %c0_152 = arith.constant 0 : index
    %100 = vector.load %arg12[%c0_149, %c0_150, %c0_151, %c0_152] : memref<2x6x6x48xf32, #tpu.memory_space<vmem>>, vector<2x4x4x48xf32>
    %101 = arith.truncf %100 : vector<2x4x4x48xf32> to vector<2x4x4x48xbf16>
    %102 = vector.shape_cast %101 : vector<2x4x4x48xbf16> to vector<32x48xbf16>
    %c0_153 = arith.constant 0 : index
    %c0_154 = arith.constant 0 : index
    %c1_155 = arith.constant 1 : index
    %c0_156 = arith.constant 0 : index
    %103 = vector.load %arg12[%c0_153, %c0_154, %c1_155, %c0_156] : memref<2x6x6x48xf32, #tpu.memory_space<vmem>>, vector<2x4x4x48xf32>
    %104 = arith.truncf %103 : vector<2x4x4x48xf32> to vector<2x4x4x48xbf16>
    %105 = vector.shape_cast %104 : vector<2x4x4x48xbf16> to vector<32x48xbf16>
    %c0_157 = arith.constant 0 : index
    %c0_158 = arith.constant 0 : index
    %c2_159 = arith.constant 2 : index
    %c0_160 = arith.constant 0 : index
    %106 = vector.load %arg12[%c0_157, %c0_158, %c2_159, %c0_160] : memref<2x6x6x48xf32, #tpu.memory_space<vmem>>, vector<2x4x4x48xf32>
    %107 = arith.truncf %106 : vector<2x4x4x48xf32> to vector<2x4x4x48xbf16>
    %108 = vector.shape_cast %107 : vector<2x4x4x48xbf16> to vector<32x48xbf16>
    %c0_161 = arith.constant 0 : index
    %c1_162 = arith.constant 1 : index
    %c0_163 = arith.constant 0 : index
    %c0_164 = arith.constant 0 : index
    %109 = vector.load %arg12[%c0_161, %c1_162, %c0_163, %c0_164] : memref<2x6x6x48xf32, #tpu.memory_space<vmem>>, vector<2x4x4x48xf32>
    %110 = arith.truncf %109 : vector<2x4x4x48xf32> to vector<2x4x4x48xbf16>
    %111 = vector.shape_cast %110 : vector<2x4x4x48xbf16> to vector<32x48xbf16>
    %c0_165 = arith.constant 0 : index
    %c1_166 = arith.constant 1 : index
    %c1_167 = arith.constant 1 : index
    %c0_168 = arith.constant 0 : index
    %112 = vector.load %arg12[%c0_165, %c1_166, %c1_167, %c0_168] : memref<2x6x6x48xf32, #tpu.memory_space<vmem>>, vector<2x4x4x48xf32>
    %113 = arith.truncf %112 : vector<2x4x4x48xf32> to vector<2x4x4x48xbf16>
    %114 = vector.shape_cast %113 : vector<2x4x4x48xbf16> to vector<32x48xbf16>
    %c0_169 = arith.constant 0 : index
    %c1_170 = arith.constant 1 : index
    %c2_171 = arith.constant 2 : index
    %c0_172 = arith.constant 0 : index
    %115 = vector.load %arg12[%c0_169, %c1_170, %c2_171, %c0_172] : memref<2x6x6x48xf32, #tpu.memory_space<vmem>>, vector<2x4x4x48xf32>
    %116 = arith.truncf %115 : vector<2x4x4x48xf32> to vector<2x4x4x48xbf16>
    %117 = vector.shape_cast %116 : vector<2x4x4x48xbf16> to vector<32x48xbf16>
    %c0_173 = arith.constant 0 : index
    %c2_174 = arith.constant 2 : index
    %c0_175 = arith.constant 0 : index
    %c0_176 = arith.constant 0 : index
    %118 = vector.load %arg12[%c0_173, %c2_174, %c0_175, %c0_176] : memref<2x6x6x48xf32, #tpu.memory_space<vmem>>, vector<2x4x4x48xf32>
    %119 = arith.truncf %118 : vector<2x4x4x48xf32> to vector<2x4x4x48xbf16>
    %120 = vector.shape_cast %119 : vector<2x4x4x48xbf16> to vector<32x48xbf16>
    %c0_177 = arith.constant 0 : index
    %c2_178 = arith.constant 2 : index
    %c1_179 = arith.constant 1 : index
    %c0_180 = arith.constant 0 : index
    %121 = vector.load %arg12[%c0_177, %c2_178, %c1_179, %c0_180] : memref<2x6x6x48xf32, #tpu.memory_space<vmem>>, vector<2x4x4x48xf32>
    %122 = arith.truncf %121 : vector<2x4x4x48xf32> to vector<2x4x4x48xbf16>
    %123 = vector.shape_cast %122 : vector<2x4x4x48xbf16> to vector<32x48xbf16>
    %c0_181 = arith.constant 0 : index
    %c2_182 = arith.constant 2 : index
    %c2_183 = arith.constant 2 : index
    %c0_184 = arith.constant 0 : index
    %124 = vector.load %arg12[%c0_181, %c2_182, %c2_183, %c0_184] : memref<2x6x6x48xf32, #tpu.memory_space<vmem>>, vector<2x4x4x48xf32>
    %125 = arith.truncf %124 : vector<2x4x4x48xf32> to vector<2x4x4x48xbf16>
    %126 = vector.shape_cast %125 : vector<2x4x4x48xbf16> to vector<32x48xbf16>
    %127 = tpu.concatenate %102, %105, %108, %111, %114, %117, %120, %123, %126 in 1 : vector<32x48xbf16>, vector<32x48xbf16>, vector<32x48xbf16>, vector<32x48xbf16>, vector<32x48xbf16>, vector<32x48xbf16>, vector<32x48xbf16>, vector<32x48xbf16>, vector<32x48xbf16> -> vector<32x432xbf16>
    %c0_185 = arith.constant 0 : index
    %c0_186 = arith.constant 0 : index
    %128 = vector.load %arg6[%c0_185, %c0_186] : memref<432x64xbf16, #tpu.memory_space<vmem>>, vector<432x64xbf16>
    %cst_187 = arith.constant dense<0.000000e+00> : vector<32x64xf32>
    %129 = tpu.matmul %127, %128, %cst_187 {dimension_numbers = #tpu.dot_dimension_numbers<[1], [0], [0], [1], [0, 0, 1, 1], [], []>} : vector<32x432xbf16>, vector<432x64xbf16>, vector<32x64xf32> -> vector<32x64xf32>
    %c0_188 = arith.constant 0 : index
    %c0_189 = arith.constant 0 : index
    %130 = vector.load %arg7[%c0_188, %c0_189] : memref<1x64xf32, #tpu.memory_space<vmem>>, vector<1x64xf32>
    %131 = vector.broadcast %130 : vector<1x64xf32> to vector<32x64xf32>
    %132 = arith.addf %129, %131 : vector<32x64xf32>
    %cst_190 = arith.constant 0.000000e+00 : f32
    %133 = vector.broadcast %cst_190 : f32 to vector<32x64xf32>
    %134 = arith.cmpf oge, %132, %133 : vector<32x64xf32>
    %cst_191 = arith.constant 2.000000e-01 : f32
    %135 = vector.broadcast %cst_191 : f32 to vector<32x64xf32>
    %136 = arith.mulf %135, %132 : vector<32x64xf32>
    %137 = arith.select %134, %132, %136 : vector<32x64xi1>, vector<32x64xf32>
    %138 = vector.shape_cast %137 : vector<32x64xf32> to vector<2x4x4x64xf32>
    %cst_192 = arith.constant 16.8874168 : f32
    %139 = vector.broadcast %cst_192 : f32 to vector<2x4x4x64xf32>
    %140 = arith.mulf %138, %139 : vector<2x4x4x64xf32>
    %141 = math.roundeven %140 : vector<2x4x4x64xf32>
    %cst_193 = arith.constant 16.8874168 : f32
    %142 = vector.broadcast %cst_193 : f32 to vector<2x4x4x64xf32>
    %143 = arith.divf %141, %142 : vector<2x4x4x64xf32>
    %c0_194 = arith.constant 0 : index
    %c0_195 = arith.constant 0 : index
    %c0_196 = arith.constant 0 : index
    %c0_197 = arith.constant 0 : index
    %144 = vector.load %arg8[%c0_194, %c0_195, %c0_196, %c0_197] : memref<2x4x4x64xf32, #tpu.memory_space<vmem>>, vector<2x4x4x64xf32>
    tpu.vector_store %arg8[%c0_194, %c0_195, %c0_196, %c0_197], %143 {strides = array<i32>} : memref<2x4x4x64xf32, #tpu.memory_space<vmem>>, vector<2x4x4x64xf32>,
    %145 = vector.extract_strided_slice %143 {offsets = [0, 0, 0, 0], sizes = [1, 4, 4, 64], strides = [1, 1, 1, 1]} : vector<2x4x4x64xf32> to vector<1x4x4x64xf32>
    %146 = vector.shape_cast %145 : vector<1x4x4x64xf32> to vector<4x4x64xf32>
    %147 = math.absf %146 : vector<4x4x64xf32>
    %148 = vector.shape_cast %147 : vector<4x4x64xf32> to vector<1x4x4x64xf32>
    %cst_198 = arith.constant dense<0.000000e+00> : vector<1xf32>
    %149 = vector.multi_reduction <add>, %148, %cst_198 [1, 2, 3] : vector<1x4x4x64xf32> to vector<1xf32>
    %150 = vector.shape_cast %149 : vector<1xf32> to vector<1x1x1x1xf32>
    %151 = vector.extract %150[0, 0, 0, 0] : f32 from vector<1x1x1x1xf32>
    %cst_199 = arith.constant 2.560000e+02 : f32
    %152 = arith.divf %151, %cst_199 : f32
    %cst_200 = arith.constant 1.000000e-01 : f32
    %153 = arith.mulf %152, %cst_200 : f32
    %cst_201 = arith.constant 0.00999999977 : f32
    %cst_202 = arith.constant 2.000000e+00 : f32
    %154 = arith.maximumf %cst_201, %153 : f32
    %155 = arith.minimumf %cst_202, %154 : f32
    %c0_203 = arith.constant 0 : index
    %c0_204 = arith.constant 0 : index
    %156 = memref.load %arg9[%c0_203, %c0_204] : memref<2x1xf32, #tpu.memory_space<smem>>
    memref.store %155, %arg9[%c0_203, %c0_204] : memref<2x1xf32, #tpu.memory_space<smem>>
    %157 = vector.extract_strided_slice %143 {offsets = [1, 0, 0, 0], sizes = [1, 4, 4, 64], strides = [1, 1, 1, 1]} : vector<2x4x4x64xf32> to vector<1x4x4x64xf32>
    %158 = vector.shape_cast %157 : vector<1x4x4x64xf32> to vector<4x4x64xf32>
    %159 = math.absf %158 : vector<4x4x64xf32>
    %160 = vector.shape_cast %159 : vector<4x4x64xf32> to vector<1x4x4x64xf32>
    %cst_205 = arith.constant dense<0.000000e+00> : vector<1xf32>
    %161 = vector.multi_reduction <add>, %160, %cst_205 [1, 2, 3] : vector<1x4x4x64xf32> to vector<1xf32>
    %162 = vector.shape_cast %161 : vector<1xf32> to vector<1x1x1x1xf32>
    %163 = vector.extract %162[0, 0, 0, 0] : f32 from vector<1x1x1x1xf32>
    %cst_206 = arith.constant 2.560000e+02 : f32
    %164 = arith.divf %163, %cst_206 : f32
    %cst_207 = arith.constant 1.000000e-01 : f32
    %165 = arith.mulf %164, %cst_207 : f32
    %cst_208 = arith.constant 0.00999999977 : f32
    %cst_209 = arith.constant 2.000000e+00 : f32
    %166 = arith.maximumf %cst_208, %165 : f32
    %167 = arith.minimumf %cst_209, %166 : f32
    %c1_210 = arith.constant 1 : index
    %c0_211 = arith.constant 0 : index
    %168 = memref.load %arg9[%c1_210, %c0_211] : memref<2x1xf32, #tpu.memory_space<smem>>
    memref.store %167, %arg9[%c1_210, %c0_211] : memref<2x1xf32, #tpu.memory_space<smem>>
    return
  }
  func.func @transform_0(%arg0: i32) -> (i32, i32, i32, i32) {
    %c0_i32 = arith.constant 0 : i32
    %c0_i32_0 = arith.constant 0 : i32
    %c0_i32_1 = arith.constant 0 : i32
    %c0_i32_2 = arith.constant 0 : i32
    return %arg0, %c0_i32, %c0_i32_0, %c0_i32_1 : i32, i32, i32, i32
  }
  func.func @transform_1(%arg0: i32) -> (i32, i32) {
    %c0_i32 = arith.constant 0 : i32
    %c0_i32_0 = arith.constant 0 : i32
    %c0_i32_1 = arith.constant 0 : i32
    return %c0_i32, %c0_i32_0 : i32, i32
  }
  func.func @transform_2(%arg0: i32) -> (i32, i32) {
    %c0_i32 = arith.constant 0 : i32
    %c0_i32_0 = arith.constant 0 : i32
    %c0_i32_1 = arith.constant 0 : i32
    return %c0_i32, %c0_i32_0 : i32, i32
  }
  func.func @transform_3(%arg0: i32) -> (i32, i32) {
    %c0_i32 = arith.constant 0 : i32
    %c0_i32_0 = arith.constant 0 : i32
    %c0_i32_1 = arith.constant 0 : i32
    return %c0_i32, %c0_i32_0 : i32, i32
  }
  func.func @transform_4(%arg0: i32) -> (i32, i32) {
    %c0_i32 = arith.constant 0 : i32
    %c0_i32_0 = arith.constant 0 : i32
    %c0_i32_1 = arith.constant 0 : i32
    return %c0_i32, %c0_i32_0 : i32, i32
  }
  func.func @transform_5(%arg0: i32) -> (i32, i32) {
    %c0_i32 = arith.constant 0 : i32
    %c0_i32_0 = arith.constant 0 : i32
    %c0_i32_1 = arith.constant 0 : i32
    return %c0_i32, %c0_i32_0 : i32, i32
  }
  func.func @transform_6(%arg0: i32) -> (i32, i32) {
    %c0_i32 = arith.constant 0 : i32
    %c0_i32_0 = arith.constant 0 : i32
    %c0_i32_1 = arith.constant 0 : i32
    return %c0_i32, %c0_i32_0 : i32, i32
  }
  func.func @transform_7(%arg0: i32) -> (i32, i32, i32, i32) {
    %c0_i32 = arith.constant 0 : i32
    %c0_i32_0 = arith.constant 0 : i32
    %c0_i32_1 = arith.constant 0 : i32
    %c0_i32_2 = arith.constant 0 : i32
    return %arg0, %c0_i32, %c0_i32_0, %c0_i32_1 : i32, i32, i32, i32
  }
  func.func @transform_8(%arg0: i32) -> (i32, i32) {
    %c0_i32 = arith.constant 0 : i32
    %c0_i32_0 = arith.constant 0 : i32
    return %arg0, %c0_i32 : i32, i32
  }
}

</mosaic_0001>

<llo_original>
// kernel: tpu_custom_call.1
$region0: #{tpu_custom_call.1}
  #allocation0 [shape = 'u32[]', space=smem, size = 0x4, offset = 0x4, fixed_abs, tag = 'smem constant byte address 0x4 - core index']
  #allocation1 [shape = 'u32[144,128]{1,0:T(1,128)}', space=vmem, size = 0x12000, scoped, tag = 'internal scratch']
  #allocation2 [shape = 'f32[2,18,18,3]{3,2,1,0:T(8,128)}', space=vmem, size = 0x6c000, scoped, tag = 'scratch operand']
  #allocation3 [shape = 'f32[2,10,10,32]{3,2,1,0:T(8,128)}', space=vmem, size = 0x28000, scoped, tag = 'scratch operand']
  #allocation4 [shape = 'f32[2,6,6,48]{3,2,1,0:T(8,128)}', space=vmem, size = 0xc000, scoped, tag = 'scratch operand']
  %s0 = inlined_call_operand.vmem [shape: f32[2,16,16,3], index: 0, kind: input, shape index: {}]
  %s1 = inlined_call_operand.vmem [shape: bf16[27,32], index: 1, kind: input, shape index: {}]
  %s2 = inlined_call_operand.vmem [shape: f32[1,32], index: 2, kind: input, shape index: {}]
  %s3 = inlined_call_operand.vmem [shape: bf16[288,48], index: 3, kind: input, shape index: {}]
  %s4 = inlined_call_operand.vmem [shape: f32[1,48], index: 4, kind: input, shape index: {}]
  %s5 = inlined_call_operand.vmem [shape: bf16[432,64], index: 5, kind: input, shape index: {}]
  %s6 = inlined_call_operand.vmem [shape: f32[1,64], index: 6, kind: input, shape index: {}]
  %s7 = inlined_call_operand.hbm [shape: f32[2,4,4,64], index: 7, kind: output, shape index: {0}]
  %s8 = inlined_call_operand.vmem [shape: f32[2,1], index: 8, kind: output, shape index: {1}]
  %9 = xla_tuple %s7, %s8
  %s10 = sld [smem:[#allocation0]]
  $region46: #{tpu_custom_call.1} parent=0
    _
  %s12 = ssub.s32 1, %s10
  %s13 = scalar_select 0, %s12, %s10
  $region1: #{tpu_custom_call.1} parent=0
    #allocation5 [shape = 'u8[16384]{0}', space=vmem, size = 0x4000, scoped, tag = 'output window, operand 0, single buffered']
    #allocation6 [shape = 's32[1]{0}', space=sflag, size = 0x4, scoped, tag = 'scoped memory for tpu_custom_call.1']
    #allocation7 [shape = 's32[1]{0}', space=sflag, size = 0x4, scoped, tag = 'scoped memory for tpu_custom_call.1']
    #allocation8 [shape = 'u8[1024]{0}', space=smem, size = 0x400, scoped, tag = 'output window, operand 1, single buffered']
    %14 = vsyncpa [#allocation6], 0
    %15 = vsyncpa [#allocation7], 0
    // Predicated region
    $region2: #{tpu_custom_call.1} parent=1 // pred_check
      _
    $region3: #{tpu_custom_call.1} parent=1 // pred_check_branch
      %17 = sbr.rel (0) target = $region5
    $region4: #{tpu_custom_call.1} parent=1 // pred_region
      _
    $region5: #{tpu_custom_call.1} parent=1 // pred_fallthru
      _
    // Predicated region
    $region6: #{tpu_custom_call.1} parent=1 // pred_check
      _
    $region7: #{tpu_custom_call.1} parent=1 // pred_check_branch
      %19 = sbr.rel (0) target = $region9
    $region8: #{tpu_custom_call.1} parent=1 // pred_region
      _
    $region9: #{tpu_custom_call.1} parent=1 // pred_fallthru
      _
    // Predicated region
    $region10: #{tpu_custom_call.1} parent=1 // pred_check
      _
    $region11: #{tpu_custom_call.1} parent=1 // pred_check_branch
      %21 = sbr.rel (0) target = $region13
    $region12: #{tpu_custom_call.1} parent=1 // pred_region
      _
    $region13: #{tpu_custom_call.1} parent=1 // pred_fallthru
      _
    // Predicated region
    $region14: #{tpu_custom_call.1} parent=1 // pred_check
      _
    $region15: #{tpu_custom_call.1} parent=1 // pred_check_branch
      %23 = sbr.rel (0) target = $region17
    $region16: #{tpu_custom_call.1} parent=1 // pred_region
      _
    $region17: #{tpu_custom_call.1} parent=1 // pred_fallthru
      _
    // Predicated region
    $region18: #{tpu_custom_call.1} parent=1 // pred_check
      _
    $region19: #{tpu_custom_call.1} parent=1 // pred_check_branch
      %25 = sbr.rel (0) target = $region21
    $region20: #{tpu_custom_call.1} parent=1 // pred_region
      _
    $region21: #{tpu_custom_call.1} parent=1 // pred_fallthru
      _
    // Predicated region
    $region22: #{tpu_custom_call.1} parent=1 // pred_check
      _
    $region23: #{tpu_custom_call.1} parent=1 // pred_check_branch
      %27 = sbr.rel (0) target = $region25
    $region24: #{tpu_custom_call.1} parent=1 // pred_region
      _
    $region25: #{tpu_custom_call.1} parent=1 // pred_fallthru
      _
    // Predicated region
    $region26: #{tpu_custom_call.1} parent=1 // pred_check
      _
    $region27: #{tpu_custom_call.1} parent=1 // pred_check_branch
      %29 = sbr.rel (0) target = $region29
    $region28: #{tpu_custom_call.1} parent=1 // pred_region
      _
    $region29: #{tpu_custom_call.1} parent=1 // pred_fallthru
      _
    %vm31 = vcmask 23552
    %32 = vst.msk [vmem:[#allocation2] sm:$0xff] %vm31, 0.0
    %33 = vst.msk [vmem:[#allocation2 + $0x8] sm:$0xff] %vm31, 0.0
    %vm34 = vcmask 17408
    %35 = vst.msk [vmem:[#allocation2 + $0x10] sm:$0x3] %vm34, 0.0
    %36 = vst.msk [vmem:[#allocation2 + $0x1b0] sm:$0xff] %vm31, 0.0
    %37 = vst.msk [vmem:[#allocation2 + $0x1b8] sm:$0xff] %vm31, 0.0
    %38 = vst.msk [vmem:[#allocation2 + $0x1c0] sm:$0x3] %vm34, 0.0
    %s39 = scalar_lea.vmem [#allocation2], 408
    %40 = vst.msk [vmem:[%s39] sm:$0xff] %vm31, 0.0
    %41 = vst.msk [vmem:[%s39 + $0x8] sm:$0xff] %vm31, 0.0
    %42 = vst.msk [vmem:[%s39 + $0x10] sm:$0x3] %vm34, 0.0
    %43 = vst.msk [vmem:[%s39 + $0x1b0] sm:$0xff] %vm31, 0.0
    %44 = vst.msk [vmem:[%s39 + $0x1b8] sm:$0xff] %vm31, 0.0
    %45 = vst.msk [vmem:[%s39 + $0x1c0] sm:$0x3] %vm34, 0.0
    %vm46 = vcmask 16384
    %47 = vst.msk [vmem:[#allocation2] sm:$0x1] %vm46, 0.0
    %48 = vst.msk [vmem:[#allocation2 + $0x18] sm:$0x1] %vm46, 0.0
    %49 = vst.msk [vmem:[#allocation2 + $0x30] sm:$0x1] %vm46, 0.0
    %50 = vst.msk [vmem:[#allocation2 + $0x48] sm:$0x1] %vm46, 0.0
    %51 = vst.msk [vmem:[#allocation2 + $0x60] sm:$0x1] %vm46, 0.0
    %52 = vst.msk [vmem:[#allocation2 + $0x78] sm:$0x1] %vm46, 0.0
    %53 = vst.msk [vmem:[#allocation2 + $0x90] sm:$0x1] %vm46, 0.0
    %54 = vst.msk [vmem:[#allocation2 + $0xa8] sm:$0x1] %vm46, 0.0
    %55 = vst.msk [vmem:[#allocation2 + $0xc0] sm:$0x1] %vm46, 0.0
    %56 = vst.msk [vmem:[#allocation2 + $0xd8] sm:$0x1] %vm46, 0.0
    %57 = vst.msk [vmem:[#allocation2 + $0xf0] sm:$0x1] %vm46, 0.0
    %58 = vst.msk [vmem:[#allocation2 + $0x108] sm:$0x1] %vm46, 0.0
    %59 = vst.msk [vmem:[#allocation2 + $0x120] sm:$0x1] %vm46, 0.0
    %60 = vst.msk [vmem:[#allocation2 + $0x138] sm:$0x1] %vm46, 0.0
    %61 = vst.msk [vmem:[#allocation2 + $0x150] sm:$0x1] %vm46, 0.0
    %62 = vst.msk [vmem:[#allocation2 + $0x168] sm:$0x1] %vm46, 0.0
    %63 = vst.msk [vmem:[#allocation2 + $0x180] sm:$0x1] %vm46, 0.0
    %64 = vst.msk [vmem:[#allocation2 + $0x198] sm:$0x1] %vm46, 0.0
    %65 = vst.msk [vmem:[#allocation2 + $0x1b0] sm:$0x1] %vm46, 0.0
    %66 = vst.msk [vmem:[#allocation2 + $0x1c8] sm:$0x1] %vm46, 0.0
    %67 = vst.msk [vmem:[#allocation2 + $0x1e0] sm:$0x1] %vm46, 0.0
    %68 = vst.msk [vmem:[#allocation2 + $0x1f8] sm:$0x1] %vm46, 0.0
    %69 = vst.msk [vmem:[#allocation2 + $0x210] sm:$0x1] %vm46, 0.0
    %70 = vst.msk [vmem:[#allocation2 + $0x228] sm:$0x1] %vm46, 0.0
    %71 = vst.msk [vmem:[#allocation2 + $0x240] sm:$0x1] %vm46, 0.0
    %72 = vst.msk [vmem:[#allocation2 + $0x258] sm:$0x1] %vm46, 0.0
    %73 = vst.msk [vmem:[#allocation2 + $0x270] sm:$0x1] %vm46, 0.0
    %74 = vst.msk [vmem:[#allocation2 + $0x288] sm:$0x1] %vm46, 0.0
    %75 = vst.msk [vmem:[#allocation2 + $0x2a0] sm:$0x1] %vm46, 0.0
    %76 = vst.msk [vmem:[#allocation2 + $0x2b8] sm:$0x1] %vm46, 0.0
    %77 = vst.msk [vmem:[#allocation2 + $0x2d0] sm:$0x1] %vm46, 0.0
    %78 = vst.msk [vmem:[#allocation2 + $0x2e8] sm:$0x1] %vm46, 0.0
    %79 = vst.msk [vmem:[#allocation2 + $0x300] sm:$0x1] %vm46, 0.0
    %80 = vst.msk [vmem:[#allocation2 + $0x318] sm:$0x1] %vm46, 0.0
    %81 = vst.msk [vmem:[#allocation2 + $0x330] sm:$0x1] %vm46, 0.0
    %82 = vst.msk [vmem:[#allocation2 + $0x348] sm:$0x1] %vm46, 0.0
    %83 = vst.msk [vmem:[#allocation2 + $0x11] sm:$0x1] %vm46, 0.0
    %84 = vst.msk [vmem:[#allocation2 + $0x29] sm:$0x1] %vm46, 0.0
    %85 = vst.msk [vmem:[#allocation2 + $0x41] sm:$0x1] %vm46, 0.0
    %86 = vst.msk [vmem:[#allocation2 + $0x59] sm:$0x1] %vm46, 0.0
    %87 = vst.msk [vmem:[#allocation2 + $0x71] sm:$0x1] %vm46, 0.0
    %88 = vst.msk [vmem:[#allocation2 + $0x89] sm:$0x1] %vm46, 0.0
    %89 = vst.msk [vmem:[#allocation2 + $0xa1] sm:$0x1] %vm46, 0.0
    %90 = vst.msk [vmem:[#allocation2 + $0xb9] sm:$0x1] %vm46, 0.0
    %91 = vst.msk [vmem:[#allocation2 + $0xd1] sm:$0x1] %vm46, 0.0
    %92 = vst.msk [vmem:[#allocation2 + $0xe9] sm:$0x1] %vm46, 0.0
    %93 = vst.msk [vmem:[#allocation2 + $0x101] sm:$0x1] %vm46, 0.0
    %94 = vst.msk [vmem:[#allocation2 + $0x119] sm:$0x1] %vm46, 0.0
    %95 = vst.msk [vmem:[#allocation2 + $0x131] sm:$0x1] %vm46, 0.0
    %96 = vst.msk [vmem:[#allocation2 + $0x149] sm:$0x1] %vm46, 0.0
    %97 = vst.msk [vmem:[#allocation2 + $0x161] sm:$0x1] %vm46, 0.0
    %98 = vst.msk [vmem:[#allocation2 + $0x179] sm:$0x1] %vm46, 0.0
    %99 = vst.msk [vmem:[#allocation2 + $0x191] sm:$0x1] %vm46, 0.0
    %100 = vst.msk [vmem:[#allocation2 + $0x1a9] sm:$0x1] %vm46, 0.0
    %101 = vst.msk [vmem:[#allocation2 + $0x1c1] sm:$0x1] %vm46, 0.0
    %102 = vst.msk [vmem:[#allocation2 + $0x1d9] sm:$0x1] %vm46, 0.0
    %103 = vst.msk [vmem:[#allocation2 + $0x1f1] sm:$0x1] %vm46, 0.0
    %104 = vst.msk [vmem:[#allocation2 + $0x209] sm:$0x1] %vm46, 0.0
    %105 = vst.msk [vmem:[#allocation2 + $0x221] sm:$0x1] %vm46, 0.0
    %106 = vst.msk [vmem:[#allocation2 + $0x239] sm:$0x1] %vm46, 0.0
    %107 = vst.msk [vmem:[#allocation2 + $0x251] sm:$0x1] %vm46, 0.0
    %108 = vst.msk [vmem:[#allocation2 + $0x269] sm:$0x1] %vm46, 0.0
    %109 = vst.msk [vmem:[#allocation2 + $0x281] sm:$0x1] %vm46, 0.0
    %110 = vst.msk [vmem:[#allocation2 + $0x299] sm:$0x1] %vm46, 0.0
    %111 = vst.msk [vmem:[#allocation2 + $0x2b1] sm:$0x1] %vm46, 0.0
    %112 = vst.msk [vmem:[#allocation2 + $0x2c9] sm:$0x1] %vm46, 0.0
    %113 = vst.msk [vmem:[#allocation2 + $0x2e1] sm:$0x1] %vm46, 0.0
    %114 = vst.msk [vmem:[#allocation2 + $0x2f9] sm:$0x1] %vm46, 0.0
    %115 = vst.msk [vmem:[#allocation2 + $0x311] sm:$0x1] %vm46, 0.0
    %116 = vst.msk [vmem:[#allocation2 + $0x329] sm:$0x1] %vm46, 0.0
    %117 = vst.msk [vmem:[#allocation2 + $0x341] sm:$0x1] %vm46, 0.0
    %118 = vst.msk [vmem:[#allocation2 + $0x359] sm:$0x1] %vm46, 0.0
    %vm119 = vcmask 261120
    %120 = vst.msk [vmem:[#allocation3] sm:$0xff] %vm119, 0.0
    %vm121 = vcmask 254976
    %122 = vst.msk [vmem:[#allocation3 + $0x8] sm:$0x3] %vm121, 0.0
    %123 = vst.msk [vmem:[#allocation3 + $0xa0] sm:$0xff] %vm119, 0.0
    %124 = vst.msk [vmem:[#allocation3 + $0xa8] sm:$0x3] %vm121, 0.0
    %s125 = scalar_lea.vmem [#allocation3], 144
    %126 = vst.msk [vmem:[%s125] sm:$0xff] %vm119, 0.0
    %127 = vst.msk [vmem:[%s125 + $0x8] sm:$0x3] %vm121, 0.0
    %128 = vst.msk [vmem:[%s125 + $0xa0] sm:$0xff] %vm119, 0.0
    %129 = vst.msk [vmem:[%s125 + $0xa8] sm:$0x3] %vm121, 0.0
    %vm130 = vcmask 253952
    %131 = vst.msk [vmem:[#allocation3] sm:$0x1] %vm130, 0.0
    %132 = vst.msk [vmem:[#allocation3 + $0x10] sm:$0x1] %vm130, 0.0
    %133 = vst.msk [vmem:[#allocation3 + $0x20] sm:$0x1] %vm130, 0.0
    %134 = vst.msk [vmem:[#allocation3 + $0x30] sm:$0x1] %vm130, 0.0
    %135 = vst.msk [vmem:[#allocation3 + $0x40] sm:$0x1] %vm130, 0.0
    %136 = vst.msk [vmem:[#allocation3 + $0x50] sm:$0x1] %vm130, 0.0
    %137 = vst.msk [vmem:[#allocation3 + $0x60] sm:$0x1] %vm130, 0.0
    %138 = vst.msk [vmem:[#allocation3 + $0x70] sm:$0x1] %vm130, 0.0
    %139 = vst.msk [vmem:[#allocation3 + $0x80] sm:$0x1] %vm130, 0.0
    %140 = vst.msk [vmem:[#allocation3 + $0x90] sm:$0x1] %vm130, 0.0
    %141 = vst.msk [vmem:[#allocation3 + $0xa0] sm:$0x1] %vm130, 0.0
    %142 = vst.msk [vmem:[#allocation3 + $0xb0] sm:$0x1] %vm130, 0.0
    %143 = vst.msk [vmem:[#allocation3 + $0xc0] sm:$0x1] %vm130, 0.0
    %144 = vst.msk [vmem:[#allocation3 + $0xd0] sm:$0x1] %vm130, 0.0
    %145 = vst.msk [vmem:[#allocation3 + $0xe0] sm:$0x1] %vm130, 0.0
    %146 = vst.msk [vmem:[#allocation3 + $0xf0] sm:$0x1] %vm130, 0.0
    %147 = vst.msk [vmem:[#allocation3 + $0x100] sm:$0x1] %vm130, 0.0
    %148 = vst.msk [vmem:[#allocation3 + $0x110] sm:$0x1] %vm130, 0.0
    %149 = vst.msk [vmem:[#allocation3 + $0x120] sm:$0x1] %vm130, 0.0
    %150 = vst.msk [vmem:[#allocation3 + $0x130] sm:$0x1] %vm130, 0.0
    %151 = vst.msk [vmem:[#allocation3 + $0x9] sm:$0x1] %vm130, 0.0
    %152 = vst.msk [vmem:[#allocation3 + $0x19] sm:$0x1] %vm130, 0.0
    %153 = vst.msk [vmem:[#allocation3 + $0x29] sm:$0x1] %vm130, 0.0
    %154 = vst.msk [vmem:[#allocation3 + $0x39] sm:$0x1] %vm130, 0.0
    %155 = vst.msk [vmem:[#allocation3 + $0x49] sm:$0x1] %vm130, 0.0
    %156 = vst.msk [vmem:[#allocation3 + $0x59] sm:$0x1] %vm130, 0.0
    %157 = vst.msk [vmem:[#allocation3 + $0x69] sm:$0x1] %vm130, 0.0
    %158 = vst.msk [vmem:[#allocation3 + $0x79] sm:$0x1] %vm130, 0.0
    %159 = vst.msk [vmem:[#allocation3 + $0x89] sm:$0x1] %vm130, 0.0
    %160 = vst.msk [vmem:[#allocation3 + $0x99] sm:$0x1] %vm130, 0.0
    %161 = vst.msk [vmem:[#allocation3 + $0xa9] sm:$0x1] %vm130, 0.0
    %162 = vst.msk [vmem:[#allocation3 + $0xb9] sm:$0x1] %vm130, 0.0
    %163 = vst.msk [vmem:[#allocation3 + $0xc9] sm:$0x1] %vm130, 0.0
    %164 = vst.msk [vmem:[#allocation3 + $0xd9] sm:$0x1] %vm130, 0.0
    %165 = vst.msk [vmem:[#allocation3 + $0xe9] sm:$0x1] %vm130, 0.0
    %166 = vst.msk [vmem:[#allocation3 + $0xf9] sm:$0x1] %vm130, 0.0
    %167 = vst.msk [vmem:[#allocation3 + $0x109] sm:$0x1] %vm130, 0.0
    %168 = vst.msk [vmem:[#allocation3 + $0x119] sm:$0x1] %vm130, 0.0
    %169 = vst.msk [vmem:[#allocation3 + $0x129] sm:$0x1] %vm130, 0.0
    %170 = vst.msk [vmem:[#allocation3 + $0x139] sm:$0x1] %vm130, 0.0
    %vm171 = vcmask 390144
    %172 = vst.msk [vmem:[#allocation4] sm:$0x3f] %vm171, 0.0
    %173 = vst.msk [vmem:[#allocation4 + $0x30] sm:$0x3f] %vm171, 0.0
    %s174 = scalar_lea.vmem [#allocation4], 40
    %175 = vst.msk [vmem:[%s174] sm:$0x3f] %vm171, 0.0
    %176 = vst.msk [vmem:[%s174 + $0x30] sm:$0x3f] %vm171, 0.0
    %vm177 = vcmask 385024
    %178 = vst.msk [vmem:[#allocation4] sm:$0x1] %vm177, 0.0
    %179 = vst.msk [vmem:[#allocation4 + $0x8] sm:$0x1] %vm177, 0.0
    %180 = vst.msk [vmem:[#allocation4 + $0x10] sm:$0x1] %vm177, 0.0
    %181 = vst.msk [vmem:[#allocation4 + $0x18] sm:$0x1] %vm177, 0.0
    %182 = vst.msk [vmem:[#allocation4 + $0x20] sm:$0x1] %vm177, 0.0
    %183 = vst.msk [vmem:[#allocation4 + $0x28] sm:$0x1] %vm177, 0.0
    %184 = vst.msk [vmem:[#allocation4 + $0x30] sm:$0x1] %vm177, 0.0
    %185 = vst.msk [vmem:[#allocation4 + $0x38] sm:$0x1] %vm177, 0.0
    %186 = vst.msk [vmem:[#allocation4 + $0x40] sm:$0x1] %vm177, 0.0
    %187 = vst.msk [vmem:[#allocation4 + $0x48] sm:$0x1] %vm177, 0.0
    %188 = vst.msk [vmem:[#allocation4 + $0x50] sm:$0x1] %vm177, 0.0
    %189 = vst.msk [vmem:[#allocation4 + $0x58] sm:$0x1] %vm177, 0.0
    %190 = vst.msk [vmem:[#allocation4 + $0x5] sm:$0x1] %vm177, 0.0
    %191 = vst.msk [vmem:[#allocation4 + $0xd] sm:$0x1] %vm177, 0.0
    %192 = vst.msk [vmem:[#allocation4 + $0x15] sm:$0x1] %vm177, 0.0
    %193 = vst.msk [vmem:[#allocation4 + $0x1d] sm:$0x1] %vm177, 0.0
    %194 = vst.msk [vmem:[#allocation4 + $0x25] sm:$0x1] %vm177, 0.0
    %195 = vst.msk [vmem:[#allocation4 + $0x2d] sm:$0x1] %vm177, 0.0
    %196 = vst.msk [vmem:[#allocation4 + $0x35] sm:$0x1] %vm177, 0.0
    %197 = vst.msk [vmem:[#allocation4 + $0x3d] sm:$0x1] %vm177, 0.0
    %198 = vst.msk [vmem:[#allocation4 + $0x45] sm:$0x1] %vm177, 0.0
    %199 = vst.msk [vmem:[#allocation4 + $0x4d] sm:$0x1] %vm177, 0.0
    %200 = vst.msk [vmem:[#allocation4 + $0x55] sm:$0x1] %vm177, 0.0
    %201 = vst.msk [vmem:[#allocation4 + $0x5d] sm:$0x1] %vm177, 0.0
    %v202 = vld [vmem:[%s0] sm:$0xff]
    %v203 = vld [vmem:[%s0 + $0x8] sm:$0xff]
    %v204 = vld [vmem:[%s0 + $0x10] sm:$0xff]
    %v205 = vld [vmem:[%s0 + $0x18] sm:$0xff]
    %v206 = vld [vmem:[%s0 + $0x20] sm:$0xff]
    %v207 = vld [vmem:[%s0 + $0x28] sm:$0xff]
    %v208 = vld [vmem:[%s0 + $0x30] sm:$0xff]
    %v209 = vld [vmem:[%s0 + $0x38] sm:$0xff]
    %v210 = vld [vmem:[%s0 + $0x40] sm:$0xff]
    %v211 = vld [vmem:[%s0 + $0x48] sm:$0xff]
    %v212 = vld [vmem:[%s0 + $0x50] sm:$0xff]
    %v213 = vld [vmem:[%s0 + $0x58] sm:$0xff]
    %v214 = vld [vmem:[%s0 + $0x60] sm:$0xff]
    %v215 = vld [vmem:[%s0 + $0x68] sm:$0xff]
    %v216 = vld [vmem:[%s0 + $0x70] sm:$0xff]
    %v217 = vld [vmem:[%s0 + $0x78] sm:$0xff]
    %v218 = vld [vmem:[%s0 + $0x80] sm:$0xff]
    %v219 = vld [vmem:[%s0 + $0x88] sm:$0xff]
    %v220 = vld [vmem:[%s0 + $0x90] sm:$0xff]
    %v221 = vld [vmem:[%s0 + $0x98] sm:$0xff]
    %v222 = vld [vmem:[%s0 + $0xa0] sm:$0xff]
    %v223 = vld [vmem:[%s0 + $0xa8] sm:$0xff]
    %v224 = vld [vmem:[%s0 + $0xb0] sm:$0xff]
    %v225 = vld [vmem:[%s0 + $0xb8] sm:$0xff]
    %v226 = vld [vmem:[%s0 + $0xc0] sm:$0xff]
    %v227 = vld [vmem:[%s0 + $0xc8] sm:$0xff]
    %v228 = vld [vmem:[%s0 + $0xd0] sm:$0xff]
    %v229 = vld [vmem:[%s0 + $0xd8] sm:$0xff]
    %v230 = vld [vmem:[%s0 + $0xe0] sm:$0xff]
    %v231 = vld [vmem:[%s0 + $0xe8] sm:$0xff]
    %v232 = vld [vmem:[%s0 + $0xf0] sm:$0xff]
    %v233 = vld [vmem:[%s0 + $0xf8] sm:$0xff]
    %v234 = vld [vmem:[%s0 + $0x100] sm:$0xff]
    %v235 = vld [vmem:[%s0 + $0x108] sm:$0xff]
    %v236 = vld [vmem:[%s0 + $0x110] sm:$0xff]
    %v237 = vld [vmem:[%s0 + $0x118] sm:$0xff]
    %v238 = vld [vmem:[%s0 + $0x120] sm:$0xff]
    %v239 = vld [vmem:[%s0 + $0x128] sm:$0xff]
    %v240 = vld [vmem:[%s0 + $0x130] sm:$0xff]
    %v241 = vld [vmem:[%s0 + $0x138] sm:$0xff]
    %v242 = vld [vmem:[%s0 + $0x140] sm:$0xff]
    %v243 = vld [vmem:[%s0 + $0x148] sm:$0xff]
    %v244 = vld [vmem:[%s0 + $0x150] sm:$0xff]
    %v245 = vld [vmem:[%s0 + $0x158] sm:$0xff]
    %v246 = vld [vmem:[%s0 + $0x160] sm:$0xff]
    %v247 = vld [vmem:[%s0 + $0x168] sm:$0xff]
    %v248 = vld [vmem:[%s0 + $0x170] sm:$0xff]
    %v249 = vld [vmem:[%s0 + $0x178] sm:$0xff]
    %v250 = vld [vmem:[%s0 + $0x180] sm:$0xff]
    %v251 = vld [vmem:[%s0 + $0x188] sm:$0xff]
    %v252 = vld [vmem:[%s0 + $0x190] sm:$0xff]
    %v253 = vld [vmem:[%s0 + $0x198] sm:$0xff]
    %v254 = vld [vmem:[%s0 + $0x1a0] sm:$0xff]
    %v255 = vld [vmem:[%s0 + $0x1a8] sm:$0xff]
    %v256 = vld [vmem:[%s0 + $0x1b0] sm:$0xff]
    %v257 = vld [vmem:[%s0 + $0x1b8] sm:$0xff]
    %v258 = vld [vmem:[%s0 + $0x1c0] sm:$0xff]
    %v259 = vld [vmem:[%s0 + $0x1c8] sm:$0xff]
    %v260 = vld [vmem:[%s0 + $0x1d0] sm:$0xff]
    %v261 = vld [vmem:[%s0 + $0x1d8] sm:$0xff]
    %v262 = vld [vmem:[%s0 + $0x1e0] sm:$0xff]
    %v263 = vld [vmem:[%s0 + $0x1e8] sm:$0xff]
    %v264 = vld [vmem:[%s0 + $0x1f0] sm:$0xff]
    %v265 = vld [vmem:[%s0 + $0x1f8] sm:$0xff]
    %s266 = scalar_lea.vmem [#allocation2], 24
    %267 = vst.msk [vmem:[%s266 + $0x1] sm:$0xff] %vm31, %v202
    %268 = vst.msk [vmem:[%s266 + $0x9] sm:$0xff] %vm31, %v203
    %269 = vst.msk [vmem:[%s266 + $0x19] sm:$0xff] %vm31, %v204
    %270 = vst.msk [vmem:[%s266 + $0x21] sm:$0xff] %vm31, %v205
    %271 = vst.msk [vmem:[%s266 + $0x31] sm:$0xff] %vm31, %v206
    %272 = vst.msk [vmem:[%s266 + $0x39] sm:$0xff] %vm31, %v207
    %273 = vst.msk [vmem:[%s266 + $0x49] sm:$0xff] %vm31, %v208
    %274 = vst.msk [vmem:[%s266 + $0x51] sm:$0xff] %vm31, %v209
    %275 = vst.msk [vmem:[%s266 + $0x61] sm:$0xff] %vm31, %v210
    %276 = vst.msk [vmem:[%s266 + $0x69] sm:$0xff] %vm31, %v211
    %277 = vst.msk [vmem:[%s266 + $0x79] sm:$0xff] %vm31, %v212
    %278 = vst.msk [vmem:[%s266 + $0x81] sm:$0xff] %vm31, %v213
    %279 = vst.msk [vmem:[%s266 + $0x91] sm:$0xff] %vm31, %v214
    %280 = vst.msk [vmem:[%s266 + $0x99] sm:$0xff] %vm31, %v215
    %281 = vst.msk [vmem:[%s266 + $0xa9] sm:$0xff] %vm31, %v216
    %282 = vst.msk [vmem:[%s266 + $0xb1] sm:$0xff] %vm31, %v217
    %283 = vst.msk [vmem:[%s266 + $0xc1] sm:$0xff] %vm31, %v218
    %284 = vst.msk [vmem:[%s266 + $0xc9] sm:$0xff] %vm31, %v219
    %285 = vst.msk [vmem:[%s266 + $0xd9] sm:$0xff] %vm31, %v220
    %286 = vst.msk [vmem:[%s266 + $0xe1] sm:$0xff] %vm31, %v221
    %287 = vst.msk [vmem:[%s266 + $0xf1] sm:$0xff] %vm31, %v222
    %288 = vst.msk [vmem:[%s266 + $0xf9] sm:$0xff] %vm31, %v223
    %289 = vst.msk [vmem:[%s266 + $0x109] sm:$0xff] %vm31, %v224
    %290 = vst.msk [vmem:[%s266 + $0x111] sm:$0xff] %vm31, %v225
    %291 = vst.msk [vmem:[%s266 + $0x121] sm:$0xff] %vm31, %v226
    %292 = vst.msk [vmem:[%s266 + $0x129] sm:$0xff] %vm31, %v227
    %293 = vst.msk [vmem:[%s266 + $0x139] sm:$0xff] %vm31, %v228
    %294 = vst.msk [vmem:[%s266 + $0x141] sm:$0xff] %vm31, %v229
    %295 = vst.msk [vmem:[%s266 + $0x151] sm:$0xff] %vm31, %v230
    %296 = vst.msk [vmem:[%s266 + $0x159] sm:$0xff] %vm31, %v231
    %297 = vst.msk [vmem:[%s266 + $0x169] sm:$0xff] %vm31, %v232
    %298 = vst.msk [vmem:[%s266 + $0x171] sm:$0xff] %vm31, %v233
    %299 = vst.msk [vmem:[%s266 + $0x1b1] sm:$0xff] %vm31, %v234
    %300 = vst.msk [vmem:[%s266 + $0x1b9] sm:$0xff] %vm31, %v235
    %301 = vst.msk [vmem:[%s266 + $0x1c9] sm:$0xff] %vm31, %v236
    %302 = vst.msk [vmem:[%s266 + $0x1d1] sm:$0xff] %vm31, %v237
    %303 = vst.msk [vmem:[%s266 + $0x1e1] sm:$0xff] %vm31, %v238
    %304 = vst.msk [vmem:[%s266 + $0x1e9] sm:$0xff] %vm31, %v239
    %305 = vst.msk [vmem:[%s266 + $0x1f9] sm:$0xff] %vm31, %v240
    %306 = vst.msk [vmem:[%s266 + $0x201] sm:$0xff] %vm31, %v241
    %307 = vst.msk [vmem:[%s266 + $0x211] sm:$0xff] %vm31, %v242
    %308 = vst.msk [vmem:[%s266 + $0x219] sm:$0xff] %vm31, %v243
    %309 = vst.msk [vmem:[%s266 + $0x229] sm:$0xff] %vm31, %v244
    %310 = vst.msk [vmem:[%s266 + $0x231] sm:$0xff] %vm31, %v245
    %311 = vst.msk [vmem:[%s266 + $0x241] sm:$0xff] %vm31, %v246
    %312 = vst.msk [vmem:[%s266 + $0x249] sm:$0xff] %vm31, %v247
    %313 = vst.msk [vmem:[%s266 + $0x259] sm:$0xff] %vm31, %v248
    %314 = vst.msk [vmem:[%s266 + $0x261] sm:$0xff] %vm31, %v249
    %315 = vst.msk [vmem:[%s266 + $0x271] sm:$0xff] %vm31, %v250
    %316 = vst.msk [vmem:[%s266 + $0x279] sm:$0xff] %vm31, %v251
    %317 = vst.msk [vmem:[%s266 + $0x289] sm:$0xff] %vm31, %v252
    %318 = vst.msk [vmem:[%s266 + $0x291] sm:$0xff] %vm31, %v253
    %319 = vst.msk [vmem:[%s266 + $0x2a1] sm:$0xff] %vm31, %v254
    %320 = vst.msk [vmem:[%s266 + $0x2a9] sm:$0xff] %vm31, %v255
    %321 = vst.msk [vmem:[%s266 + $0x2b9] sm:$0xff] %vm31, %v256
    %322 = vst.msk [vmem:[%s266 + $0x2c1] sm:$0xff] %vm31, %v257
    %323 = vst.msk [vmem:[%s266 + $0x2d1] sm:$0xff] %vm31, %v258
    %324 = vst.msk [vmem:[%s266 + $0x2d9] sm:$0xff] %vm31, %v259
    %325 = vst.msk [vmem:[%s266 + $0x2e9] sm:$0xff] %vm31, %v260
    %326 = vst.msk [vmem:[%s266 + $0x2f1] sm:$0xff] %vm31, %v261
    %327 = vst.msk [vmem:[%s266 + $0x301] sm:$0xff] %vm31, %v262
    %328 = vst.msk [vmem:[%s266 + $0x309] sm:$0xff] %vm31, %v263
    %329 = vst.msk [vmem:[%s266 + $0x319] sm:$0xff] %vm31, %v264
    %330 = vst.msk [vmem:[%s266 + $0x321] sm:$0xff] %vm31, %v265
    %v331 = vld [vmem:[#allocation2] ss:$2 sm:$0xff]
    %s332 = scalar_lea.vmem [#allocation2], 48
    %v333 = vld [vmem:[%s332] ss:$2 sm:$0xff]
    %s334 = scalar_lea.vmem [#allocation2], 96
    %v335 = vld [vmem:[%s334] ss:$2 sm:$0xff]
    %s336 = scalar_lea.vmem [#allocation2], 144
    %v337 = vld [vmem:[%s336] ss:$2 sm:$0xff]
    %s338 = scalar_lea.vmem [#allocation2], 192
    %v339 = vld [vmem:[%s338] ss:$2 sm:$0xff]
    %s340 = scalar_lea.vmem [#allocation2], 240
    %v341 = vld [vmem:[%s340] ss:$2 sm:$0xff]
    %s342 = scalar_lea.vmem [#allocation2], 288
    %v343 = vld [vmem:[%s342] ss:$2 sm:$0xff]
    %s344 = scalar_lea.vmem [#allocation2], 336
    %v345 = vld [vmem:[%s344] ss:$2 sm:$0xff]
    %s346 = scalar_lea.vmem [#allocation2], 432
    %v347 = vld [vmem:[%s346] ss:$2 sm:$0xff]
    %s348 = scalar_lea.vmem [#allocation2], 480
    %v349 = vld [vmem:[%s348] ss:$2 sm:$0xff]
    %s350 = scalar_lea.vmem [#allocation2], 528
    %v351 = vld [vmem:[%s350] ss:$2 sm:$0xff]
    %s352 = scalar_lea.vmem [#allocation2], 576
    %v353 = vld [vmem:[%s352] ss:$2 sm:$0xff]
    %s354 = scalar_lea.vmem [#allocation2], 624
    %v355 = vld [vmem:[%s354] ss:$2 sm:$0xff]
    %s356 = scalar_lea.vmem [#allocation2], 672
    %v357 = vld [vmem:[%s356] ss:$2 sm:$0xff]
    %s358 = scalar_lea.vmem [#allocation2], 720
    %v359 = vld [vmem:[%s358] ss:$2 sm:$0xff]
    %s360 = scalar_lea.vmem [#allocation2], 768
    %v361 = vld [vmem:[%s360] ss:$2 sm:$0xff]
    %v362 = vpack.c.bf16 %v331, %v331
    %v363 = vpack.c.bf16 %v333, %v333
    %v364 = vpack.c.bf16 %v335, %v335
    %v365 = vpack.c.bf16 %v337, %v337
    %v366 = vpack.c.bf16 %v339, %v339
    %v367 = vpack.c.bf16 %v341, %v341
    %v368 = vpack.c.bf16 %v343, %v343
    %v369 = vpack.c.bf16 %v345, %v345
    %v370 = vpack.c.bf16 %v347, %v347
    %v371 = vpack.c.bf16 %v349, %v349
    %v372 = vpack.c.bf16 %v351, %v351
    %v373 = vpack.c.bf16 %v353, %v353
    %v374 = vpack.c.bf16 %v355, %v355
    %v375 = vpack.c.bf16 %v357, %v357
    %v376 = vpack.c.bf16 %v359, %v359
    %v377 = vpack.c.bf16 %v361, %v361
    %s378 = scalar_lea.vmem [#allocation2], 1
    %v379 = vld [vmem:[%s378] ss:$2 sm:$0xff]
    %s380 = scalar_lea.vmem [#allocation2], 49
    %v381 = vld [vmem:[%s380] ss:$2 sm:$0xff]
    %s382 = scalar_lea.vmem [#allocation2], 97
    %v383 = vld [vmem:[%s382] ss:$2 sm:$0xff]
    %s384 = scalar_lea.vmem [#allocation2], 145
    %v385 = vld [vmem:[%s384] ss:$2 sm:$0xff]
    %s386 = scalar_lea.vmem [#allocation2], 193
    %v387 = vld [vmem:[%s386] ss:$2 sm:$0xff]
    %s388 = scalar_lea.vmem [#allocation2], 241
    %v389 = vld [vmem:[%s388] ss:$2 sm:$0xff]
    %s390 = scalar_lea.vmem [#allocation2], 289
    %v391 = vld [vmem:[%s390] ss:$2 sm:$0xff]
    %s392 = scalar_lea.vmem [#allocation2], 337
    %v393 = vld [vmem:[%s392] ss:$2 sm:$0xff]
    %s394 = scalar_lea.vmem [#allocation2], 433
    %v395 = vld [vmem:[%s394] ss:$2 sm:$0xff]
    %s396 = scalar_lea.vmem [#allocation2], 481
    %v397 = vld [vmem:[%s396] ss:$2 sm:$0xff]
    %s398 = scalar_lea.vmem [#allocation2], 529
    %v399 = vld [vmem:[%s398] ss:$2 sm:$0xff]
    %s400 = scalar_lea.vmem [#allocation2], 577
    %v401 = vld [vmem:[%s400] ss:$2 sm:$0xff]
    %s402 = scalar_lea.vmem [#allocation2], 625
    %v403 = vld [vmem:[%s402] ss:$2 sm:$0xff]
    %s404 = scalar_lea.vmem [#allocation2], 673
    %v405 = vld [vmem:[%s404] ss:$2 sm:$0xff]
    %s406 = scalar_lea.vmem [#allocation2], 721
    %v407 = vld [vmem:[%s406] ss:$2 sm:$0xff]
    %s408 = scalar_lea.vmem [#allocation2], 769
    %v409 = vld [vmem:[%s408] ss:$2 sm:$0xff]
    %v410 = vpack.c.bf16 %v379, %v379
    %v411 = vpack.c.bf16 %v381, %v381
    %v412 = vpack.c.bf16 %v383, %v383
    %v413 = vpack.c.bf16 %v385, %v385
    %v414 = vpack.c.bf16 %v387, %v387
    %v415 = vpack.c.bf16 %v389, %v389
    %v416 = vpack.c.bf16 %v391, %v391
    %v417 = vpack.c.bf16 %v393, %v393
    %v418 = vpack.c.bf16 %v395, %v395
    %v419 = vpack.c.bf16 %v397, %v397
    %v420 = vpack.c.bf16 %v399, %v399
    %v421 = vpack.c.bf16 %v401, %v401
    %v422 = vpack.c.bf16 %v403, %v403
    %v423 = vpack.c.bf16 %v405, %v405
    %v424 = vpack.c.bf16 %v407, %v407
    %v425 = vpack.c.bf16 %v409, %v409
    %s426 = scalar_lea.vmem [#allocation2], 2
    %v427 = vld [vmem:[%s426] ss:$2 sm:$0xff]
    %s428 = scalar_lea.vmem [#allocation2], 50
    %v429 = vld [vmem:[%s428] ss:$2 sm:$0xff]
    %s430 = scalar_lea.vmem [#allocation2], 98
    %v431 = vld [vmem:[%s430] ss:$2 sm:$0xff]
    %s432 = scalar_lea.vmem [#allocation2], 146
    %v433 = vld [vmem:[%s432] ss:$2 sm:$0xff]
    %s434 = scalar_lea.vmem [#allocation2], 194
    %v435 = vld [vmem:[%s434] ss:$2 sm:$0xff]
    %s436 = scalar_lea.vmem [#allocation2], 242
    %v437 = vld [vmem:[%s436] ss:$2 sm:$0xff]
    %s438 = scalar_lea.vmem [#allocation2], 290
    %v439 = vld [vmem:[%s438] ss:$2 sm:$0xff]
    %s440 = scalar_lea.vmem [#allocation2], 338
    %v441 = vld [vmem:[%s440] ss:$2 sm:$0xff]
    %s442 = scalar_lea.vmem [#allocation2], 434
    %v443 = vld [vmem:[%s442] ss:$2 sm:$0xff]
    %s444 = scalar_lea.vmem [#allocation2], 482
    %v445 = vld [vmem:[%s444] ss:$2 sm:$0xff]
    %s446 = scalar_lea.vmem [#allocation2], 530
    %v447 = vld [vmem:[%s446] ss:$2 sm:$0xff]
    %s448 = scalar_lea.vmem [#allocation2], 578
    %v449 = vld [vmem:[%s448] ss:$2 sm:$0xff]
    %s450 = scalar_lea.vmem [#allocation2], 626
    %v451 = vld [vmem:[%s450] ss:$2 sm:$0xff]
    %s452 = scalar_lea.vmem [#allocation2], 674
    %v453 = vld [vmem:[%s452] ss:$2 sm:$0xff]
    %s454 = scalar_lea.vmem [#allocation2], 722
    %v455 = vld [vmem:[%s454] ss:$2 sm:$0xff]
    %s456 = scalar_lea.vmem [#allocation2], 770
    %v457 = vld [vmem:[%s456] ss:$2 sm:$0xff]
    %v458 = vpack.c.bf16 %v427, %v427
    %v459 = vpack.c.bf16 %v429, %v429
    %v460 = vpack.c.bf16 %v431, %v431
    %v461 = vpack.c.bf16 %v433, %v433
    %v462 = vpack.c.bf16 %v435, %v435
    %v463 = vpack.c.bf16 %v437, %v437
    %v464 = vpack.c.bf16 %v439, %v439
    %v465 = vpack.c.bf16 %v441, %v441
    %v466 = vpack.c.bf16 %v443, %v443
    %v467 = vpack.c.bf16 %v445, %v445
    %v468 = vpack.c.bf16 %v447, %v447
    %v469 = vpack.c.bf16 %v449, %v449
    %v470 = vpack.c.bf16 %v451, %v451
    %v471 = vpack.c.bf16 %v453, %v453
    %v472 = vpack.c.bf16 %v455, %v455
    %v473 = vpack.c.bf16 %v457, %v457
    %v474 = vld [vmem:[%s266] ss:$2 sm:$0xff]
    %s475 = scalar_lea.vmem %s266, 48 [#allocation2]
    %v476 = vld [vmem:[%s475] ss:$2 sm:$0xff]
    %s477 = scalar_lea.vmem %s266, 96 [#allocation2]
    %v478 = vld [vmem:[%s477] ss:$2 sm:$0xff]
    %s479 = scalar_lea.vmem %s266, 144 [#allocation2]
    %v480 = vld [vmem:[%s479] ss:$2 sm:$0xff]
    %s481 = scalar_lea.vmem %s266, 192 [#allocation2]
    %v482 = vld [vmem:[%s481] ss:$2 sm:$0xff]
    %s483 = scalar_lea.vmem %s266, 240 [#allocation2]
    %v484 = vld [vmem:[%s483] ss:$2 sm:$0xff]
    %s485 = scalar_lea.vmem %s266, 288 [#allocation2]
    %v486 = vld [vmem:[%s485] ss:$2 sm:$0xff]
    %s487 = scalar_lea.vmem %s266, 336 [#allocation2]
    %v488 = vld [vmem:[%s487] ss:$2 sm:$0xff]
    %s489 = scalar_lea.vmem %s266, 432 [#allocation2]
    %v490 = vld [vmem:[%s489] ss:$2 sm:$0xff]
    %s491 = scalar_lea.vmem %s266, 480 [#allocation2]
    %v492 = vld [vmem:[%s491] ss:$2 sm:$0xff]
    %s493 = scalar_lea.vmem %s266, 528 [#allocation2]
    %v494 = vld [vmem:[%s493] ss:$2 sm:$0xff]
    %s495 = scalar_lea.vmem %s266, 576 [#allocation2]
    %v496 = vld [vmem:[%s495] ss:$2 sm:$0xff]
    %s497 = scalar_lea.vmem %s266, 624 [#allocation2]
    %v498 = vld [vmem:[%s497] ss:$2 sm:$0xff]
    %s499 = scalar_lea.vmem %s266, 672 [#allocation2]
    %v500 = vld [vmem:[%s499] ss:$2 sm:$0xff]
    %s501 = scalar_lea.vmem %s266, 720 [#allocation2]
    %v502 = vld [vmem:[%s501] ss:$2 sm:$0xff]
    %s503 = scalar_lea.vmem %s266, 768 [#allocation2]
    %v504 = vld [vmem:[%s503] ss:$2 sm:$0xff]
    %v505 = vpack.c.bf16 %v474, %v474
    %v506 = vpack.c.bf16 %v476, %v476
    %v507 = vpack.c.bf16 %v478, %v478
    %v508 = vpack.c.bf16 %v480, %v480
    %v509 = vpack.c.bf16 %v482, %v482
    %v510 = vpack.c.bf16 %v484, %v484
    %v511 = vpack.c.bf16 %v486, %v486
    %v512 = vpack.c.bf16 %v488, %v488
    %v513 = vpack.c.bf16 %v490, %v490
    %v514 = vpack.c.bf16 %v492, %v492
    %v515 = vpack.c.bf16 %v494, %v494
    %v516 = vpack.c.bf16 %v496, %v496
    %v517 = vpack.c.bf16 %v498, %v498
    %v518 = vpack.c.bf16 %v500, %v500
    %v519 = vpack.c.bf16 %v502, %v502
    %v520 = vpack.c.bf16 %v504, %v504
    %s521 = scalar_lea.vmem %s266, 1 [#allocation2]
    %v522 = vld [vmem:[%s521] ss:$2 sm:$0xff]
    %s523 = scalar_lea.vmem %s266, 49 [#allocation2]
    %v524 = vld [vmem:[%s523] ss:$2 sm:$0xff]
    %s525 = scalar_lea.vmem %s266, 97 [#allocation2]
    %v526 = vld [vmem:[%s525] ss:$2 sm:$0xff]
    %s527 = scalar_lea.vmem %s266, 145 [#allocation2]
    %v528 = vld [vmem:[%s527] ss:$2 sm:$0xff]
    %s529 = scalar_lea.vmem %s266, 193 [#allocation2]
    %v530 = vld [vmem:[%s529] ss:$2 sm:$0xff]
    %s531 = scalar_lea.vmem %s266, 241 [#allocation2]
    %v532 = vld [vmem:[%s531] ss:$2 sm:$0xff]
    %s533 = scalar_lea.vmem %s266, 289 [#allocation2]
    %v534 = vld [vmem:[%s533] ss:$2 sm:$0xff]
    %s535 = scalar_lea.vmem %s266, 337 [#allocation2]
    %v536 = vld [vmem:[%s535] ss:$2 sm:$0xff]
    %s537 = scalar_lea.vmem %s266, 433 [#allocation2]
    %v538 = vld [vmem:[%s537] ss:$2 sm:$0xff]
    %s539 = scalar_lea.vmem %s266, 481 [#allocation2]
    %v540 = vld [vmem:[%s539] ss:$2 sm:$0xff]
    %s541 = scalar_lea.vmem %s266, 529 [#allocation2]
    %v542 = vld [vmem:[%s541] ss:$2 sm:$0xff]
    %s543 = scalar_lea.vmem %s266, 577 [#allocation2]
    %v544 = vld [vmem:[%s543] ss:$2 sm:$0xff]
    %s545 = scalar_lea.vmem %s266, 625 [#allocation2]
    %v546 = vld [vmem:[%s545] ss:$2 sm:$0xff]
    %s547 = scalar_lea.vmem %s266, 673 [#allocation2]
    %v548 = vld [vmem:[%s547] ss:$2 sm:$0xff]
    %s549 = scalar_lea.vmem %s266, 721 [#allocation2]
    %v550 = vld [vmem:[%s549] ss:$2 sm:$0xff]
    %s551 = scalar_lea.vmem %s266, 769 [#allocation2]
    %v552 = vld [vmem:[%s551] ss:$2 sm:$0xff]
    %v553 = vpack.c.bf16 %v522, %v522
    %v554 = vpack.c.bf16 %v524, %v524
    %v555 = vpack.c.bf16 %v526, %v526
    %v556 = vpack.c.bf16 %v528, %v528
    %v557 = vpack.c.bf16 %v530, %v530
    %v558 = vpack.c.bf16 %v532, %v532
    %v559 = vpack.c.bf16 %v534, %v534
    %v560 = vpack.c.bf16 %v536, %v536
    %v561 = vpack.c.bf16 %v538, %v538
    %v562 = vpack.c.bf16 %v540, %v540
    %v563 = vpack.c.bf16 %v542, %v542
    %v564 = vpack.c.bf16 %v544, %v544
    %v565 = vpack.c.bf16 %v546, %v546
    %v566 = vpack.c.bf16 %v548, %v548
    %v567 = vpack.c.bf16 %v550, %v550
    %v568 = vpack.c.bf16 %v552, %v552
    %s569 = scalar_lea.vmem %s266, 2 [#allocation2]
    %v570 = vld [vmem:[%s569] ss:$2 sm:$0xff]
    %s571 = scalar_lea.vmem %s266, 50 [#allocation2]
    %v572 = vld [vmem:[%s571] ss:$2 sm:$0xff]
    %s573 = scalar_lea.vmem %s266, 98 [#allocation2]
    %v574 = vld [vmem:[%s573] ss:$2 sm:$0xff]
    %s575 = scalar_lea.vmem %s266, 146 [#allocation2]
    %v576 = vld [vmem:[%s575] ss:$2 sm:$0xff]
    %s577 = scalar_lea.vmem %s266, 194 [#allocation2]
    %v578 = vld [vmem:[%s577] ss:$2 sm:$0xff]
    %s579 = scalar_lea.vmem %s266, 242 [#allocation2]
    %v580 = vld [vmem:[%s579] ss:$2 sm:$0xff]
    %s581 = scalar_lea.vmem %s266, 290 [#allocation2]
    %v582 = vld [vmem:[%s581] ss:$2 sm:$0xff]
    %s583 = scalar_lea.vmem %s266, 338 [#allocation2]
    %v584 = vld [vmem:[%s583] ss:$2 sm:$0xff]
    %s585 = scalar_lea.vmem %s266, 434 [#allocation2]
    %v586 = vld [vmem:[%s585] ss:$2 sm:$0xff]
    %s587 = scalar_lea.vmem %s266, 482 [#allocation2]
    %v588 = vld [vmem:[%s587] ss:$2 sm:$0xff]
    %s589 = scalar_lea.vmem %s266, 530 [#allocation2]
    %v590 = vld [vmem:[%s589] ss:$2 sm:$0xff]
    %s591 = scalar_lea.vmem %s266, 578 [#allocation2]
    %v592 = vld [vmem:[%s591] ss:$2 sm:$0xff]
    %s593 = scalar_lea.vmem %s266, 626 [#allocation2]
    %v594 = vld [vmem:[%s593] ss:$2 sm:$0xff]
    %s595 = scalar_lea.vmem %s266, 674 [#allocation2]
    %v596 = vld [vmem:[%s595] ss:$2 sm:$0xff]
    %s597 = scalar_lea.vmem %s266, 722 [#allocation2]
    %v598 = vld [vmem:[%s597] ss:$2 sm:$0xff]
    %s599 = scalar_lea.vmem %s266, 770 [#allocation2]
    %v600 = vld [vmem:[%s599] ss:$2 sm:$0xff]
    %v601 = vpack.c.bf16 %v570, %v570
    %v602 = vpack.c.bf16 %v572, %v572
    %v603 = vpack.c.bf16 %v574, %v574
    %v604 = vpack.c.bf16 %v576, %v576
    %v605 = vpack.c.bf16 %v578, %v578
    %v606 = vpack.c.bf16 %v580, %v580
    %v607 = vpack.c.bf16 %v582, %v582
    %v608 = vpack.c.bf16 %v584, %v584
    %v609 = vpack.c.bf16 %v586, %v586
    %v610 = vpack.c.bf16 %v588, %v588
    %v611 = vpack.c.bf16 %v590, %v590
    %v612 = vpack.c.bf16 %v592, %v592
    %v613 = vpack.c.bf16 %v594, %v594
    %v614 = vpack.c.bf16 %v596, %v596
    %v615 = vpack.c.bf16 %v598, %v598
    %v616 = vpack.c.bf16 %v600, %v600
    %s617 = scalar_lea.vmem [#allocation2], 48
    %v618 = vld [vmem:[%s617] ss:$2 sm:$0xff]
    %s619 = scalar_lea.vmem %s617, 48 [#allocation2]
    %v620 = vld [vmem:[%s619] ss:$2 sm:$0xff]
    %s621 = scalar_lea.vmem %s617, 96 [#allocation2]
    %v622 = vld [vmem:[%s621] ss:$2 sm:$0xff]
    %s623 = scalar_lea.vmem %s617, 144 [#allocation2]
    %v624 = vld [vmem:[%s623] ss:$2 sm:$0xff]
    %s625 = scalar_lea.vmem %s617, 192 [#allocation2]
    %v626 = vld [vmem:[%s625] ss:$2 sm:$0xff]
    %s627 = scalar_lea.vmem %s617, 240 [#allocation2]
    %v628 = vld [vmem:[%s627] ss:$2 sm:$0xff]
    %s629 = scalar_lea.vmem %s617, 288 [#allocation2]
    %v630 = vld [vmem:[%s629] ss:$2 sm:$0xff]
    %s631 = scalar_lea.vmem %s617, 336 [#allocation2]
    %v632 = vld [vmem:[%s631] ss:$2 sm:$0xff]
    %s633 = scalar_lea.vmem %s617, 432 [#allocation2]
    %v634 = vld [vmem:[%s633] ss:$2 sm:$0xff]
    %s635 = scalar_lea.vmem %s617, 480 [#allocation2]
    %v636 = vld [vmem:[%s635] ss:$2 sm:$0xff]
    %s637 = scalar_lea.vmem %s617, 528 [#allocation2]
    %v638 = vld [vmem:[%s637] ss:$2 sm:$0xff]
    %s639 = scalar_lea.vmem %s617, 576 [#allocation2]
    %v640 = vld [vmem:[%s639] ss:$2 sm:$0xff]
    %s641 = scalar_lea.vmem %s617, 624 [#allocation2]
    %v642 = vld [vmem:[%s641] ss:$2 sm:$0xff]
    %s643 = scalar_lea.vmem %s617, 672 [#allocation2]
    %v644 = vld [vmem:[%s643] ss:$2 sm:$0xff]
    %s645 = scalar_lea.vmem %s617, 720 [#allocation2]
    %v646 = vld [vmem:[%s645] ss:$2 sm:$0xff]
    %s647 = scalar_lea.vmem %s617, 768 [#allocation2]
    %v648 = vld [vmem:[%s647] ss:$2 sm:$0xff]
    %v649 = vpack.c.bf16 %v618, %v618
    %v650 = vpack.c.bf16 %v620, %v620
    %v651 = vpack.c.bf16 %v622, %v622
    %v652 = vpack.c.bf16 %v624, %v624
    %v653 = vpack.c.bf16 %v626, %v626
    %v654 = vpack.c.bf16 %v628, %v628
    %v655 = vpack.c.bf16 %v630, %v630
    %v656 = vpack.c.bf16 %v632, %v632
    %v657 = vpack.c.bf16 %v634, %v634
    %v658 = vpack.c.bf16 %v636, %v636
    %v659 = vpack.c.bf16 %v638, %v638
    %v660 = vpack.c.bf16 %v640, %v640
    %v661 = vpack.c.bf16 %v642, %v642
    %v662 = vpack.c.bf16 %v644, %v644
    %v663 = vpack.c.bf16 %v646, %v646
    %v664 = vpack.c.bf16 %v648, %v648
    %s665 = scalar_lea.vmem %s617, 1 [#allocation2]
    %v666 = vld [vmem:[%s665] ss:$2 sm:$0xff]
    %s667 = scalar_lea.vmem %s617, 49 [#allocation2]
    %v668 = vld [vmem:[%s667] ss:$2 sm:$0xff]
    %s669 = scalar_lea.vmem %s617, 97 [#allocation2]
    %v670 = vld [vmem:[%s669] ss:$2 sm:$0xff]
    %s671 = scalar_lea.vmem %s617, 145 [#allocation2]
    %v672 = vld [vmem:[%s671] ss:$2 sm:$0xff]
    %s673 = scalar_lea.vmem %s617, 193 [#allocation2]
    %v674 = vld [vmem:[%s673] ss:$2 sm:$0xff]
    %s675 = scalar_lea.vmem %s617, 241 [#allocation2]
    %v676 = vld [vmem:[%s675] ss:$2 sm:$0xff]
    %s677 = scalar_lea.vmem %s617, 289 [#allocation2]
    %v678 = vld [vmem:[%s677] ss:$2 sm:$0xff]
    %s679 = scalar_lea.vmem %s617, 337 [#allocation2]
    %v680 = vld [vmem:[%s679] ss:$2 sm:$0xff]
    %s681 = scalar_lea.vmem %s617, 433 [#allocation2]
    %v682 = vld [vmem:[%s681] ss:$2 sm:$0xff]
    %s683 = scalar_lea.vmem %s617, 481 [#allocation2]
    %v684 = vld [vmem:[%s683] ss:$2 sm:$0xff]
    %s685 = scalar_lea.vmem %s617, 529 [#allocation2]
    %v686 = vld [vmem:[%s685] ss:$2 sm:$0xff]
    %s687 = scalar_lea.vmem %s617, 577 [#allocation2]
    %v688 = vld [vmem:[%s687] ss:$2 sm:$0xff]
    %s689 = scalar_lea.vmem %s617, 625 [#allocation2]
    %v690 = vld [vmem:[%s689] ss:$2 sm:$0xff]
    %s691 = scalar_lea.vmem %s617, 673 [#allocation2]
    %v692 = vld [vmem:[%s691] ss:$2 sm:$0xff]
    %s693 = scalar_lea.vmem %s617, 721 [#allocation2]
    %v694 = vld [vmem:[%s693] ss:$2 sm:$0xff]
    %s695 = scalar_lea.vmem %s617, 769 [#allocation2]
    %v696 = vld [vmem:[%s695] ss:$2 sm:$0xff]
    %v697 = vpack.c.bf16 %v666, %v666
    %v698 = vpack.c.bf16 %v668, %v668
    %v699 = vpack.c.bf16 %v670, %v670
    %v700 = vpack.c.bf16 %v672, %v672
    %v701 = vpack.c.bf16 %v674, %v674
    %v702 = vpack.c.bf16 %v676, %v676
    %v703 = vpack.c.bf16 %v678, %v678
    %v704 = vpack.c.bf16 %v680, %v680
    %v705 = vpack.c.bf16 %v682, %v682
    %v706 = vpack.c.bf16 %v684, %v684
    %v707 = vpack.c.bf16 %v686, %v686
    %v708 = vpack.c.bf16 %v688, %v688
    %v709 = vpack.c.bf16 %v690, %v690
    %v710 = vpack.c.bf16 %v692, %v692
    %v711 = vpack.c.bf16 %v694, %v694
    %v712 = vpack.c.bf16 %v696, %v696
    %s713 = scalar_lea.vmem %s617, 2 [#allocation2]
    %v714 = vld [vmem:[%s713] ss:$2 sm:$0xff]
    %s715 = scalar_lea.vmem %s617, 50 [#allocation2]
    %v716 = vld [vmem:[%s715] ss:$2 sm:$0xff]
    %s717 = scalar_lea.vmem %s617, 98 [#allocation2]
    %v718 = vld [vmem:[%s717] ss:$2 sm:$0xff]
    %s719 = scalar_lea.vmem %s617, 146 [#allocation2]
    %v720 = vld [vmem:[%s719] ss:$2 sm:$0xff]
    %s721 = scalar_lea.vmem %s617, 194 [#allocation2]
    %v722 = vld [vmem:[%s721] ss:$2 sm:$0xff]
    %s723 = scalar_lea.vmem %s617, 242 [#allocation2]
    %v724 = vld [vmem:[%s723] ss:$2 sm:$0xff]
    %s725 = scalar_lea.vmem %s617, 290 [#allocation2]
    %v726 = vld [vmem:[%s725] ss:$2 sm:$0xff]
    %s727 = scalar_lea.vmem %s617, 338 [#allocation2]
    %v728 = vld [vmem:[%s727] ss:$2 sm:$0xff]
    %s729 = scalar_lea.vmem %s617, 434 [#allocation2]
    %v730 = vld [vmem:[%s729] ss:$2 sm:$0xff]
    %s731 = scalar_lea.vmem %s617, 482 [#allocation2]
    %v732 = vld [vmem:[%s731] ss:$2 sm:$0xff]
    %s733 = scalar_lea.vmem %s617, 530 [#allocation2]
    %v734 = vld [vmem:[%s733] ss:$2 sm:$0xff]
    %s735 = scalar_lea.vmem %s617, 578 [#allocation2]
    %v736 = vld [vmem:[%s735] ss:$2 sm:$0xff]
    %s737 = scalar_lea.vmem %s617, 626 [#allocation2]
    %v738 = vld [vmem:[%s737] ss:$2 sm:$0xff]
    %s739 = scalar_lea.vmem %s617, 674 [#allocation2]
    %v740 = vld [vmem:[%s739] ss:$2 sm:$0xff]
    %s741 = scalar_lea.vmem %s617, 722 [#allocation2]
    %v742 = vld [vmem:[%s741] ss:$2 sm:$0xff]
    %s743 = scalar_lea.vmem %s617, 770 [#allocation2]
    %v744 = vld [vmem:[%s743] ss:$2 sm:$0xff]
    %v745 = vpack.c.bf16 %v714, %v714
    %v746 = vpack.c.bf16 %v716, %v716
    %v747 = vpack.c.bf16 %v718, %v718
    %v748 = vpack.c.bf16 %v720, %v720
    %v749 = vpack.c.bf16 %v722, %v722
    %v750 = vpack.c.bf16 %v724, %v724
    %v751 = vpack.c.bf16 %v726, %v726
    %v752 = vpack.c.bf16 %v728, %v728
    %v753 = vpack.c.bf16 %v730, %v730
    %v754 = vpack.c.bf16 %v732, %v732
    %v755 = vpack.c.bf16 %v734, %v734
    %v756 = vpack.c.bf16 %v736, %v736
    %v757 = vpack.c.bf16 %v738, %v738
    %v758 = vpack.c.bf16 %v740, %v740
    %v759 = vpack.c.bf16 %v742, %v742
    %v760 = vpack.c.bf16 %v744, %v744
    %v777 = vunpack.c.l.b16 %v362
    %v778 = vunpack.c.l.b16 %v363
    %v779 = vunpack.c.l.b16 %v364
    %v780 = vunpack.c.l.b16 %v365
    %v781 = vunpack.c.l.b16 %v366
    %v782 = vunpack.c.l.b16 %v367
    %v783 = vunpack.c.l.b16 %v368
    %v784 = vunpack.c.l.b16 %v369
    %v785 = vunpack.c.l.b16 %v370
    %v786 = vunpack.c.l.b16 %v371
    %v787 = vunpack.c.l.b16 %v372
    %v788 = vunpack.c.l.b16 %v373
    %v789 = vunpack.c.l.b16 %v374
    %v790 = vunpack.c.l.b16 %v375
    %v791 = vunpack.c.l.b16 %v376
    %v792 = vunpack.c.l.b16 %v377
    %v793 = vpack.c.b16 %v778, %v777
    %v794 = vpack.c.b16 %v780, %v779
    %v795 = vpack.c.b16 %v782, %v781
    %v796 = vpack.c.b16 %v784, %v783
    %v797 = vpack.c.b16 %v786, %v785
    %v798 = vpack.c.b16 %v788, %v787
    %v799 = vpack.c.b16 %v790, %v789
    %v800 = vpack.c.b16 %v792, %v791
    %v817 = vunpack.c.l.b16 %v410
    %v818 = vunpack.c.l.b16 %v411
    %v819 = vunpack.c.l.b16 %v412
    %v820 = vunpack.c.l.b16 %v413
    %v821 = vunpack.c.l.b16 %v414
    %v822 = vunpack.c.l.b16 %v415
    %v823 = vunpack.c.l.b16 %v416
    %v824 = vunpack.c.l.b16 %v417
    %v825 = vunpack.c.l.b16 %v418
    %v826 = vunpack.c.l.b16 %v419
    %v827 = vunpack.c.l.b16 %v420
    %v828 = vunpack.c.l.b16 %v421
    %v829 = vunpack.c.l.b16 %v422
    %v830 = vunpack.c.l.b16 %v423
    %v831 = vunpack.c.l.b16 %v424
    %v832 = vunpack.c.l.b16 %v425
    %v833 = vpack.c.b16 %v818, %v817
    %v834 = vpack.c.b16 %v820, %v819
    %v835 = vpack.c.b16 %v822, %v821
    %v836 = vpack.c.b16 %v824, %v823
    %v837 = vpack.c.b16 %v826, %v825
    %v838 = vpack.c.b16 %v828, %v827
    %v839 = vpack.c.b16 %v830, %v829
    %v840 = vpack.c.b16 %v832, %v831
    %841 = vrot.lane.b32.xlu0 %v833, 3
    %v842 = vpop.permute.xlu0 %841
    %843 = vrot.lane.b32.xlu0 %v834, 3
    %v844 = vpop.permute.xlu0 %843
    %845 = vrot.lane.b32.xlu0 %v835, 3
    %v846 = vpop.permute.xlu0 %845
    %847 = vrot.lane.b32.xlu0 %v836, 3
    %v848 = vpop.permute.xlu0 %847
    %849 = vrot.lane.b32.xlu0 %v837, 3
    %v850 = vpop.permute.xlu0 %849
    %851 = vrot.lane.b32.xlu0 %v838, 3
    %v852 = vpop.permute.xlu0 %851
    %853 = vrot.lane.b32.xlu0 %v839, 3
    %v854 = vpop.permute.xlu0 %853
    %855 = vrot.lane.b32.xlu0 %v840, 3
    %v856 = vpop.permute.xlu0 %855
    %v873 = vunpack.c.l.b16 %v458
    %v874 = vunpack.c.l.b16 %v459
    %v875 = vunpack.c.l.b16 %v460
    %v876 = vunpack.c.l.b16 %v461
    %v877 = vunpack.c.l.b16 %v462
    %v878 = vunpack.c.l.b16 %v463
    %v879 = vunpack.c.l.b16 %v464
    %v880 = vunpack.c.l.b16 %v465
    %v881 = vunpack.c.l.b16 %v466
    %v882 = vunpack.c.l.b16 %v467
    %v883 = vunpack.c.l.b16 %v468
    %v884 = vunpack.c.l.b16 %v469
    %v885 = vunpack.c.l.b16 %v470
    %v886 = vunpack.c.l.b16 %v471
    %v887 = vunpack.c.l.b16 %v472
    %v888 = vunpack.c.l.b16 %v473
    %v889 = vpack.c.b16 %v874, %v873
    %v890 = vpack.c.b16 %v876, %v875
    %v891 = vpack.c.b16 %v878, %v877
    %v892 = vpack.c.b16 %v880, %v879
    %v893 = vpack.c.b16 %v882, %v881
    %v894 = vpack.c.b16 %v884, %v883
    %v895 = vpack.c.b16 %v886, %v885
    %v896 = vpack.c.b16 %v888, %v887
    %897 = vrot.lane.b32.xlu0 %v889, 6
    %v898 = vpop.permute.xlu0 %897
    %899 = vrot.lane.b32.xlu0 %v890, 6
    %v900 = vpop.permute.xlu0 %899
    %901 = vrot.lane.b32.xlu0 %v891, 6
    %v902 = vpop.permute.xlu0 %901
    %903 = vrot.lane.b32.xlu0 %v892, 6
    %v904 = vpop.permute.xlu0 %903
    %905 = vrot.lane.b32.xlu0 %v893, 6
    %v906 = vpop.permute.xlu0 %905
    %907 = vrot.lane.b32.xlu0 %v894, 6
    %v908 = vpop.permute.xlu0 %907
    %909 = vrot.lane.b32.xlu0 %v895, 6
    %v910 = vpop.permute.xlu0 %909
    %911 = vrot.lane.b32.xlu0 %v896, 6
    %v912 = vpop.permute.xlu0 %911
    %v929 = vunpack.c.l.b16 %v505
    %v930 = vunpack.c.l.b16 %v506
    %v931 = vunpack.c.l.b16 %v507
    %v932 = vunpack.c.l.b16 %v508
    %v933 = vunpack.c.l.b16 %v509
    %v934 = vunpack.c.l.b16 %v510
    %v935 = vunpack.c.l.b16 %v511
    %v936 = vunpack.c.l.b16 %v512
    %v937 = vunpack.c.l.b16 %v513
    %v938 = vunpack.c.l.b16 %v514
    %v939 = vunpack.c.l.b16 %v515
    %v940 = vunpack.c.l.b16 %v516
    %v941 = vunpack.c.l.b16 %v517
    %v942 = vunpack.c.l.b16 %v518
    %v943 = vunpack.c.l.b16 %v519
    %v944 = vunpack.c.l.b16 %v520
    %v945 = vpack.c.b16 %v930, %v929
    %v946 = vpack.c.b16 %v932, %v931
    %v947 = vpack.c.b16 %v934, %v933
    %v948 = vpack.c.b16 %v936, %v935
    %v949 = vpack.c.b16 %v938, %v937
    %v950 = vpack.c.b16 %v940, %v939
    %v951 = vpack.c.b16 %v942, %v941
    %v952 = vpack.c.b16 %v944, %v943
    %953 = vrot.lane.b32.xlu0 %v945, 9
    %v954 = vpop.permute.xlu0 %953
    %955 = vrot.lane.b32.xlu0 %v946, 9
    %v956 = vpop.permute.xlu0 %955
    %957 = vrot.lane.b32.xlu0 %v947, 9
    %v958 = vpop.permute.xlu0 %957
    %959 = vrot.lane.b32.xlu0 %v948, 9
    %v960 = vpop.permute.xlu0 %959
    %961 = vrot.lane.b32.xlu0 %v949, 9
    %v962 = vpop.permute.xlu0 %961
    %963 = vrot.lane.b32.xlu0 %v950, 9
    %v964 = vpop.permute.xlu0 %963
    %965 = vrot.lane.b32.xlu0 %v951, 9
    %v966 = vpop.permute.xlu0 %965
    %967 = vrot.lane.b32.xlu0 %v952, 9
    %v968 = vpop.permute.xlu0 %967
    %v985 = vunpack.c.l.b16 %v553
    %v986 = vunpack.c.l.b16 %v554
    %v987 = vunpack.c.l.b16 %v555
    %v988 = vunpack.c.l.b16 %v556
    %v989 = vunpack.c.l.b16 %v557
    %v990 = vunpack.c.l.b16 %v558
    %v991 = vunpack.c.l.b16 %v559
    %v992 = vunpack.c.l.b16 %v560
    %v993 = vunpack.c.l.b16 %v561
    %v994 = vunpack.c.l.b16 %v562
    %v995 = vunpack.c.l.b16 %v563
    %v996 = vunpack.c.l.b16 %v564
    %v997 = vunpack.c.l.b16 %v565
    %v998 = vunpack.c.l.b16 %v566
    %v999 = vunpack.c.l.b16 %v567
    %v1000 = vunpack.c.l.b16 %v568
    %v1001 = vpack.c.b16 %v986, %v985
    %v1002 = vpack.c.b16 %v988, %v987
    %v1003 = vpack.c.b16 %v990, %v989
    %v1004 = vpack.c.b16 %v992, %v991
    %v1005 = vpack.c.b16 %v994, %v993
    %v1006 = vpack.c.b16 %v996, %v995
    %v1007 = vpack.c.b16 %v998, %v997
    %v1008 = vpack.c.b16 %v1000, %v999
    %1009 = vrot.lane.b32.xlu0 %v1001, 12
    %v1010 = vpop.permute.xlu0 %1009
    %1011 = vrot.lane.b32.xlu0 %v1002, 12
    %v1012 = vpop.permute.xlu0 %1011
    %1013 = vrot.lane.b32.xlu0 %v1003, 12
    %v1014 = vpop.permute.xlu0 %1013
    %1015 = vrot.lane.b32.xlu0 %v1004, 12
    %v1016 = vpop.permute.xlu0 %1015
    %1017 = vrot.lane.b32.xlu0 %v1005, 12
    %v1018 = vpop.permute.xlu0 %1017
    %1019 = vrot.lane.b32.xlu0 %v1006, 12
    %v1020 = vpop.permute.xlu0 %1019
    %1021 = vrot.lane.b32.xlu0 %v1007, 12
    %v1022 = vpop.permute.xlu0 %1021
    %1023 = vrot.lane.b32.xlu0 %v1008, 12
    %v1024 = vpop.permute.xlu0 %1023
    %v1041 = vunpack.c.l.b16 %v601
    %v1042 = vunpack.c.l.b16 %v602
    %v1043 = vunpack.c.l.b16 %v603
    %v1044 = vunpack.c.l.b16 %v604
    %v1045 = vunpack.c.l.b16 %v605
    %v1046 = vunpack.c.l.b16 %v606
    %v1047 = vunpack.c.l.b16 %v607
    %v1048 = vunpack.c.l.b16 %v608
    %v1049 = vunpack.c.l.b16 %v609
    %v1050 = vunpack.c.l.b16 %v610
    %v1051 = vunpack.c.l.b16 %v611
    %v1052 = vunpack.c.l.b16 %v612
    %v1053 = vunpack.c.l.b16 %v613
    %v1054 = vunpack.c.l.b16 %v614
    %v1055 = vunpack.c.l.b16 %v615
    %v1056 = vunpack.c.l.b16 %v616
    %v1057 = vpack.c.b16 %v1042, %v1041
    %v1058 = vpack.c.b16 %v1044, %v1043
    %v1059 = vpack.c.b16 %v1046, %v1045
    %v1060 = vpack.c.b16 %v1048, %v1047
    %v1061 = vpack.c.b16 %v1050, %v1049
    %v1062 = vpack.c.b16 %v1052, %v1051
    %v1063 = vpack.c.b16 %v1054, %v1053
    %v1064 = vpack.c.b16 %v1056, %v1055
    %1065 = vrot.lane.b32.xlu0 %v1057, 15
    %v1066 = vpop.permute.xlu0 %1065
    %1067 = vrot.lane.b32.xlu0 %v1058, 15
    %v1068 = vpop.permute.xlu0 %1067
    %1069 = vrot.lane.b32.xlu0 %v1059, 15
    %v1070 = vpop.permute.xlu0 %1069
    %1071 = vrot.lane.b32.xlu0 %v1060, 15
    %v1072 = vpop.permute.xlu0 %1071
    %1073 = vrot.lane.b32.xlu0 %v1061, 15
    %v1074 = vpop.permute.xlu0 %1073
    %1075 = vrot.lane.b32.xlu0 %v1062, 15
    %v1076 = vpop.permute.xlu0 %1075
    %1077 = vrot.lane.b32.xlu0 %v1063, 15
    %v1078 = vpop.permute.xlu0 %1077
    %1079 = vrot.lane.b32.xlu0 %v1064, 15
    %v1080 = vpop.permute.xlu0 %1079
    %v1097 = vunpack.c.l.b16 %v649
    %v1098 = vunpack.c.l.b16 %v650
    %v1099 = vunpack.c.l.b16 %v651
    %v1100 = vunpack.c.l.b16 %v652
    %v1101 = vunpack.c.l.b16 %v653
    %v1102 = vunpack.c.l.b16 %v654
    %v1103 = vunpack.c.l.b16 %v655
    %v1104 = vunpack.c.l.b16 %v656
    %v1105 = vunpack.c.l.b16 %v657
    %v1106 = vunpack.c.l.b16 %v658
    %v1107 = vunpack.c.l.b16 %v659
    %v1108 = vunpack.c.l.b16 %v660
    %v1109 = vunpack.c.l.b16 %v661
    %v1110 = vunpack.c.l.b16 %v662
    %v1111 = vunpack.c.l.b16 %v663
    %v1112 = vunpack.c.l.b16 %v664
    %v1113 = vpack.c.b16 %v1098, %v1097
    %v1114 = vpack.c.b16 %v1100, %v1099
    %v1115 = vpack.c.b16 %v1102, %v1101
    %v1116 = vpack.c.b16 %v1104, %v1103
    %v1117 = vpack.c.b16 %v1106, %v1105
    %v1118 = vpack.c.b16 %v1108, %v1107
    %v1119 = vpack.c.b16 %v1110, %v1109
    %v1120 = vpack.c.b16 %v1112, %v1111
    %1121 = vrot.lane.b32.xlu0 %v1113, 18
    %v1122 = vpop.permute.xlu0 %1121
    %1123 = vrot.lane.b32.xlu0 %v1114, 18
    %v1124 = vpop.permute.xlu0 %1123
    %1125 = vrot.lane.b32.xlu0 %v1115, 18
    %v1126 = vpop.permute.xlu0 %1125
    %1127 = vrot.lane.b32.xlu0 %v1116, 18
    %v1128 = vpop.permute.xlu0 %1127
    %1129 = vrot.lane.b32.xlu0 %v1117, 18
    %v1130 = vpop.permute.xlu0 %1129
    %1131 = vrot.lane.b32.xlu0 %v1118, 18
    %v1132 = vpop.permute.xlu0 %1131
    %1133 = vrot.lane.b32.xlu0 %v1119, 18
    %v1134 = vpop.permute.xlu0 %1133
    %1135 = vrot.lane.b32.xlu0 %v1120, 18
    %v1136 = vpop.permute.xlu0 %1135
    %v1153 = vunpack.c.l.b16 %v697
    %v1154 = vunpack.c.l.b16 %v698
    %v1155 = vunpack.c.l.b16 %v699
    %v1156 = vunpack.c.l.b16 %v700
    %v1157 = vunpack.c.l.b16 %v701
    %v1158 = vunpack.c.l.b16 %v702
    %v1159 = vunpack.c.l.b16 %v703
    %v1160 = vunpack.c.l.b16 %v704
    %v1161 = vunpack.c.l.b16 %v705
    %v1162 = vunpack.c.l.b16 %v706
    %v1163 = vunpack.c.l.b16 %v707
    %v1164 = vunpack.c.l.b16 %v708
    %v1165 = vunpack.c.l.b16 %v709
    %v1166 = vunpack.c.l.b16 %v710
    %v1167 = vunpack.c.l.b16 %v711
    %v1168 = vunpack.c.l.b16 %v712
    %v1169 = vpack.c.b16 %v1154, %v1153
    %v1170 = vpack.c.b16 %v1156, %v1155
    %v1171 = vpack.c.b16 %v1158, %v1157
    %v1172 = vpack.c.b16 %v1160, %v1159
    %v1173 = vpack.c.b16 %v1162, %v1161
    %v1174 = vpack.c.b16 %v1164, %v1163
    %v1175 = vpack.c.b16 %v1166, %v1165
    %v1176 = vpack.c.b16 %v1168, %v1167
    %1177 = vrot.lane.b32.xlu0 %v1169, 21
    %v1178 = vpop.permute.xlu0 %1177
    %1179 = vrot.lane.b32.xlu0 %v1170, 21
    %v1180 = vpop.permute.xlu0 %1179
    %1181 = vrot.lane.b32.xlu0 %v1171, 21
    %v1182 = vpop.permute.xlu0 %1181
    %1183 = vrot.lane.b32.xlu0 %v1172, 21
    %v1184 = vpop.permute.xlu0 %1183
    %1185 = vrot.lane.b32.xlu0 %v1173, 21
    %v1186 = vpop.permute.xlu0 %1185
    %1187 = vrot.lane.b32.xlu0 %v1174, 21
    %v1188 = vpop.permute.xlu0 %1187
    %1189 = vrot.lane.b32.xlu0 %v1175, 21
    %v1190 = vpop.permute.xlu0 %1189
    %1191 = vrot.lane.b32.xlu0 %v1176, 21
    %v1192 = vpop.permute.xlu0 %1191
    %v1209 = vunpack.c.l.b16 %v745
    %v1210 = vunpack.c.l.b16 %v746
    %v1211 = vunpack.c.l.b16 %v747
    %v1212 = vunpack.c.l.b16 %v748
    %v1213 = vunpack.c.l.b16 %v749
    %v1214 = vunpack.c.l.b16 %v750
    %v1215 = vunpack.c.l.b16 %v751
    %v1216 = vunpack.c.l.b16 %v752
    %v1217 = vunpack.c.l.b16 %v753
    %v1218 = vunpack.c.l.b16 %v754
    %v1219 = vunpack.c.l.b16 %v755
    %v1220 = vunpack.c.l.b16 %v756
    %v1221 = vunpack.c.l.b16 %v757
    %v1222 = vunpack.c.l.b16 %v758
    %v1223 = vunpack.c.l.b16 %v759
    %v1224 = vunpack.c.l.b16 %v760
    %v1225 = vpack.c.b16 %v1210, %v1209
    %v1226 = vpack.c.b16 %v1212, %v1211
    %v1227 = vpack.c.b16 %v1214, %v1213
    %v1228 = vpack.c.b16 %v1216, %v1215
    %v1229 = vpack.c.b16 %v1218, %v1217
    %v1230 = vpack.c.b16 %v1220, %v1219
    %v1231 = vpack.c.b16 %v1222, %v1221
    %v1232 = vpack.c.b16 %v1224, %v1223
    %1233 = vrot.lane.b32.xlu0 %v1225, 24
    %v1234 = vpop.permute.xlu0 %1233
    %1235 = vrot.lane.b32.xlu0 %v1226, 24
    %v1236 = vpop.permute.xlu0 %1235
    %1237 = vrot.lane.b32.xlu0 %v1227, 24
    %v1238 = vpop.permute.xlu0 %1237
    %1239 = vrot.lane.b32.xlu0 %v1228, 24
    %v1240 = vpop.permute.xlu0 %1239
    %1241 = vrot.lane.b32.xlu0 %v1229, 24
    %v1242 = vpop.permute.xlu0 %1241
    %1243 = vrot.lane.b32.xlu0 %v1230, 24
    %v1244 = vpop.permute.xlu0 %1243
    %1245 = vrot.lane.b32.xlu0 %v1231, 24
    %v1246 = vpop.permute.xlu0 %1245
    %1247 = vrot.lane.b32.xlu0 %v1232, 24
    %v1248 = vpop.permute.xlu0 %1247
    %v1251 = vsel %vm31, %v793, %v842
    %v1254 = vsel %vm31, %v794, %v844
    %v1257 = vsel %vm31, %v795, %v846
    %v1260 = vsel %vm31, %v796, %v848
    %v1263 = vsel %vm31, %v797, %v850
    %v1266 = vsel %vm31, %v798, %v852
    %v1269 = vsel %vm31, %v799, %v854
    %v1272 = vsel %vm31, %v800, %v856
    %vm1273 = vcmask 48128
    %v1275 = vsel %vm1273, %v1251, %v898
    %v1277 = vsel %vm1273, %v1254, %v900
    %v1279 = vsel %vm1273, %v1257, %v902
    %v1281 = vsel %vm1273, %v1260, %v904
    %v1283 = vsel %vm1273, %v1263, %v906
    %v1285 = vsel %vm1273, %v1266, %v908
    %v1287 = vsel %vm1273, %v1269, %v910
    %v1289 = vsel %vm1273, %v1272, %v912
    %vm1290 = vcmask 72704
    %v1292 = vsel %vm1290, %v1275, %v954
    %v1294 = vsel %vm1290, %v1277, %v956
    %v1296 = vsel %vm1290, %v1279, %v958
    %v1298 = vsel %vm1290, %v1281, %v960
    %v1300 = vsel %vm1290, %v1283, %v962
    %v1302 = vsel %vm1290, %v1285, %v964
    %v1304 = vsel %vm1290, %v1287, %v966
    %v1306 = vsel %vm1290, %v1289, %v968
    %vm1307 = vcmask 97280
    %v1309 = vsel %vm1307, %v1292, %v1010
    %v1311 = vsel %vm1307, %v1294, %v1012
    %v1313 = vsel %vm1307, %v1296, %v1014
    %v1315 = vsel %vm1307, %v1298, %v1016
    %v1317 = vsel %vm1307, %v1300, %v1018
    %v1319 = vsel %vm1307, %v1302, %v1020
    %v1321 = vsel %vm1307, %v1304, %v1022
    %v1323 = vsel %vm1307, %v1306, %v1024
    %vm1324 = vcmask 121856
    %v1326 = vsel %vm1324, %v1309, %v1066
    %v1328 = vsel %vm1324, %v1311, %v1068
    %v1330 = vsel %vm1324, %v1313, %v1070
    %v1332 = vsel %vm1324, %v1315, %v1072
    %v1334 = vsel %vm1324, %v1317, %v1074
    %v1336 = vsel %vm1324, %v1319, %v1076
    %v1338 = vsel %vm1324, %v1321, %v1078
    %v1340 = vsel %vm1324, %v1323, %v1080
    %vm1341 = vcmask 146432
    %v1343 = vsel %vm1341, %v1326, %v1122
    %v1345 = vsel %vm1341, %v1328, %v1124
    %v1347 = vsel %vm1341, %v1330, %v1126
    %v1349 = vsel %vm1341, %v1332, %v1128
    %v1351 = vsel %vm1341, %v1334, %v1130
    %v1353 = vsel %vm1341, %v1336, %v1132
    %v1355 = vsel %vm1341, %v1338, %v1134
    %v1357 = vsel %vm1341, %v1340, %v1136
    %vm1358 = vcmask 171008
    %v1360 = vsel %vm1358, %v1343, %v1178
    %v1362 = vsel %vm1358, %v1345, %v1180
    %v1364 = vsel %vm1358, %v1347, %v1182
    %v1366 = vsel %vm1358, %v1349, %v1184
    %v1368 = vsel %vm1358, %v1351, %v1186
    %v1370 = vsel %vm1358, %v1353, %v1188
    %v1372 = vsel %vm1358, %v1355, %v1190
    %v1374 = vsel %vm1358, %v1357, %v1192
    %vm1375 = vcmask 195584
    %v1377 = vsel %vm1375, %v1360, %v1234
    %v1379 = vsel %vm1375, %v1362, %v1236
    %v1381 = vsel %vm1375, %v1364, %v1238
    %v1383 = vsel %vm1375, %v1366, %v1240
    %v1385 = vsel %vm1375, %v1368, %v1242
    %v1387 = vsel %vm1375, %v1370, %v1244
    %v1389 = vsel %vm1375, %v1372, %v1246
    %v1391 = vsel %vm1375, %v1374, %v1248
    %v1392 = vld [vmem:[%s1] sm:$0xf]
    %v1393 = vld [vmem:[%s1 + $0x4] sm:$0xf]
    %v1394 = vld [vmem:[%s1 + $0x8] sm:$0xf]
    %v1395 = vld [vmem:[%s1 + $0xc] sm:$0x3]
    %v1396 = vld [vmem:[%s2] sm:$0x1]
    %v1398 = vlaneseq
    %v1399 = vshrl.u32 %v1398, 7
    %v1400 = vsub.s32 0, %v1399
    %v1401 = vrot.slane %v1396, %v1400
    %v1407 = vunpack.c.l.b16 %v1392
    %v1408 = vunpack.c.l.b16 %v1393
    %v1409 = vunpack.c.l.b16 %v1394
    %v1410 = vunpack.c.l.b16 %v1395
    %v1411 = vpack.c.b16 %v1408, %v1407
    %v1412 = vpack.c.b16 %v1410, %v1409
    %vm1414 = vcmask 220160
    %v1415 = vsel %vm1414, %v1377, 0
    %v1417 = vsel %vm1414, %v1379, 0
    %v1419 = vsel %vm1414, %v1381, 0
    %v1421 = vsel %vm1414, %v1383, 0
    %v1423 = vsel %vm1414, %v1385, 0
    %v1425 = vsel %vm1414, %v1387, 0
    %v1427 = vsel %vm1414, %v1389, 0
    %v1429 = vsel %vm1414, %v1391, 0
    %vm1431 = vcmask 1044480
    %vm1432 = vcmask 1045504
    %v1433 = vsel %vm1431, 4294967295, 65535
    %v1434 = vsel %vm1432, %v1433, 0
    %v1436 = vand.u32 %v1412, %v1434
    %1438 = vmatprep.subr.bf16.mxu0 0
    %1439 = vmatpush1.bf16.msra.mxu0 %v1411
    %1440 = vmatprep.subr.bf16.mxu0 0
    %1441 = vmatpush1.bf16.msra.mxu0 %v1436
    %1442 = vmatprep.subr.bf16.mxu0 0
    %1443 = vmatpush1.bf16.msra.mxu0 0
    %1444 = vmatprep.subr.bf16.mxu0 0
    %1445 = vmatpush1.bf16.msra.mxu0 0
    %1446 = vmatprep.subr.bf16.mxu0 0
    %1447 = vmatpush1.bf16.msra.mxu0 0
    %1448 = vmatprep.subr.bf16.mxu0 0
    %1449 = vmatpush1.bf16.msra.mxu0 0
    %1450 = vmatprep.subr.bf16.mxu0 0
    %1451 = vmatpush1.bf16.msra.mxu0 0
    %1452 = vmatprep.subr.bf16.mxu0 0
    %1453 = vmatpush1.bf16.msra.mxu0 0
    %1454 = vmatprep.subr.bf16.mxu0 0
    %1455 = vmatpush1.bf16.msra.mxu0 0
    %1456 = vmatprep.subr.bf16.mxu0 0
    %1457 = vmatpush1.bf16.msra.mxu0 0
    %1458 = vmatprep.subr.bf16.mxu0 0
    %1459 = vmatpush1.bf16.msra.mxu0 0
    %1460 = vmatprep.subr.bf16.mxu0 0
    %1461 = vmatpush1.bf16.msra.mxu0 0
    %1462 = vmatprep.subr.bf16.mxu0 0
    %1463 = vmatpush1.bf16.msra.mxu0 0
    %1464 = vmatprep.subr.bf16.mxu0 0
    %1465 = vmatpush1.bf16.msra.mxu0 0
    %1466 = vmatprep.subr.bf16.mxu0 0
    %1467 = vmatpush1.bf16.msra.mxu0 0
    %1468 = vmatprep.subr.bf16.mxu0 0
    %1469 = vmatpush1.bf16.msra.mxu0 0
    %1470 = vmatprep.mubr.bf16.mxu0 0
    %1471 = vmatmul.mubr.bf16.gmra.mrb[0].mxu0 %v1415
    %v1472 = vpop.f32.mrb[0].mxu0
    %v1473 = vadd.f32 %v1401, %v1472
    %v1474 = vpop.f32.mrb[0].mxu0
    %v1475 = vpop.f32.mrb[0].mxu0
    %v1476 = vadd.f32 %v1401, %v1475
    %v1477 = vpop.f32.mrb[0].mxu0
    %1478 = vmatprep.mubr.bf16.mxu0 0
    %1479 = vmatmul.mubr.bf16.gmra.mrb[0].mxu0 %v1417
    %v1480 = vpop.f32.mrb[0].mxu0
    %v1481 = vadd.f32 %v1401, %v1480
    %v1482 = vpop.f32.mrb[0].mxu0
    %v1483 = vpop.f32.mrb[0].mxu0
    %v1484 = vadd.f32 %v1401, %v1483
    %v1485 = vpop.f32.mrb[0].mxu0
    %1486 = vmatprep.mubr.bf16.mxu0 0
    %1487 = vmatmul.mubr.bf16.gmra.mrb[0].mxu0 %v1419
    %v1488 = vpop.f32.mrb[0].mxu0
    %v1489 = vadd.f32 %v1401, %v1488
    %v1490 = vpop.f32.mrb[0].mxu0
    %v1491 = vpop.f32.mrb[0].mxu0
    %v1492 = vadd.f32 %v1401, %v1491
    %v1493 = vpop.f32.mrb[0].mxu0
    %1494 = vmatprep.mubr.bf16.mxu0 0
    %1495 = vmatmul.mubr.bf16.gmra.mrb[0].mxu0 %v1421
    %v1496 = vpop.f32.mrb[0].mxu0
    %v1497 = vadd.f32 %v1401, %v1496
    %v1498 = vpop.f32.mrb[0].mxu0
    %v1499 = vpop.f32.mrb[0].mxu0
    %v1500 = vadd.f32 %v1401, %v1499
    %v1501 = vpop.f32.mrb[0].mxu0
    %1502 = vmatprep.mubr.bf16.mxu0 0
    %1503 = vmatmul.mubr.bf16.gmra.mrb[0].mxu0 %v1423
    %v1504 = vpop.f32.mrb[0].mxu0
    %v1505 = vadd.f32 %v1401, %v1504
    %v1506 = vpop.f32.mrb[0].mxu0
    %v1507 = vpop.f32.mrb[0].mxu0
    %v1508 = vadd.f32 %v1401, %v1507
    %v1509 = vpop.f32.mrb[0].mxu0
    %1510 = vmatprep.mubr.bf16.mxu0 0
    %1511 = vmatmul.mubr.bf16.gmra.mrb[0].mxu0 %v1425
    %v1512 = vpop.f32.mrb[0].mxu0
    %v1513 = vadd.f32 %v1401, %v1512
    %v1514 = vpop.f32.mrb[0].mxu0
    %v1515 = vpop.f32.mrb[0].mxu0
    %v1516 = vadd.f32 %v1401, %v1515
    %v1517 = vpop.f32.mrb[0].mxu0
    %1518 = vmatprep.mubr.bf16.mxu0 0
    %1519 = vmatmul.mubr.bf16.gmra.mrb[0].mxu0 %v1427
    %v1520 = vpop.f32.mrb[0].mxu0
    %v1521 = vadd.f32 %v1401, %v1520
    %v1522 = vpop.f32.mrb[0].mxu0
    %v1523 = vpop.f32.mrb[0].mxu0
    %v1524 = vadd.f32 %v1401, %v1523
    %v1525 = vpop.f32.mrb[0].mxu0
    %1526 = vmatprep.mubr.bf16.mxu0 0
    %1527 = vmatmul.mubr.bf16.gmra.mrb[0].mxu0 %v1429
    %v1528 = vpop.f32.mrb[0].mxu0
    %v1529 = vadd.f32 %v1401, %v1528
    %v1530 = vpop.f32.mrb[0].mxu0
    %v1531 = vpop.f32.mrb[0].mxu0
    %v1532 = vadd.f32 %v1401, %v1531
    %v1533 = vpop.f32.mrb[0].mxu0
    %1534 = vdwg.mxu0
    %vm1535 = vcmp.ge.f32.partialorder %v1473, 0.0
    %vm1536 = vcmp.ge.f32.partialorder %v1476, 0.0
    %vm1537 = vcmp.ge.f32.partialorder %v1481, 0.0
    %vm1538 = vcmp.ge.f32.partialorder %v1484, 0.0
    %vm1539 = vcmp.ge.f32.partialorder %v1489, 0.0
    %vm1540 = vcmp.ge.f32.partialorder %v1492, 0.0
    %vm1541 = vcmp.ge.f32.partialorder %v1497, 0.0
    %vm1542 = vcmp.ge.f32.partialorder %v1500, 0.0
    %vm1543 = vcmp.ge.f32.partialorder %v1505, 0.0
    %vm1544 = vcmp.ge.f32.partialorder %v1508, 0.0
    %vm1545 = vcmp.ge.f32.partialorder %v1513, 0.0
    %vm1546 = vcmp.ge.f32.partialorder %v1516, 0.0
    %vm1547 = vcmp.ge.f32.partialorder %v1521, 0.0
    %vm1548 = vcmp.ge.f32.partialorder %v1524, 0.0
    %vm1549 = vcmp.ge.f32.partialorder %v1529, 0.0
    %vm1550 = vcmp.ge.f32.partialorder %v1532, 0.0
    %v1551 = vmul.f32 %v1473, 0.2
    %v1552 = vmul.f32 %v1476, 0.2
    %v1553 = vmul.f32 %v1481, 0.2
    %v1554 = vmul.f32 %v1484, 0.2
    %v1555 = vmul.f32 %v1489, 0.2
    %v1556 = vmul.f32 %v1492, 0.2
    %v1557 = vmul.f32 %v1497, 0.2
    %v1558 = vmul.f32 %v1500, 0.2
    %v1559 = vmul.f32 %v1505, 0.2
    %v1560 = vmul.f32 %v1508, 0.2
    %v1561 = vmul.f32 %v1513, 0.2
    %v1562 = vmul.f32 %v1516, 0.2
    %v1563 = vmul.f32 %v1521, 0.2
    %v1564 = vmul.f32 %v1524, 0.2
    %v1565 = vmul.f32 %v1529, 0.2
    %v1566 = vmul.f32 %v1532, 0.2
    %v1567 = vsel %vm1535, %v1473, %v1551
    %v1568 = vsel %vm1536, %v1476, %v1552
    %v1569 = vsel %vm1537, %v1481, %v1553
    %v1570 = vsel %vm1538, %v1484, %v1554
    %v1571 = vsel %vm1539, %v1489, %v1555
    %v1572 = vsel %vm1540, %v1492, %v1556
    %v1573 = vsel %vm1541, %v1497, %v1557
    %v1574 = vsel %vm1542, %v1500, %v1558
    %v1575 = vsel %vm1543, %v1505, %v1559
    %v1576 = vsel %vm1544, %v1508, %v1560
    %v1577 = vsel %vm1545, %v1513, %v1561
    %v1578 = vsel %vm1546, %v1516, %v1562
    %v1579 = vsel %vm1547, %v1521, %v1563
    %v1580 = vsel %vm1548, %v1524, %v1564
    %v1581 = vsel %vm1549, %v1529, %v1565
    %v1582 = vsel %vm1550, %v1532, %v1566
    %s1583 = scalar_lea.vmem [#allocation3], 16
    %1584 = vst.msk [vmem:[%s1583 + $0x1] sm:$0xff] %vm119, %v1567
    %1585 = vst.msk [vmem:[%s1583 + $0x11] sm:$0xff] %vm119, %v1568
    %1586 = vst.msk [vmem:[%s1583 + $0x21] sm:$0xff] %vm119, %v1569
    %1587 = vst.msk [vmem:[%s1583 + $0x31] sm:$0xff] %vm119, %v1570
    %1588 = vst.msk [vmem:[%s1583 + $0x41] sm:$0xff] %vm119, %v1571
    %1589 = vst.msk [vmem:[%s1583 + $0x51] sm:$0xff] %vm119, %v1572
    %1590 = vst.msk [vmem:[%s1583 + $0x61] sm:$0xff] %vm119, %v1573
    %1591 = vst.msk [vmem:[%s1583 + $0x71] sm:$0xff] %vm119, %v1574
    %1592 = vst.msk [vmem:[%s1583 + $0xa1] sm:$0xff] %vm119, %v1575
    %1593 = vst.msk [vmem:[%s1583 + $0xb1] sm:$0xff] %vm119, %v1576
    %1594 = vst.msk [vmem:[%s1583 + $0xc1] sm:$0xff] %vm119, %v1577
    %1595 = vst.msk [vmem:[%s1583 + $0xd1] sm:$0xff] %vm119, %v1578
    %1596 = vst.msk [vmem:[%s1583 + $0xe1] sm:$0xff] %vm119, %v1579
    %1597 = vst.msk [vmem:[%s1583 + $0xf1] sm:$0xff] %vm119, %v1580
    %1598 = vst.msk [vmem:[%s1583 + $0x101] sm:$0xff] %vm119, %v1581
    %1599 = vst.msk [vmem:[%s1583 + $0x111] sm:$0xff] %vm119, %v1582
    %v1600 = vld [vmem:[#allocation3] ss:$2 sm:$0xf]
    %s1601 = scalar_lea.vmem [#allocation3], 32
    %v1602 = vld [vmem:[%s1601] ss:$2 sm:$0xf]
    %s1603 = scalar_lea.vmem [#allocation3], 64
    %v1604 = vld [vmem:[%s1603] ss:$2 sm:$0xf]
    %s1605 = scalar_lea.vmem [#allocation3], 96
    %v1606 = vld [vmem:[%s1605] ss:$2 sm:$0xf]
    %s1607 = scalar_lea.vmem [#allocation3], 160
    %v1608 = vld [vmem:[%s1607] ss:$2 sm:$0xf]
    %s1609 = scalar_lea.vmem [#allocation3], 192
    %v1610 = vld [vmem:[%s1609] ss:$2 sm:$0xf]
    %s1611 = scalar_lea.vmem [#allocation3], 224
    %v1612 = vld [vmem:[%s1611] ss:$2 sm:$0xf]
    %s1613 = scalar_lea.vmem [#allocation3], 256
    %v1614 = vld [vmem:[%s1613] ss:$2 sm:$0xf]
    %v1615 = vpack.c.bf16 %v1600, %v1600
    %v1616 = vpack.c.bf16 %v1602, %v1602
    %v1617 = vpack.c.bf16 %v1604, %v1604
    %v1618 = vpack.c.bf16 %v1606, %v1606
    %v1619 = vpack.c.bf16 %v1608, %v1608
    %v1620 = vpack.c.bf16 %v1610, %v1610
    %v1621 = vpack.c.bf16 %v1612, %v1612
    %v1622 = vpack.c.bf16 %v1614, %v1614
    %s1623 = scalar_lea.vmem [#allocation3], 1
    %v1624 = vld [vmem:[%s1623] ss:$2 sm:$0xf]
    %s1625 = scalar_lea.vmem [#allocation3], 33
    %v1626 = vld [vmem:[%s1625] ss:$2 sm:$0xf]
    %s1627 = scalar_lea.vmem [#allocation3], 65
    %v1628 = vld [vmem:[%s1627] ss:$2 sm:$0xf]
    %s1629 = scalar_lea.vmem [#allocation3], 97
    %v1630 = vld [vmem:[%s1629] ss:$2 sm:$0xf]
    %s1631 = scalar_lea.vmem [#allocation3], 161
    %v1632 = vld [vmem:[%s1631] ss:$2 sm:$0xf]
    %s1633 = scalar_lea.vmem [#allocation3], 193
    %v1634 = vld [vmem:[%s1633] ss:$2 sm:$0xf]
    %s1635 = scalar_lea.vmem [#allocation3], 225
    %v1636 = vld [vmem:[%s1635] ss:$2 sm:$0xf]
    %s1637 = scalar_lea.vmem [#allocation3], 257
    %v1638 = vld [vmem:[%s1637] ss:$2 sm:$0xf]
    %v1639 = vpack.c.bf16 %v1624, %v1624
    %v1640 = vpack.c.bf16 %v1626, %v1626
    %v1641 = vpack.c.bf16 %v1628, %v1628
    %v1642 = vpack.c.bf16 %v1630, %v1630
    %v1643 = vpack.c.bf16 %v1632, %v1632
    %v1644 = vpack.c.bf16 %v1634, %v1634
    %v1645 = vpack.c.bf16 %v1636, %v1636
    %v1646 = vpack.c.bf16 %v1638, %v1638
    %s1647 = scalar_lea.vmem [#allocation3], 2
    %v1648 = vld [vmem:[%s1647] ss:$2 sm:$0xf]
    %s1649 = scalar_lea.vmem [#allocation3], 34
    %v1650 = vld [vmem:[%s1649] ss:$2 sm:$0xf]
    %s1651 = scalar_lea.vmem [#allocation3], 66
    %v1652 = vld [vmem:[%s1651] ss:$2 sm:$0xf]
    %s1653 = scalar_lea.vmem [#allocation3], 98
    %v1654 = vld [vmem:[%s1653] ss:$2 sm:$0xf]
    %s1655 = scalar_lea.vmem [#allocation3], 162
    %v1656 = vld [vmem:[%s1655] ss:$2 sm:$0xf]
    %s1657 = scalar_lea.vmem [#allocation3], 194
    %v1658 = vld [vmem:[%s1657] ss:$2 sm:$0xf]
    %s1659 = scalar_lea.vmem [#allocation3], 226
    %v1660 = vld [vmem:[%s1659] ss:$2 sm:$0xf]
    %s1661 = scalar_lea.vmem [#allocation3], 258
    %v1662 = vld [vmem:[%s1661] ss:$2 sm:$0xf]
    %v1663 = vpack.c.bf16 %v1648, %v1648
    %v1664 = vpack.c.bf16 %v1650, %v1650
    %v1665 = vpack.c.bf16 %v1652, %v1652
    %v1666 = vpack.c.bf16 %v1654, %v1654
    %v1667 = vpack.c.bf16 %v1656, %v1656
    %v1668 = vpack.c.bf16 %v1658, %v1658
    %v1669 = vpack.c.bf16 %v1660, %v1660
    %v1670 = vpack.c.bf16 %v1662, %v1662
    %v1671 = vld [vmem:[%s1583] ss:$2 sm:$0xf]
    %s1672 = scalar_lea.vmem %s1583, 32 [#allocation3]
    %v1673 = vld [vmem:[%s1672] ss:$2 sm:$0xf]
    %s1674 = scalar_lea.vmem %s1583, 64 [#allocation3]
    %v1675 = vld [vmem:[%s1674] ss:$2 sm:$0xf]
    %s1676 = scalar_lea.vmem %s1583, 96 [#allocation3]
    %v1677 = vld [vmem:[%s1676] ss:$2 sm:$0xf]
    %s1678 = scalar_lea.vmem %s1583, 160 [#allocation3]
    %v1679 = vld [vmem:[%s1678] ss:$2 sm:$0xf]
    %s1680 = scalar_lea.vmem %s1583, 192 [#allocation3]
    %v1681 = vld [vmem:[%s1680] ss:$2 sm:$0xf]
    %s1682 = scalar_lea.vmem %s1583, 224 [#allocation3]
    %v1683 = vld [vmem:[%s1682] ss:$2 sm:$0xf]
    %s1684 = scalar_lea.vmem %s1583, 256 [#allocation3]
    %v1685 = vld [vmem:[%s1684] ss:$2 sm:$0xf]
    %v1686 = vpack.c.bf16 %v1671, %v1671
    %v1687 = vpack.c.bf16 %v1673, %v1673
    %v1688 = vpack.c.bf16 %v1675, %v1675
    %v1689 = vpack.c.bf16 %v1677, %v1677
    %v1690 = vpack.c.bf16 %v1679, %v1679
    %v1691 = vpack.c.bf16 %v1681, %v1681
    %v1692 = vpack.c.bf16 %v1683, %v1683
    %v1693 = vpack.c.bf16 %v1685, %v1685
    %s1694 = scalar_lea.vmem %s1583, 1 [#allocation3]
    %v1695 = vld [vmem:[%s1694] ss:$2 sm:$0xf]
    %s1696 = scalar_lea.vmem %s1583, 33 [#allocation3]
    %v1697 = vld [vmem:[%s1696] ss:$2 sm:$0xf]
    %s1698 = scalar_lea.vmem %s1583, 65 [#allocation3]
    %v1699 = vld [vmem:[%s1698] ss:$2 sm:$0xf]
    %s1700 = scalar_lea.vmem %s1583, 97 [#allocation3]
    %v1701 = vld [vmem:[%s1700] ss:$2 sm:$0xf]
    %s1702 = scalar_lea.vmem %s1583, 161 [#allocation3]
    %v1703 = vld [vmem:[%s1702] ss:$2 sm:$0xf]
    %s1704 = scalar_lea.vmem %s1583, 193 [#allocation3]
    %v1705 = vld [vmem:[%s1704] ss:$2 sm:$0xf]
    %s1706 = scalar_lea.vmem %s1583, 225 [#allocation3]
    %v1707 = vld [vmem:[%s1706] ss:$2 sm:$0xf]
    %s1708 = scalar_lea.vmem %s1583, 257 [#allocation3]
    %v1709 = vld [vmem:[%s1708] ss:$2 sm:$0xf]
    %v1710 = vpack.c.bf16 %v1695, %v1695
    %v1711 = vpack.c.bf16 %v1697, %v1697
    %v1712 = vpack.c.bf16 %v1699, %v1699
    %v1713 = vpack.c.bf16 %v1701, %v1701
    %v1714 = vpack.c.bf16 %v1703, %v1703
    %v1715 = vpack.c.bf16 %v1705, %v1705
    %v1716 = vpack.c.bf16 %v1707, %v1707
    %v1717 = vpack.c.bf16 %v1709, %v1709
    %s1718 = scalar_lea.vmem %s1583, 2 [#allocation3]
    %v1719 = vld [vmem:[%s1718] ss:$2 sm:$0xf]
    %s1720 = scalar_lea.vmem %s1583, 34 [#allocation3]
    %v1721 = vld [vmem:[%s1720] ss:$2 sm:$0xf]
    %s1722 = scalar_lea.vmem %s1583, 66 [#allocation3]
    %v1723 = vld [vmem:[%s1722] ss:$2 sm:$0xf]
    %s1724 = scalar_lea.vmem %s1583, 98 [#allocation3]
    %v1725 = vld [vmem:[%s1724] ss:$2 sm:$0xf]
    %s1726 = scalar_lea.vmem %s1583, 162 [#allocation3]
    %v1727 = vld [vmem:[%s1726] ss:$2 sm:$0xf]
    %s1728 = scalar_lea.vmem %s1583, 194 [#allocation3]
    %v1729 = vld [vmem:[%s1728] ss:$2 sm:$0xf]
    %s1730 = scalar_lea.vmem %s1583, 226 [#allocation3]
    %v1731 = vld [vmem:[%s1730] ss:$2 sm:$0xf]
    %s1732 = scalar_lea.vmem %s1583, 258 [#allocation3]
    %v1733 = vld [vmem:[%s1732] ss:$2 sm:$0xf]
    %v1734 = vpack.c.bf16 %v1719, %v1719
    %v1735 = vpack.c.bf16 %v1721, %v1721
    %v1736 = vpack.c.bf16 %v1723, %v1723
    %v1737 = vpack.c.bf16 %v1725, %v1725
    %v1738 = vpack.c.bf16 %v1727, %v1727
    %v1739 = vpack.c.bf16 %v1729, %v1729
    %v1740 = vpack.c.bf16 %v1731, %v1731
    %v1741 = vpack.c.bf16 %v1733, %v1733
    %s1742 = scalar_lea.vmem [#allocation3], 32
    %v1743 = vld [vmem:[%s1742] ss:$2 sm:$0xf]
    %s1744 = scalar_lea.vmem %s1742, 32 [#allocation3]
    %v1745 = vld [vmem:[%s1744] ss:$2 sm:$0xf]
    %s1746 = scalar_lea.vmem %s1742, 64 [#allocation3]
    %v1747 = vld [vmem:[%s1746] ss:$2 sm:$0xf]
    %s1748 = scalar_lea.vmem %s1742, 96 [#allocation3]
    %v1749 = vld [vmem:[%s1748] ss:$2 sm:$0xf]
    %s1750 = scalar_lea.vmem %s1742, 160 [#allocation3]
    %v1751 = vld [vmem:[%s1750] ss:$2 sm:$0xf]
    %s1752 = scalar_lea.vmem %s1742, 192 [#allocation3]
    %v1753 = vld [vmem:[%s1752] ss:$2 sm:$0xf]
    %s1754 = scalar_lea.vmem %s1742, 224 [#allocation3]
    %v1755 = vld [vmem:[%s1754] ss:$2 sm:$0xf]
    %s1756 = scalar_lea.vmem %s1742, 256 [#allocation3]
    %v1757 = vld [vmem:[%s1756] ss:$2 sm:$0xf]
    %v1758 = vpack.c.bf16 %v1743, %v1743
    %v1759 = vpack.c.bf16 %v1745, %v1745
    %v1760 = vpack.c.bf16 %v1747, %v1747
    %v1761 = vpack.c.bf16 %v1749, %v1749
    %v1762 = vpack.c.bf16 %v1751, %v1751
    %v1763 = vpack.c.bf16 %v1753, %v1753
    %v1764 = vpack.c.bf16 %v1755, %v1755
    %v1765 = vpack.c.bf16 %v1757, %v1757
    %s1766 = scalar_lea.vmem %s1742, 1 [#allocation3]
    %v1767 = vld [vmem:[%s1766] ss:$2 sm:$0xf]
    %s1768 = scalar_lea.vmem %s1742, 33 [#allocation3]
    %v1769 = vld [vmem:[%s1768] ss:$2 sm:$0xf]
    %s1770 = scalar_lea.vmem %s1742, 65 [#allocation3]
    %v1771 = vld [vmem:[%s1770] ss:$2 sm:$0xf]
    %s1772 = scalar_lea.vmem %s1742, 97 [#allocation3]
    %v1773 = vld [vmem:[%s1772] ss:$2 sm:$0xf]
    %s1774 = scalar_lea.vmem %s1742, 161 [#allocation3]
    %v1775 = vld [vmem:[%s1774] ss:$2 sm:$0xf]
    %s1776 = scalar_lea.vmem %s1742, 193 [#allocation3]
    %v1777 = vld [vmem:[%s1776] ss:$2 sm:$0xf]
    %s1778 = scalar_lea.vmem %s1742, 225 [#allocation3]
    %v1779 = vld [vmem:[%s1778] ss:$2 sm:$0xf]
    %s1780 = scalar_lea.vmem %s1742, 257 [#allocation3]
    %v1781 = vld [vmem:[%s1780] ss:$2 sm:$0xf]
    %v1782 = vpack.c.bf16 %v1767, %v1767
    %v1783 = vpack.c.bf16 %v1769, %v1769
    %v1784 = vpack.c.bf16 %v1771, %v1771
    %v1785 = vpack.c.bf16 %v1773, %v1773
    %v1786 = vpack.c.bf16 %v1775, %v1775
    %v1787 = vpack.c.bf16 %v1777, %v1777
    %v1788 = vpack.c.bf16 %v1779, %v1779
    %v1789 = vpack.c.bf16 %v1781, %v1781
    %s1790 = scalar_lea.vmem %s1742, 2 [#allocation3]
    %v1791 = vld [vmem:[%s1790] ss:$2 sm:$0xf]
    %s1792 = scalar_lea.vmem %s1742, 34 [#allocation3]
    %v1793 = vld [vmem:[%s1792] ss:$2 sm:$0xf]
    %s1794 = scalar_lea.vmem %s1742, 66 [#allocation3]
    %v1795 = vld [vmem:[%s1794] ss:$2 sm:$0xf]
    %s1796 = scalar_lea.vmem %s1742, 98 [#allocation3]
    %v1797 = vld [vmem:[%s1796] ss:$2 sm:$0xf]
    %s1798 = scalar_lea.vmem %s1742, 162 [#allocation3]
    %v1799 = vld [vmem:[%s1798] ss:$2 sm:$0xf]
    %s1800 = scalar_lea.vmem %s1742, 194 [#allocation3]
    %v1801 = vld [vmem:[%s1800] ss:$2 sm:$0xf]
    %s1802 = scalar_lea.vmem %s1742, 226 [#allocation3]
    %v1803 = vld [vmem:[%s1802] ss:$2 sm:$0xf]
    %s1804 = scalar_lea.vmem %s1742, 258 [#allocation3]
    %v1805 = vld [vmem:[%s1804] ss:$2 sm:$0xf]
    %v1806 = vpack.c.bf16 %v1791, %v1791
    %v1807 = vpack.c.bf16 %v1793, %v1793
    %v1808 = vpack.c.bf16 %v1795, %v1795
    %v1809 = vpack.c.bf16 %v1797, %v1797
    %v1810 = vpack.c.bf16 %v1799, %v1799
    %v1811 = vpack.c.bf16 %v1801, %v1801
    %v1812 = vpack.c.bf16 %v1803, %v1803
    %v1813 = vpack.c.bf16 %v1805, %v1805
    %v1822 = vcombine.low %v1615, %v1616
    %v1823 = vcombine.low %v1617, %v1618
    %v1825 = vunpack.c.l.s4 1983009808
    %v1826 = vunpack.c.0.s8 %v1825
    %v1827 = vlaneseq
    %v1828 = vshrl.u32 %v1827, 7
    %v1829 = vsub.s32 %v1826, %v1828
    %v1830 = vrot.slane %v1822, %v1829
    %v1832 = vunpack.c.l.s4 1983009808
    %v1833 = vunpack.c.0.s8 %v1832
    %v1834 = vlaneseq
    %v1835 = vshrl.u32 %v1834, 7
    %v1836 = vsub.s32 %v1833, %v1835
    %v1837 = vrot.slane %v1823, %v1836
    %v1838 = vcombine.low %v1830, %v1837
    %v1839 = vcombine.low %v1619, %v1620
    %v1840 = vcombine.low %v1621, %v1622
    %v1842 = vunpack.c.l.s4 1983009808
    %v1843 = vunpack.c.0.s8 %v1842
    %v1844 = vlaneseq
    %v1845 = vshrl.u32 %v1844, 7
    %v1846 = vsub.s32 %v1843, %v1845
    %v1847 = vrot.slane %v1839, %v1846
    %v1849 = vunpack.c.l.s4 1983009808
    %v1850 = vunpack.c.0.s8 %v1849
    %v1851 = vlaneseq
    %v1852 = vshrl.u32 %v1851, 7
    %v1853 = vsub.s32 %v1850, %v1852
    %v1854 = vrot.slane %v1840, %v1853
    %v1855 = vcombine.low %v1847, %v1854
    %v1864 = vcombine.low %v1639, %v1640
    %v1865 = vcombine.low %v1641, %v1642
    %v1867 = vunpack.c.l.s4 1983009808
    %v1868 = vunpack.c.0.s8 %v1867
    %v1869 = vlaneseq
    %v1870 = vshrl.u32 %v1869, 7
    %v1871 = vsub.s32 %v1868, %v1870
    %v1872 = vrot.slane %v1864, %v1871
    %v1874 = vunpack.c.l.s4 1983009808
    %v1875 = vunpack.c.0.s8 %v1874
    %v1876 = vlaneseq
    %v1877 = vshrl.u32 %v1876, 7
    %v1878 = vsub.s32 %v1875, %v1877
    %v1879 = vrot.slane %v1865, %v1878
    %v1880 = vcombine.low %v1872, %v1879
    %v1881 = vcombine.low %v1643, %v1644
    %v1882 = vcombine.low %v1645, %v1646
    %v1884 = vunpack.c.l.s4 1983009808
    %v1885 = vunpack.c.0.s8 %v1884
    %v1886 = vlaneseq
    %v1887 = vshrl.u32 %v1886, 7
    %v1888 = vsub.s32 %v1885, %v1887
    %v1889 = vrot.slane %v1881, %v1888
    %v1891 = vunpack.c.l.s4 1983009808
    %v1892 = vunpack.c.0.s8 %v1891
    %v1893 = vlaneseq
    %v1894 = vshrl.u32 %v1893, 7
    %v1895 = vsub.s32 %v1892, %v1894
    %v1896 = vrot.slane %v1882, %v1895
    %v1897 = vcombine.low %v1889, %v1896
    %1898 = vrot.lane.b32.xlu0 %v1880, 32
    %v1899 = vpop.permute.xlu0 %1898
    %1900 = vrot.lane.b32.xlu0 %v1897, 32
    %v1901 = vpop.permute.xlu0 %1900
    %v1910 = vcombine.low %v1663, %v1664
    %v1911 = vcombine.low %v1665, %v1666
    %v1913 = vunpack.c.l.s4 1983009808
    %v1914 = vunpack.c.0.s8 %v1913
    %v1915 = vlaneseq
    %v1916 = vshrl.u32 %v1915, 7
    %v1917 = vsub.s32 %v1914, %v1916
    %v1918 = vrot.slane %v1910, %v1917
    %v1920 = vunpack.c.l.s4 1983009808
    %v1921 = vunpack.c.0.s8 %v1920
    %v1922 = vlaneseq
    %v1923 = vshrl.u32 %v1922, 7
    %v1924 = vsub.s32 %v1921, %v1923
    %v1925 = vrot.slane %v1911, %v1924
    %v1926 = vcombine.low %v1918, %v1925
    %v1927 = vcombine.low %v1667, %v1668
    %v1928 = vcombine.low %v1669, %v1670
    %v1930 = vunpack.c.l.s4 1983009808
    %v1931 = vunpack.c.0.s8 %v1930
    %v1932 = vlaneseq
    %v1933 = vshrl.u32 %v1932, 7
    %v1934 = vsub.s32 %v1931, %v1933
    %v1935 = vrot.slane %v1927, %v1934
    %v1937 = vunpack.c.l.s4 1983009808
    %v1938 = vunpack.c.0.s8 %v1937
    %v1939 = vlaneseq
    %v1940 = vshrl.u32 %v1939, 7
    %v1941 = vsub.s32 %v1938, %v1940
    %v1942 = vrot.slane %v1928, %v1941
    %v1943 = vcombine.low %v1935, %v1942
    %1944 = vrot.lane.b32.xlu0 %v1926, 64
    %v1945 = vpop.permute.xlu0 %1944
    %1946 = vrot.lane.b32.xlu0 %v1943, 64
    %v1947 = vpop.permute.xlu0 %1946
    %v1956 = vcombine.low %v1686, %v1687
    %v1957 = vcombine.low %v1688, %v1689
    %v1959 = vunpack.c.l.s4 1983009808
    %v1960 = vunpack.c.0.s8 %v1959
    %v1961 = vlaneseq
    %v1962 = vshrl.u32 %v1961, 7
    %v1963 = vsub.s32 %v1960, %v1962
    %v1964 = vrot.slane %v1956, %v1963
    %v1966 = vunpack.c.l.s4 1983009808
    %v1967 = vunpack.c.0.s8 %v1966
    %v1968 = vlaneseq
    %v1969 = vshrl.u32 %v1968, 7
    %v1970 = vsub.s32 %v1967, %v1969
    %v1971 = vrot.slane %v1957, %v1970
    %v1972 = vcombine.low %v1964, %v1971
    %v1973 = vcombine.low %v1690, %v1691
    %v1974 = vcombine.low %v1692, %v1693
    %v1976 = vunpack.c.l.s4 1983009808
    %v1977 = vunpack.c.0.s8 %v1976
    %v1978 = vlaneseq
    %v1979 = vshrl.u32 %v1978, 7
    %v1980 = vsub.s32 %v1977, %v1979
    %v1981 = vrot.slane %v1973, %v1980
    %v1983 = vunpack.c.l.s4 1983009808
    %v1984 = vunpack.c.0.s8 %v1983
    %v1985 = vlaneseq
    %v1986 = vshrl.u32 %v1985, 7
    %v1987 = vsub.s32 %v1984, %v1986
    %v1988 = vrot.slane %v1974, %v1987
    %v1989 = vcombine.low %v1981, %v1988
    %1990 = vrot.lane.b32.xlu0 %v1972, 96
    %v1991 = vpop.permute.xlu0 %1990
    %1992 = vrot.lane.b32.xlu0 %v1989, 96
    %v1993 = vpop.permute.xlu0 %1992
    %v2002 = vcombine.low %v1710, %v1711
    %v2003 = vcombine.low %v1712, %v1713
    %v2005 = vunpack.c.l.s4 1983009808
    %v2006 = vunpack.c.0.s8 %v2005
    %v2007 = vlaneseq
    %v2008 = vshrl.u32 %v2007, 7
    %v2009 = vsub.s32 %v2006, %v2008
    %v2010 = vrot.slane %v2002, %v2009
    %v2012 = vunpack.c.l.s4 1983009808
    %v2013 = vunpack.c.0.s8 %v2012
    %v2014 = vlaneseq
    %v2015 = vshrl.u32 %v2014, 7
    %v2016 = vsub.s32 %v2013, %v2015
    %v2017 = vrot.slane %v2003, %v2016
    %v2018 = vcombine.low %v2010, %v2017
    %v2019 = vcombine.low %v1714, %v1715
    %v2020 = vcombine.low %v1716, %v1717
    %v2022 = vunpack.c.l.s4 1983009808
    %v2023 = vunpack.c.0.s8 %v2022
    %v2024 = vlaneseq
    %v2025 = vshrl.u32 %v2024, 7
    %v2026 = vsub.s32 %v2023, %v2025
    %v2027 = vrot.slane %v2019, %v2026
    %v2029 = vunpack.c.l.s4 1983009808
    %v2030 = vunpack.c.0.s8 %v2029
    %v2031 = vlaneseq
    %v2032 = vshrl.u32 %v2031, 7
    %v2033 = vsub.s32 %v2030, %v2032
    %v2034 = vrot.slane %v2020, %v2033
    %v2035 = vcombine.low %v2027, %v2034
    %v2044 = vcombine.low %v1734, %v1735
    %v2045 = vcombine.low %v1736, %v1737
    %v2047 = vunpack.c.l.s4 1983009808
    %v2048 = vunpack.c.0.s8 %v2047
    %v2049 = vlaneseq
    %v2050 = vshrl.u32 %v2049, 7
    %v2051 = vsub.s32 %v2048, %v2050
    %v2052 = vrot.slane %v2044, %v2051
    %v2054 = vunpack.c.l.s4 1983009808
    %v2055 = vunpack.c.0.s8 %v2054
    %v2056 = vlaneseq
    %v2057 = vshrl.u32 %v2056, 7
    %v2058 = vsub.s32 %v2055, %v2057
    %v2059 = vrot.slane %v2045, %v2058
    %v2060 = vcombine.low %v2052, %v2059
    %v2061 = vcombine.low %v1738, %v1739
    %v2062 = vcombine.low %v1740, %v1741
    %v2064 = vunpack.c.l.s4 1983009808
    %v2065 = vunpack.c.0.s8 %v2064
    %v2066 = vlaneseq
    %v2067 = vshrl.u32 %v2066, 7
    %v2068 = vsub.s32 %v2065, %v2067
    %v2069 = vrot.slane %v2061, %v2068
    %v2071 = vunpack.c.l.s4 1983009808
    %v2072 = vunpack.c.0.s8 %v2071
    %v2073 = vlaneseq
    %v2074 = vshrl.u32 %v2073, 7
    %v2075 = vsub.s32 %v2072, %v2074
    %v2076 = vrot.slane %v2062, %v2075
    %v2077 = vcombine.low %v2069, %v2076
    %2078 = vrot.lane.b32.xlu0 %v2060, 32
    %v2079 = vpop.permute.xlu0 %2078
    %2080 = vrot.lane.b32.xlu0 %v2077, 32
    %v2081 = vpop.permute.xlu0 %2080
    %v2090 = vcombine.low %v1758, %v1759
    %v2091 = vcombine.low %v1760, %v1761
    %v2093 = vunpack.c.l.s4 1983009808
    %v2094 = vunpack.c.0.s8 %v2093
    %v2095 = vlaneseq
    %v2096 = vshrl.u32 %v2095, 7
    %v2097 = vsub.s32 %v2094, %v2096
    %v2098 = vrot.slane %v2090, %v2097
    %v2100 = vunpack.c.l.s4 1983009808
    %v2101 = vunpack.c.0.s8 %v2100
    %v2102 = vlaneseq
    %v2103 = vshrl.u32 %v2102, 7
    %v2104 = vsub.s32 %v2101, %v2103
    %v2105 = vrot.slane %v2091, %v2104
    %v2106 = vcombine.low %v2098, %v2105
    %v2107 = vcombine.low %v1762, %v1763
    %v2108 = vcombine.low %v1764, %v1765
    %v2110 = vunpack.c.l.s4 1983009808
    %v2111 = vunpack.c.0.s8 %v2110
    %v2112 = vlaneseq
    %v2113 = vshrl.u32 %v2112, 7
    %v2114 = vsub.s32 %v2111, %v2113
    %v2115 = vrot.slane %v2107, %v2114
    %v2117 = vunpack.c.l.s4 1983009808
    %v2118 = vunpack.c.0.s8 %v2117
    %v2119 = vlaneseq
    %v2120 = vshrl.u32 %v2119, 7
    %v2121 = vsub.s32 %v2118, %v2120
    %v2122 = vrot.slane %v2108, %v2121
    %v2123 = vcombine.low %v2115, %v2122
    %2124 = vrot.lane.b32.xlu0 %v2106, 64
    %v2125 = vpop.permute.xlu0 %2124
    %2126 = vrot.lane.b32.xlu0 %v2123, 64
    %v2127 = vpop.permute.xlu0 %2126
    %v2136 = vcombine.low %v1782, %v1783
    %v2137 = vcombine.low %v1784, %v1785
    %v2139 = vunpack.c.l.s4 1983009808
    %v2140 = vunpack.c.0.s8 %v2139
    %v2141 = vlaneseq
    %v2142 = vshrl.u32 %v2141, 7
    %v2143 = vsub.s32 %v2140, %v2142
    %v2144 = vrot.slane %v2136, %v2143
    %v2146 = vunpack.c.l.s4 1983009808
    %v2147 = vunpack.c.0.s8 %v2146
    %v2148 = vlaneseq
    %v2149 = vshrl.u32 %v2148, 7
    %v2150 = vsub.s32 %v2147, %v2149
    %v2151 = vrot.slane %v2137, %v2150
    %v2152 = vcombine.low %v2144, %v2151
    %v2153 = vcombine.low %v1786, %v1787
    %v2154 = vcombine.low %v1788, %v1789
    %v2156 = vunpack.c.l.s4 1983009808
    %v2157 = vunpack.c.0.s8 %v2156
    %v2158 = vlaneseq
    %v2159 = vshrl.u32 %v2158, 7
    %v2160 = vsub.s32 %v2157, %v2159
    %v2161 = vrot.slane %v2153, %v2160
    %v2163 = vunpack.c.l.s4 1983009808
    %v2164 = vunpack.c.0.s8 %v2163
    %v2165 = vlaneseq
    %v2166 = vshrl.u32 %v2165, 7
    %v2167 = vsub.s32 %v2164, %v2166
    %v2168 = vrot.slane %v2154, %v2167
    %v2169 = vcombine.low %v2161, %v2168
    %2170 = vrot.lane.b32.xlu0 %v2152, 96
    %v2171 = vpop.permute.xlu0 %2170
    %2172 = vrot.lane.b32.xlu0 %v2169, 96
    %v2173 = vpop.permute.xlu0 %2172
    %v2182 = vcombine.low %v1806, %v1807
    %v2183 = vcombine.low %v1808, %v1809
    %v2185 = vunpack.c.l.s4 1983009808
    %v2186 = vunpack.c.0.s8 %v2185
    %v2187 = vlaneseq
    %v2188 = vshrl.u32 %v2187, 7
    %v2189 = vsub.s32 %v2186, %v2188
    %v2190 = vrot.slane %v2182, %v2189
    %v2192 = vunpack.c.l.s4 1983009808
    %v2193 = vunpack.c.0.s8 %v2192
    %v2194 = vlaneseq
    %v2195 = vshrl.u32 %v2194, 7
    %v2196 = vsub.s32 %v2193, %v2195
    %v2197 = vrot.slane %v2183, %v2196
    %v2198 = vcombine.low %v2190, %v2197
    %v2199 = vcombine.low %v1810, %v1811
    %v2200 = vcombine.low %v1812, %v1813
    %v2202 = vunpack.c.l.s4 1983009808
    %v2203 = vunpack.c.0.s8 %v2202
    %v2204 = vlaneseq
    %v2205 = vshrl.u32 %v2204, 7
    %v2206 = vsub.s32 %v2203, %v2205
    %v2207 = vrot.slane %v2199, %v2206
    %v2209 = vunpack.c.l.s4 1983009808
    %v2210 = vunpack.c.0.s8 %v2209
    %v2211 = vlaneseq
    %v2212 = vshrl.u32 %v2211, 7
    %v2213 = vsub.s32 %v2210, %v2212
    %v2214 = vrot.slane %v2200, %v2213
    %v2215 = vcombine.low %v2207, %v2214
    %v2218 = vsel %vm119, %v1838, %v1899
    %v2221 = vsel %vm119, %v1855, %v1901
    %vm2222 = vcmask 523264
    %v2224 = vsel %vm2222, %v2218, %v1945
    %v2226 = vsel %vm2222, %v2221, %v1947
    %vm2227 = vcmask 785408
    %v2229 = vsel %vm2227, %v2224, %v1991
    %v2232 = vsel %vm2227, %v2226, %v1993
    %v2236 = vsel %vm119, %v2018, %v2079
    %v2239 = vsel %vm119, %v2035, %v2081
    %v2241 = vsel %vm2222, %v2236, %v2125
    %v2243 = vsel %vm2222, %v2239, %v2127
    %v2245 = vsel %vm2227, %v2241, %v2171
    %v2248 = vsel %vm2227, %v2243, %v2173
    %v2250 = vld [vmem:[%s3] sm:$0xf]
    %v2251 = vld [vmem:[%s3 + $0x4] sm:$0xf]
    %v2252 = vld [vmem:[%s3 + $0x8] sm:$0xf]
    %v2253 = vld [vmem:[%s3 + $0xc] sm:$0xf]
    %v2254 = vld [vmem:[%s3 + $0x10] sm:$0xf]
    %v2255 = vld [vmem:[%s3 + $0x14] sm:$0xf]
    %v2256 = vld [vmem:[%s3 + $0x18] sm:$0xf]
    %v2257 = vld [vmem:[%s3 + $0x1c] sm:$0xf]
    %v2258 = vld [vmem:[%s3 + $0x20] sm:$0xf]
    %v2259 = vld [vmem:[%s3 + $0x24] sm:$0xf]
    %v2260 = vld [vmem:[%s3 + $0x28] sm:$0xf]
    %v2261 = vld [vmem:[%s3 + $0x2c] sm:$0xf]
    %v2262 = vld [vmem:[%s3 + $0x30] sm:$0xf]
    %v2263 = vld [vmem:[%s3 + $0x34] sm:$0xf]
    %v2264 = vld [vmem:[%s3 + $0x38] sm:$0xf]
    %v2265 = vld [vmem:[%s3 + $0x3c] sm:$0xf]
    %v2266 = vld [vmem:[%s3 + $0x40] sm:$0xf]
    %v2267 = vld [vmem:[%s3 + $0x44] sm:$0xf]
    %v2268 = vld [vmem:[%s3 + $0x48] sm:$0xf]
    %v2269 = vld [vmem:[%s3 + $0x4c] sm:$0xf]
    %v2270 = vld [vmem:[%s3 + $0x50] sm:$0xf]
    %v2271 = vld [vmem:[%s3 + $0x54] sm:$0xf]
    %v2272 = vld [vmem:[%s3 + $0x58] sm:$0xf]
    %v2273 = vld [vmem:[%s3 + $0x5c] sm:$0xf]
    %v2274 = vld [vmem:[%s3 + $0x60] sm:$0xf]
    %v2275 = vld [vmem:[%s3 + $0x64] sm:$0xf]
    %v2276 = vld [vmem:[%s3 + $0x68] sm:$0xf]
    %v2277 = vld [vmem:[%s3 + $0x6c] sm:$0xf]
    %v2278 = vld [vmem:[%s3 + $0x70] sm:$0xf]
    %v2279 = vld [vmem:[%s3 + $0x74] sm:$0xf]
    %v2280 = vld [vmem:[%s3 + $0x78] sm:$0xf]
    %v2281 = vld [vmem:[%s3 + $0x7c] sm:$0xf]
    %v2282 = vld [vmem:[%s3 + $0x80] sm:$0xf]
    %v2283 = vld [vmem:[%s3 + $0x84] sm:$0xf]
    %v2284 = vld [vmem:[%s3 + $0x88] sm:$0xf]
    %v2285 = vld [vmem:[%s3 + $0x8c] sm:$0xf]
    %v2286 = vld [vmem:[%s4] sm:$0x1]
    %v2288 = vlaneseq
    %v2289 = vshrl.u32 %v2288, 7
    %v2290 = vsub.s32 0, %v2289
    %v2291 = vrot.slane %v2286, %v2290
    %v2329 = vunpack.c.l.b16 %v2250
    %v2330 = vunpack.c.l.b16 %v2251
    %v2331 = vunpack.c.l.b16 %v2252
    %v2332 = vunpack.c.l.b16 %v2253
    %v2333 = vunpack.c.l.b16 %v2254
    %v2334 = vunpack.c.l.b16 %v2255
    %v2335 = vunpack.c.l.b16 %v2256
    %v2336 = vunpack.c.l.b16 %v2257
    %v2337 = vunpack.c.l.b16 %v2258
    %v2338 = vunpack.c.l.b16 %v2259
    %v2339 = vunpack.c.l.b16 %v2260
    %v2340 = vunpack.c.l.b16 %v2261
    %v2341 = vunpack.c.l.b16 %v2262
    %v2342 = vunpack.c.l.b16 %v2263
    %v2343 = vunpack.c.l.b16 %v2264
    %v2344 = vunpack.c.l.b16 %v2265
    %v2345 = vunpack.c.l.b16 %v2266
    %v2346 = vunpack.c.l.b16 %v2267
    %v2347 = vunpack.c.l.b16 %v2268
    %v2348 = vunpack.c.l.b16 %v2269
    %v2349 = vunpack.c.l.b16 %v2270
    %v2350 = vunpack.c.l.b16 %v2271
    %v2351 = vunpack.c.l.b16 %v2272
    %v2352 = vunpack.c.l.b16 %v2273
    %v2353 = vunpack.c.l.b16 %v2274
    %v2354 = vunpack.c.l.b16 %v2275
    %v2355 = vunpack.c.l.b16 %v2276
    %v2356 = vunpack.c.l.b16 %v2277
    %v2357 = vunpack.c.l.b16 %v2278
    %v2358 = vunpack.c.l.b16 %v2279
    %v2359 = vunpack.c.l.b16 %v2280
    %v2360 = vunpack.c.l.b16 %v2281
    %v2361 = vunpack.c.l.b16 %v2282
    %v2362 = vunpack.c.l.b16 %v2283
    %v2363 = vunpack.c.l.b16 %v2284
    %v2364 = vunpack.c.l.b16 %v2285
    %v2365 = vpack.c.b16 %v2330, %v2329
    %v2366 = vpack.c.b16 %v2332, %v2331
    %v2367 = vpack.c.b16 %v2334, %v2333
    %v2368 = vpack.c.b16 %v2336, %v2335
    %v2369 = vpack.c.b16 %v2338, %v2337
    %v2370 = vpack.c.b16 %v2340, %v2339
    %v2371 = vpack.c.b16 %v2342, %v2341
    %v2372 = vpack.c.b16 %v2344, %v2343
    %v2373 = vpack.c.b16 %v2346, %v2345
    %v2374 = vpack.c.b16 %v2348, %v2347
    %v2375 = vpack.c.b16 %v2350, %v2349
    %v2376 = vpack.c.b16 %v2352, %v2351
    %v2377 = vpack.c.b16 %v2354, %v2353
    %v2378 = vpack.c.b16 %v2356, %v2355
    %v2379 = vpack.c.b16 %v2358, %v2357
    %v2380 = vpack.c.b16 %v2360, %v2359
    %v2381 = vpack.c.b16 %v2362, %v2361
    %v2382 = vpack.c.b16 %v2364, %v2363
    %v2402 = vsel %vm119, %v2198, 0
    %v2405 = vsel %vm119, %v2215, 0
    %2407 = vmatprep.subr.bf16.mxu0 0
    %2408 = vmatpush1.bf16.msra.mxu0 %v2365
    %2409 = vmatprep.subr.bf16.mxu0 0
    %2410 = vmatpush1.bf16.msra.mxu0 %v2366
    %2411 = vmatprep.subr.bf16.mxu0 0
    %2412 = vmatpush1.bf16.msra.mxu0 %v2367
    %2413 = vmatprep.subr.bf16.mxu0 0
    %2414 = vmatpush1.bf16.msra.mxu0 %v2368
    %2415 = vmatprep.subr.bf16.mxu0 0
    %2416 = vmatpush1.bf16.msra.mxu0 %v2369
    %2417 = vmatprep.subr.bf16.mxu0 0
    %2418 = vmatpush1.bf16.msra.mxu0 %v2370
    %2419 = vmatprep.subr.bf16.mxu0 0
    %2420 = vmatpush1.bf16.msra.mxu0 %v2371
    %2421 = vmatprep.subr.bf16.mxu0 0
    %2422 = vmatpush1.bf16.msra.mxu0 %v2372
    %2423 = vmatprep.subr.bf16.mxu0 0
    %2424 = vmatpush1.bf16.msra.mxu0 %v2373
    %2425 = vmatprep.subr.bf16.mxu0 0
    %2426 = vmatpush1.bf16.msra.mxu0 %v2374
    %2427 = vmatprep.subr.bf16.mxu0 0
    %2428 = vmatpush1.bf16.msra.mxu0 %v2375
    %2429 = vmatprep.subr.bf16.mxu0 0
    %2430 = vmatpush1.bf16.msra.mxu0 %v2376
    %2431 = vmatprep.subr.bf16.mxu0 0
    %2432 = vmatpush1.bf16.msra.mxu0 %v2377
    %2433 = vmatprep.subr.bf16.mxu0 0
    %2434 = vmatpush1.bf16.msra.mxu0 %v2378
    %2435 = vmatprep.subr.bf16.mxu0 0
    %2436 = vmatpush1.bf16.msra.mxu0 %v2379
    %2437 = vmatprep.subr.bf16.mxu0 0
    %2438 = vmatpush1.bf16.msra.mxu0 %v2380
    %2439 = vmatprep.mubr.bf16.mxu0 %v2245
    %2440 = vmatmul.mubr.bf16.gmra.mrb[0].mxu0 %v2229
    %v2441 = vpop.f32.mrb[0].mxu0
    %v2442 = vadd.f32 %v2291, %v2441
    %v2443 = vpop.f32.mrb[0].mxu0
    %v2444 = vpop.f32.mrb[0].mxu0
    %v2445 = vadd.f32 %v2291, %v2444
    %v2446 = vpop.f32.mrb[0].mxu0
    %2447 = vmatprep.mubr.bf16.mxu0 %v2248
    %2448 = vmatmul.mubr.bf16.gmra.mrb[0].mxu0 %v2232
    %v2449 = vpop.f32.mrb[0].mxu0
    %v2450 = vadd.f32 %v2291, %v2449
    %v2451 = vpop.f32.mrb[0].mxu0
    %v2452 = vpop.f32.mrb[0].mxu0
    %v2453 = vadd.f32 %v2291, %v2452
    %v2454 = vpop.f32.mrb[0].mxu0
    %2455 = vdwg.mxu0
    %2456 = vmatprep.subr.bf16.mxu0 0
    %2457 = vmatpush1.bf16.msra.mxu0 %v2381
    %2458 = vmatprep.subr.bf16.mxu0 0
    %2459 = vmatpush1.bf16.msra.mxu0 %v2382
    %2460 = vmatprep.subr.bf16.mxu0 0
    %2461 = vmatpush1.bf16.msra.mxu0 0
    %2462 = vmatprep.subr.bf16.mxu0 0
    %2463 = vmatpush1.bf16.msra.mxu0 0
    %2464 = vmatprep.subr.bf16.mxu0 0
    %2465 = vmatpush1.bf16.msra.mxu0 0
    %2466 = vmatprep.subr.bf16.mxu0 0
    %2467 = vmatpush1.bf16.msra.mxu0 0
    %2468 = vmatprep.subr.bf16.mxu0 0
    %2469 = vmatpush1.bf16.msra.mxu0 0
    %2470 = vmatprep.subr.bf16.mxu0 0
    %2471 = vmatpush1.bf16.msra.mxu0 0
    %2472 = vmatprep.subr.bf16.mxu0 0
    %2473 = vmatpush1.bf16.msra.mxu0 0
    %2474 = vmatprep.subr.bf16.mxu0 0
    %2475 = vmatpush1.bf16.msra.mxu0 0
    %2476 = vmatprep.subr.bf16.mxu0 0
    %2477 = vmatpush1.bf16.msra.mxu0 0
    %2478 = vmatprep.subr.bf16.mxu0 0
    %2479 = vmatpush1.bf16.msra.mxu0 0
    %2480 = vmatprep.subr.bf16.mxu0 0
    %2481 = vmatpush1.bf16.msra.mxu0 0
    %2482 = vmatprep.subr.bf16.mxu0 0
    %2483 = vmatpush1.bf16.msra.mxu0 0
    %2484 = vmatprep.subr.bf16.mxu0 0
    %2485 = vmatpush1.bf16.msra.mxu0 0
    %2486 = vmatprep.subr.bf16.mxu0 0
    %2487 = vmatpush1.bf16.msra.mxu0 0
    %2488 = vmatprep.mubr.bf16.mxu0 0
    %2489 = vmatmul.mubr.bf16.gmra.mrb[0].mxu0 %v2402
    %v2490 = vpop.f32.mrb[0].mxu0
    %v2491 = vadd.f32 %v2442, %v2490
    %v2492 = vpop.f32.mrb[0].mxu0
    %v2493 = vpop.f32.mrb[0].mxu0
    %v2494 = vadd.f32 %v2445, %v2493
    %v2495 = vpop.f32.mrb[0].mxu0
    %2496 = vmatprep.mubr.bf16.mxu0 0
    %2497 = vmatmul.mubr.bf16.gmra.mrb[0].mxu0 %v2405
    %v2498 = vpop.f32.mrb[0].mxu0
    %v2499 = vadd.f32 %v2450, %v2498
    %v2500 = vpop.f32.mrb[0].mxu0
    %v2501 = vpop.f32.mrb[0].mxu0
    %v2502 = vadd.f32 %v2453, %v2501
    %v2503 = vpop.f32.mrb[0].mxu0
    %2504 = vdwg.mxu0
    %vm2505 = vcmp.ge.f32.partialorder %v2491, 0.0
    %vm2506 = vcmp.ge.f32.partialorder %v2494, 0.0
    %vm2507 = vcmp.ge.f32.partialorder %v2499, 0.0
    %vm2508 = vcmp.ge.f32.partialorder %v2502, 0.0
    %v2509 = vmul.f32 %v2491, 0.2
    %v2510 = vmul.f32 %v2494, 0.2
    %v2511 = vmul.f32 %v2499, 0.2
    %v2512 = vmul.f32 %v2502, 0.2
    %v2513 = vsel %vm2505, %v2491, %v2509
    %v2514 = vsel %vm2506, %v2494, %v2510
    %v2515 = vsel %vm2507, %v2499, %v2511
    %v2516 = vsel %vm2508, %v2502, %v2512
    %v2521 = vcombine.high %v2513, %v2513
    %v2522 = vcombine.high %v2514, %v2514
    %v2523 = vcombine.high %v2515, %v2515
    %v2524 = vcombine.high %v2516, %v2516
    %s2529 = scalar_lea.vmem [#allocation4], 8
    %vm2530 = vcmask 388096
    %2531 = vst.msk [vmem:[%s2529 + $0x1] sm:$0xf] %vm2530, %v2513
    %2532 = vst.msk [vmem:[%s2529 + $0x9] sm:$0xf] %vm2530, %v2521
    %2533 = vst.msk [vmem:[%s2529 + $0x11] sm:$0xf] %vm2530, %v2514
    %2534 = vst.msk [vmem:[%s2529 + $0x19] sm:$0xf] %vm2530, %v2522
    %2535 = vst.msk [vmem:[%s2529 + $0x31] sm:$0xf] %vm2530, %v2515
    %2536 = vst.msk [vmem:[%s2529 + $0x39] sm:$0xf] %vm2530, %v2523
    %2537 = vst.msk [vmem:[%s2529 + $0x41] sm:$0xf] %vm2530, %v2516
    %2538 = vst.msk [vmem:[%s2529 + $0x49] sm:$0xf] %vm2530, %v2524
    %v2539 = vld [vmem:[#allocation4] sm:$0xf]
    %v2540 = vld [vmem:[#allocation4 + $0x8] sm:$0xf]
    %v2541 = vld [vmem:[#allocation4 + $0x10] sm:$0xf]
    %v2542 = vld [vmem:[#allocation4 + $0x18] sm:$0xf]
    %v2543 = vld [vmem:[#allocation4 + $0x30] sm:$0xf]
    %v2544 = vld [vmem:[#allocation4 + $0x38] sm:$0xf]
    %v2545 = vld [vmem:[#allocation4 + $0x40] sm:$0xf]
    %v2546 = vld [vmem:[#allocation4 + $0x48] sm:$0xf]
    %v2547 = vpack.c.bf16 %v2539, %v2539
    %v2548 = vpack.c.bf16 %v2540, %v2540
    %v2549 = vpack.c.bf16 %v2541, %v2541
    %v2550 = vpack.c.bf16 %v2542, %v2542
    %v2551 = vpack.c.bf16 %v2543, %v2543
    %v2552 = vpack.c.bf16 %v2544, %v2544
    %v2553 = vpack.c.bf16 %v2545, %v2545
    %v2554 = vpack.c.bf16 %v2546, %v2546
    %v2555 = vld [vmem:[#allocation4 + $0x1] sm:$0xf]
    %v2556 = vld [vmem:[#allocation4 + $0x9] sm:$0xf]
    %v2557 = vld [vmem:[#allocation4 + $0x11] sm:$0xf]
    %v2558 = vld [vmem:[#allocation4 + $0x19] sm:$0xf]
    %v2559 = vld [vmem:[#allocation4 + $0x31] sm:$0xf]
    %v2560 = vld [vmem:[#allocation4 + $0x39] sm:$0xf]
    %v2561 = vld [vmem:[#allocation4 + $0x41] sm:$0xf]
    %v2562 = vld [vmem:[#allocation4 + $0x49] sm:$0xf]
    %v2563 = vpack.c.bf16 %v2555, %v2555
    %v2564 = vpack.c.bf16 %v2556, %v2556
    %v2565 = vpack.c.bf16 %v2557, %v2557
    %v2566 = vpack.c.bf16 %v2558, %v2558
    %v2567 = vpack.c.bf16 %v2559, %v2559
    %v2568 = vpack.c.bf16 %v2560, %v2560
    %v2569 = vpack.c.bf16 %v2561, %v2561
    %v2570 = vpack.c.bf16 %v2562, %v2562
    %v2571 = vld [vmem:[#allocation4 + $0x2] sm:$0xf]
    %v2572 = vld [vmem:[#allocation4 + $0xa] sm:$0xf]
    %v2573 = vld [vmem:[#allocation4 + $0x12] sm:$0xf]
    %v2574 = vld [vmem:[#allocation4 + $0x1a] sm:$0xf]
    %v2575 = vld [vmem:[#allocation4 + $0x32] sm:$0xf]
    %v2576 = vld [vmem:[#allocation4 + $0x3a] sm:$0xf]
    %v2577 = vld [vmem:[#allocation4 + $0x42] sm:$0xf]
    %v2578 = vld [vmem:[#allocation4 + $0x4a] sm:$0xf]
    %v2579 = vpack.c.bf16 %v2571, %v2571
    %v2580 = vpack.c.bf16 %v2572, %v2572
    %v2581 = vpack.c.bf16 %v2573, %v2573
    %v2582 = vpack.c.bf16 %v2574, %v2574
    %v2583 = vpack.c.bf16 %v2575, %v2575
    %v2584 = vpack.c.bf16 %v2576, %v2576
    %v2585 = vpack.c.bf16 %v2577, %v2577
    %v2586 = vpack.c.bf16 %v2578, %v2578
    %v2587 = vld [vmem:[%s2529] sm:$0xf]
    %v2588 = vld [vmem:[%s2529 + $0x8] sm:$0xf]
    %v2589 = vld [vmem:[%s2529 + $0x10] sm:$0xf]
    %v2590 = vld [vmem:[%s2529 + $0x18] sm:$0xf]
    %v2591 = vld [vmem:[%s2529 + $0x30] sm:$0xf]
    %v2592 = vld [vmem:[%s2529 + $0x38] sm:$0xf]
    %v2593 = vld [vmem:[%s2529 + $0x40] sm:$0xf]
    %v2594 = vld [vmem:[%s2529 + $0x48] sm:$0xf]
    %v2595 = vpack.c.bf16 %v2587, %v2587
    %v2596 = vpack.c.bf16 %v2588, %v2588
    %v2597 = vpack.c.bf16 %v2589, %v2589
    %v2598 = vpack.c.bf16 %v2590, %v2590
    %v2599 = vpack.c.bf16 %v2591, %v2591
    %v2600 = vpack.c.bf16 %v2592, %v2592
    %v2601 = vpack.c.bf16 %v2593, %v2593
    %v2602 = vpack.c.bf16 %v2594, %v2594
    %v2603 = vld [vmem:[%s2529 + $0x1] sm:$0xf]
    %v2604 = vld [vmem:[%s2529 + $0x9] sm:$0xf]
    %v2605 = vld [vmem:[%s2529 + $0x11] sm:$0xf]
    %v2606 = vld [vmem:[%s2529 + $0x19] sm:$0xf]
    %v2607 = vld [vmem:[%s2529 + $0x31] sm:$0xf]
    %v2608 = vld [vmem:[%s2529 + $0x39] sm:$0xf]
    %v2609 = vld [vmem:[%s2529 + $0x41] sm:$0xf]
    %v2610 = vld [vmem:[%s2529 + $0x49] sm:$0xf]
    %v2611 = vpack.c.bf16 %v2603, %v2603
    %v2612 = vpack.c.bf16 %v2604, %v2604
    %v2613 = vpack.c.bf16 %v2605, %v2605
    %v2614 = vpack.c.bf16 %v2606, %v2606
    %v2615 = vpack.c.bf16 %v2607, %v2607
    %v2616 = vpack.c.bf16 %v2608, %v2608
    %v2617 = vpack.c.bf16 %v2609, %v2609
    %v2618 = vpack.c.bf16 %v2610, %v2610
    %v2619 = vld [vmem:[%s2529 + $0x2] sm:$0xf]
    %v2620 = vld [vmem:[%s2529 + $0xa] sm:$0xf]
    %v2621 = vld [vmem:[%s2529 + $0x12] sm:$0xf]
    %v2622 = vld [vmem:[%s2529 + $0x1a] sm:$0xf]
    %v2623 = vld [vmem:[%s2529 + $0x32] sm:$0xf]
    %v2624 = vld [vmem:[%s2529 + $0x3a] sm:$0xf]
    %v2625 = vld [vmem:[%s2529 + $0x42] sm:$0xf]
    %v2626 = vld [vmem:[%s2529 + $0x4a] sm:$0xf]
    %v2627 = vpack.c.bf16 %v2619, %v2619
    %v2628 = vpack.c.bf16 %v2620, %v2620
    %v2629 = vpack.c.bf16 %v2621, %v2621
    %v2630 = vpack.c.bf16 %v2622, %v2622
    %v2631 = vpack.c.bf16 %v2623, %v2623
    %v2632 = vpack.c.bf16 %v2624, %v2624
    %v2633 = vpack.c.bf16 %v2625, %v2625
    %v2634 = vpack.c.bf16 %v2626, %v2626
    %s2635 = scalar_lea.vmem [#allocation4], 16
    %v2636 = vld [vmem:[%s2635] sm:$0xf]
    %v2637 = vld [vmem:[%s2635 + $0x8] sm:$0xf]
    %v2638 = vld [vmem:[%s2635 + $0x10] sm:$0xf]
    %v2639 = vld [vmem:[%s2635 + $0x18] sm:$0xf]
    %v2640 = vld [vmem:[%s2635 + $0x30] sm:$0xf]
    %v2641 = vld [vmem:[%s2635 + $0x38] sm:$0xf]
    %v2642 = vld [vmem:[%s2635 + $0x40] sm:$0xf]
    %v2643 = vld [vmem:[%s2635 + $0x48] sm:$0xf]
    %v2644 = vpack.c.bf16 %v2636, %v2636
    %v2645 = vpack.c.bf16 %v2637, %v2637
    %v2646 = vpack.c.bf16 %v2638, %v2638
    %v2647 = vpack.c.bf16 %v2639, %v2639
    %v2648 = vpack.c.bf16 %v2640, %v2640
    %v2649 = vpack.c.bf16 %v2641, %v2641
    %v2650 = vpack.c.bf16 %v2642, %v2642
    %v2651 = vpack.c.bf16 %v2643, %v2643
    %v2652 = vld [vmem:[%s2635 + $0x1] sm:$0xf]
    %v2653 = vld [vmem:[%s2635 + $0x9] sm:$0xf]
    %v2654 = vld [vmem:[%s2635 + $0x11] sm:$0xf]
    %v2655 = vld [vmem:[%s2635 + $0x19] sm:$0xf]
    %v2656 = vld [vmem:[%s2635 + $0x31] sm:$0xf]
    %v2657 = vld [vmem:[%s2635 + $0x39] sm:$0xf]
    %v2658 = vld [vmem:[%s2635 + $0x41] sm:$0xf]
    %v2659 = vld [vmem:[%s2635 + $0x49] sm:$0xf]
    %v2660 = vpack.c.bf16 %v2652, %v2652
    %v2661 = vpack.c.bf16 %v2653, %v2653
    %v2662 = vpack.c.bf16 %v2654, %v2654
    %v2663 = vpack.c.bf16 %v2655, %v2655
    %v2664 = vpack.c.bf16 %v2656, %v2656
    %v2665 = vpack.c.bf16 %v2657, %v2657
    %v2666 = vpack.c.bf16 %v2658, %v2658
    %v2667 = vpack.c.bf16 %v2659, %v2659
    %v2668 = vld [vmem:[%s2635 + $0x2] sm:$0xf]
    %v2669 = vld [vmem:[%s2635 + $0xa] sm:$0xf]
    %v2670 = vld [vmem:[%s2635 + $0x12] sm:$0xf]
    %v2671 = vld [vmem:[%s2635 + $0x1a] sm:$0xf]
    %v2672 = vld [vmem:[%s2635 + $0x32] sm:$0xf]
    %v2673 = vld [vmem:[%s2635 + $0x3a] sm:$0xf]
    %v2674 = vld [vmem:[%s2635 + $0x42] sm:$0xf]
    %v2675 = vld [vmem:[%s2635 + $0x4a] sm:$0xf]
    %v2676 = vpack.c.bf16 %v2668, %v2668
    %v2677 = vpack.c.bf16 %v2669, %v2669
    %v2678 = vpack.c.bf16 %v2670, %v2670
    %v2679 = vpack.c.bf16 %v2671, %v2671
    %v2680 = vpack.c.bf16 %v2672, %v2672
    %v2681 = vpack.c.bf16 %v2673, %v2673
    %v2682 = vpack.c.bf16 %v2674, %v2674
    %v2683 = vpack.c.bf16 %v2675, %v2675
    %v2692 = vcombine.low %v2547, %v2548
    %v2693 = vcombine.low %v2549, %v2550
    %v2695 = vunpack.c.l.s4 1983009808
    %v2696 = vunpack.c.0.s8 %v2695
    %v2697 = vlaneseq
    %v2698 = vshrl.u32 %v2697, 7
    %v2699 = vsub.s32 %v2696, %v2698
    %v2700 = vrot.slane %v2692, %v2699
    %v2702 = vunpack.c.l.s4 1983009808
    %v2703 = vunpack.c.0.s8 %v2702
    %v2704 = vlaneseq
    %v2705 = vshrl.u32 %v2704, 7
    %v2706 = vsub.s32 %v2703, %v2705
    %v2707 = vrot.slane %v2693, %v2706
    %v2708 = vcombine.low %v2700, %v2707
    %v2709 = vcombine.low %v2551, %v2552
    %v2710 = vcombine.low %v2553, %v2554
    %v2712 = vunpack.c.l.s4 1983009808
    %v2713 = vunpack.c.0.s8 %v2712
    %v2714 = vlaneseq
    %v2715 = vshrl.u32 %v2714, 7
    %v2716 = vsub.s32 %v2713, %v2715
    %v2717 = vrot.slane %v2709, %v2716
    %v2719 = vunpack.c.l.s4 1983009808
    %v2720 = vunpack.c.0.s8 %v2719
    %v2721 = vlaneseq
    %v2722 = vshrl.u32 %v2721, 7
    %v2723 = vsub.s32 %v2720, %v2722
    %v2724 = vrot.slane %v2710, %v2723
    %v2725 = vcombine.low %v2717, %v2724
    %v2734 = vcombine.low %v2563, %v2564
    %v2735 = vcombine.low %v2565, %v2566
    %v2737 = vunpack.c.l.s4 1983009808
    %v2738 = vunpack.c.0.s8 %v2737
    %v2739 = vlaneseq
    %v2740 = vshrl.u32 %v2739, 7
    %v2741 = vsub.s32 %v2738, %v2740
    %v2742 = vrot.slane %v2734, %v2741
    %v2744 = vunpack.c.l.s4 1983009808
    %v2745 = vunpack.c.0.s8 %v2744
    %v2746 = vlaneseq
    %v2747 = vshrl.u32 %v2746, 7
    %v2748 = vsub.s32 %v2745, %v2747
    %v2749 = vrot.slane %v2735, %v2748
    %v2750 = vcombine.low %v2742, %v2749
    %v2751 = vcombine.low %v2567, %v2568
    %v2752 = vcombine.low %v2569, %v2570
    %v2754 = vunpack.c.l.s4 1983009808
    %v2755 = vunpack.c.0.s8 %v2754
    %v2756 = vlaneseq
    %v2757 = vshrl.u32 %v2756, 7
    %v2758 = vsub.s32 %v2755, %v2757
    %v2759 = vrot.slane %v2751, %v2758
    %v2761 = vunpack.c.l.s4 1983009808
    %v2762 = vunpack.c.0.s8 %v2761
    %v2763 = vlaneseq
    %v2764 = vshrl.u32 %v2763, 7
    %v2765 = vsub.s32 %v2762, %v2764
    %v2766 = vrot.slane %v2752, %v2765
    %v2767 = vcombine.low %v2759, %v2766
    %2768 = vrot.lane.b32.xlu0 %v2750, 48
    %v2769 = vpop.permute.xlu0 %2768
    %2770 = vrot.lane.b32.xlu0 %v2767, 48
    %v2771 = vpop.permute.xlu0 %2770
    %v2780 = vcombine.low %v2579, %v2580
    %v2781 = vcombine.low %v2581, %v2582
    %v2783 = vunpack.c.l.s4 1983009808
    %v2784 = vunpack.c.0.s8 %v2783
    %v2785 = vlaneseq
    %v2786 = vshrl.u32 %v2785, 7
    %v2787 = vsub.s32 %v2784, %v2786
    %v2788 = vrot.slane %v2780, %v2787
    %v2790 = vunpack.c.l.s4 1983009808
    %v2791 = vunpack.c.0.s8 %v2790
    %v2792 = vlaneseq
    %v2793 = vshrl.u32 %v2792, 7
    %v2794 = vsub.s32 %v2791, %v2793
    %v2795 = vrot.slane %v2781, %v2794
    %v2796 = vcombine.low %v2788, %v2795
    %v2797 = vcombine.low %v2583, %v2584
    %v2798 = vcombine.low %v2585, %v2586
    %v2800 = vunpack.c.l.s4 1983009808
    %v2801 = vunpack.c.0.s8 %v2800
    %v2802 = vlaneseq
    %v2803 = vshrl.u32 %v2802, 7
    %v2804 = vsub.s32 %v2801, %v2803
    %v2805 = vrot.slane %v2797, %v2804
    %v2807 = vunpack.c.l.s4 1983009808
    %v2808 = vunpack.c.0.s8 %v2807
    %v2809 = vlaneseq
    %v2810 = vshrl.u32 %v2809, 7
    %v2811 = vsub.s32 %v2808, %v2810
    %v2812 = vrot.slane %v2798, %v2811
    %v2813 = vcombine.low %v2805, %v2812
    %2814 = vrot.lane.b32.xlu0 %v2796, 96
    %v2815 = vpop.permute.xlu0 %2814
    %2816 = vrot.lane.b32.xlu0 %v2813, 96
    %v2817 = vpop.permute.xlu0 %2816
    %v2826 = vcombine.low %v2595, %v2596
    %v2827 = vcombine.low %v2597, %v2598
    %v2829 = vunpack.c.l.s4 1983009808
    %v2830 = vunpack.c.0.s8 %v2829
    %v2831 = vlaneseq
    %v2832 = vshrl.u32 %v2831, 7
    %v2833 = vsub.s32 %v2830, %v2832
    %v2834 = vrot.slane %v2826, %v2833
    %v2836 = vunpack.c.l.s4 1983009808
    %v2837 = vunpack.c.0.s8 %v2836
    %v2838 = vlaneseq
    %v2839 = vshrl.u32 %v2838, 7
    %v2840 = vsub.s32 %v2837, %v2839
    %v2841 = vrot.slane %v2827, %v2840
    %v2842 = vcombine.low %v2834, %v2841
    %v2843 = vcombine.low %v2599, %v2600
    %v2844 = vcombine.low %v2601, %v2602
    %v2846 = vunpack.c.l.s4 1983009808
    %v2847 = vunpack.c.0.s8 %v2846
    %v2848 = vlaneseq
    %v2849 = vshrl.u32 %v2848, 7
    %v2850 = vsub.s32 %v2847, %v2849
    %v2851 = vrot.slane %v2843, %v2850
    %v2853 = vunpack.c.l.s4 1983009808
    %v2854 = vunpack.c.0.s8 %v2853
    %v2855 = vlaneseq
    %v2856 = vshrl.u32 %v2855, 7
    %v2857 = vsub.s32 %v2854, %v2856
    %v2858 = vrot.slane %v2844, %v2857
    %v2859 = vcombine.low %v2851, %v2858
    %2860 = vrot.lane.b32.xlu0 %v2842, 16
    %v2861 = vpop.permute.xlu0 %2860
    %2862 = vrot.lane.b32.xlu0 %v2859, 16
    %v2863 = vpop.permute.xlu0 %2862
    %v2872 = vcombine.low %v2611, %v2612
    %v2873 = vcombine.low %v2613, %v2614
    %v2875 = vunpack.c.l.s4 1983009808
    %v2876 = vunpack.c.0.s8 %v2875
    %v2877 = vlaneseq
    %v2878 = vshrl.u32 %v2877, 7
    %v2879 = vsub.s32 %v2876, %v2878
    %v2880 = vrot.slane %v2872, %v2879
    %v2882 = vunpack.c.l.s4 1983009808
    %v2883 = vunpack.c.0.s8 %v2882
    %v2884 = vlaneseq
    %v2885 = vshrl.u32 %v2884, 7
    %v2886 = vsub.s32 %v2883, %v2885
    %v2887 = vrot.slane %v2873, %v2886
    %v2888 = vcombine.low %v2880, %v2887
    %v2889 = vcombine.low %v2615, %v2616
    %v2890 = vcombine.low %v2617, %v2618
    %v2892 = vunpack.c.l.s4 1983009808
    %v2893 = vunpack.c.0.s8 %v2892
    %v2894 = vlaneseq
    %v2895 = vshrl.u32 %v2894, 7
    %v2896 = vsub.s32 %v2893, %v2895
    %v2897 = vrot.slane %v2889, %v2896
    %v2899 = vunpack.c.l.s4 1983009808
    %v2900 = vunpack.c.0.s8 %v2899
    %v2901 = vlaneseq
    %v2902 = vshrl.u32 %v2901, 7
    %v2903 = vsub.s32 %v2900, %v2902
    %v2904 = vrot.slane %v2890, %v2903
    %v2905 = vcombine.low %v2897, %v2904
    %2906 = vrot.lane.b32.xlu0 %v2888, 64
    %v2907 = vpop.permute.xlu0 %2906
    %2908 = vrot.lane.b32.xlu0 %v2905, 64
    %v2909 = vpop.permute.xlu0 %2908
    %v2918 = vcombine.low %v2627, %v2628
    %v2919 = vcombine.low %v2629, %v2630
    %v2921 = vunpack.c.l.s4 1983009808
    %v2922 = vunpack.c.0.s8 %v2921
    %v2923 = vlaneseq
    %v2924 = vshrl.u32 %v2923, 7
    %v2925 = vsub.s32 %v2922, %v2924
    %v2926 = vrot.slane %v2918, %v2925
    %v2928 = vunpack.c.l.s4 1983009808
    %v2929 = vunpack.c.0.s8 %v2928
    %v2930 = vlaneseq
    %v2931 = vshrl.u32 %v2930, 7
    %v2932 = vsub.s32 %v2929, %v2931
    %v2933 = vrot.slane %v2919, %v2932
    %v2934 = vcombine.low %v2926, %v2933
    %v2935 = vcombine.low %v2631, %v2632
    %v2936 = vcombine.low %v2633, %v2634
    %v2938 = vunpack.c.l.s4 1983009808
    %v2939 = vunpack.c.0.s8 %v2938
    %v2940 = vlaneseq
    %v2941 = vshrl.u32 %v2940, 7
    %v2942 = vsub.s32 %v2939, %v2941
    %v2943 = vrot.slane %v2935, %v2942
    %v2945 = vunpack.c.l.s4 1983009808
    %v2946 = vunpack.c.0.s8 %v2945
    %v2947 = vlaneseq
    %v2948 = vshrl.u32 %v2947, 7
    %v2949 = vsub.s32 %v2946, %v2948
    %v2950 = vrot.slane %v2936, %v2949
    %v2951 = vcombine.low %v2943, %v2950
    %2952 = vrot.lane.b32.xlu0 %v2934, 112
    %v2953 = vpop.permute.xlu0 %2952
    %2954 = vrot.lane.b32.xlu0 %v2951, 112
    %v2955 = vpop.permute.xlu0 %2954
    %v2964 = vcombine.low %v2644, %v2645
    %v2965 = vcombine.low %v2646, %v2647
    %v2967 = vunpack.c.l.s4 1983009808
    %v2968 = vunpack.c.0.s8 %v2967
    %v2969 = vlaneseq
    %v2970 = vshrl.u32 %v2969, 7
    %v2971 = vsub.s32 %v2968, %v2970
    %v2972 = vrot.slane %v2964, %v2971
    %v2974 = vunpack.c.l.s4 1983009808
    %v2975 = vunpack.c.0.s8 %v2974
    %v2976 = vlaneseq
    %v2977 = vshrl.u32 %v2976, 7
    %v2978 = vsub.s32 %v2975, %v2977
    %v2979 = vrot.slane %v2965, %v2978
    %v2980 = vcombine.low %v2972, %v2979
    %v2981 = vcombine.low %v2648, %v2649
    %v2982 = vcombine.low %v2650, %v2651
    %v2984 = vunpack.c.l.s4 1983009808
    %v2985 = vunpack.c.0.s8 %v2984
    %v2986 = vlaneseq
    %v2987 = vshrl.u32 %v2986, 7
    %v2988 = vsub.s32 %v2985, %v2987
    %v2989 = vrot.slane %v2981, %v2988
    %v2991 = vunpack.c.l.s4 1983009808
    %v2992 = vunpack.c.0.s8 %v2991
    %v2993 = vlaneseq
    %v2994 = vshrl.u32 %v2993, 7
    %v2995 = vsub.s32 %v2992, %v2994
    %v2996 = vrot.slane %v2982, %v2995
    %v2997 = vcombine.low %v2989, %v2996
    %2998 = vrot.lane.b32.xlu0 %v2980, 32
    %v2999 = vpop.permute.xlu0 %2998
    %3000 = vrot.lane.b32.xlu0 %v2997, 32
    %v3001 = vpop.permute.xlu0 %3000
    %v3010 = vcombine.low %v2660, %v2661
    %v3011 = vcombine.low %v2662, %v2663
    %v3013 = vunpack.c.l.s4 1983009808
    %v3014 = vunpack.c.0.s8 %v3013
    %v3015 = vlaneseq
    %v3016 = vshrl.u32 %v3015, 7
    %v3017 = vsub.s32 %v3014, %v3016
    %v3018 = vrot.slane %v3010, %v3017
    %v3020 = vunpack.c.l.s4 1983009808
    %v3021 = vunpack.c.0.s8 %v3020
    %v3022 = vlaneseq
    %v3023 = vshrl.u32 %v3022, 7
    %v3024 = vsub.s32 %v3021, %v3023
    %v3025 = vrot.slane %v3011, %v3024
    %v3026 = vcombine.low %v3018, %v3025
    %v3027 = vcombine.low %v2664, %v2665
    %v3028 = vcombine.low %v2666, %v2667
    %v3030 = vunpack.c.l.s4 1983009808
    %v3031 = vunpack.c.0.s8 %v3030
    %v3032 = vlaneseq
    %v3033 = vshrl.u32 %v3032, 7
    %v3034 = vsub.s32 %v3031, %v3033
    %v3035 = vrot.slane %v3027, %v3034
    %v3037 = vunpack.c.l.s4 1983009808
    %v3038 = vunpack.c.0.s8 %v3037
    %v3039 = vlaneseq
    %v3040 = vshrl.u32 %v3039, 7
    %v3041 = vsub.s32 %v3038, %v3040
    %v3042 = vrot.slane %v3028, %v3041
    %v3043 = vcombine.low %v3035, %v3042
    %3044 = vrot.lane.b32.xlu0 %v3026, 80
    %v3045 = vpop.permute.xlu0 %3044
    %3046 = vrot.lane.b32.xlu0 %v3043, 80
    %v3047 = vpop.permute.xlu0 %3046
    %v3056 = vcombine.low %v2676, %v2677
    %v3057 = vcombine.low %v2678, %v2679
    %v3059 = vunpack.c.l.s4 1983009808
    %v3060 = vunpack.c.0.s8 %v3059
    %v3061 = vlaneseq
    %v3062 = vshrl.u32 %v3061, 7
    %v3063 = vsub.s32 %v3060, %v3062
    %v3064 = vrot.slane %v3056, %v3063
    %v3066 = vunpack.c.l.s4 1983009808
    %v3067 = vunpack.c.0.s8 %v3066
    %v3068 = vlaneseq
    %v3069 = vshrl.u32 %v3068, 7
    %v3070 = vsub.s32 %v3067, %v3069
    %v3071 = vrot.slane %v3057, %v3070
    %v3072 = vcombine.low %v3064, %v3071
    %v3073 = vcombine.low %v2680, %v2681
    %v3074 = vcombine.low %v2682, %v2683
    %v3076 = vunpack.c.l.s4 1983009808
    %v3077 = vunpack.c.0.s8 %v3076
    %v3078 = vlaneseq
    %v3079 = vshrl.u32 %v3078, 7
    %v3080 = vsub.s32 %v3077, %v3079
    %v3081 = vrot.slane %v3073, %v3080
    %v3083 = vunpack.c.l.s4 1983009808
    %v3084 = vunpack.c.0.s8 %v3083
    %v3085 = vlaneseq
    %v3086 = vshrl.u32 %v3085, 7
    %v3087 = vsub.s32 %v3084, %v3086
    %v3088 = vrot.slane %v3074, %v3087
    %v3089 = vcombine.low %v3081, %v3088
    %vm3090 = vcmask 392192
    %v3093 = vsel %vm3090, %v2708, %v2769
    %v3096 = vsel %vm3090, %v2725, %v2771
    %v3098 = vsel %vm2227, %v3093, %v2815
    %v3101 = vsel %vm2227, %v3096, %v2817
    %vm3103 = vcmask 130048
    %v3105 = vsel %vm3103, %v2815, %v2861
    %v3107 = vsel %vm3103, %v2817, %v2863
    %v3109 = vsel %vm2222, %v3105, %v2907
    %v3111 = vsel %vm2222, %v3107, %v2909
    %vm3112 = vcmask 916480
    %v3114 = vsel %vm3112, %v3109, %v2953
    %v3117 = vsel %vm3112, %v3111, %v2955
    %v3120 = vsel %vm119, %v2953, %v2999
    %v3122 = vsel %vm119, %v2955, %v3001
    %vm3123 = vcmask 654336
    %v3125 = vsel %vm3123, %v3120, %v3045
    %v3128 = vsel %vm3123, %v3122, %v3047
    %v3130 = vld [vmem:[%s5] sm:$0xf]
    %v3131 = vld [vmem:[%s5 + $0x4] sm:$0xf]
    %v3132 = vld [vmem:[%s5 + $0x8] sm:$0xf]
    %v3133 = vld [vmem:[%s5 + $0xc] sm:$0xf]
    %v3134 = vld [vmem:[%s5 + $0x10] sm:$0xf]
    %v3135 = vld [vmem:[%s5 + $0x14] sm:$0xf]
    %v3136 = vld [vmem:[%s5 + $0x18] sm:$0xf]
    %v3137 = vld [vmem:[%s5 + $0x1c] sm:$0xf]
    %v3138 = vld [vmem:[%s5 + $0x20] sm:$0xf]
    %v3139 = vld [vmem:[%s5 + $0x24] sm:$0xf]
    %v3140 = vld [vmem:[%s5 + $0x28] sm:$0xf]
    %v3141 = vld [vmem:[%s5 + $0x2c] sm:$0xf]
    %v3142 = vld [vmem:[%s5 + $0x30] sm:$0xf]
    %v3143 = vld [vmem:[%s5 + $0x34] sm:$0xf]
    %v3144 = vld [vmem:[%s5 + $0x38] sm:$0xf]
    %v3145 = vld [vmem:[%s5 + $0x3c] sm:$0xf]
    %v3146 = vld [vmem:[%s5 + $0x40] sm:$0xf]
    %v3147 = vld [vmem:[%s5 + $0x44] sm:$0xf]
    %v3148 = vld [vmem:[%s5 + $0x48] sm:$0xf]
    %v3149 = vld [vmem:[%s5 + $0x4c] sm:$0xf]
    %v3150 = vld [vmem:[%s5 + $0x50] sm:$0xf]
    %v3151 = vld [vmem:[%s5 + $0x54] sm:$0xf]
    %v3152 = vld [vmem:[%s5 + $0x58] sm:$0xf]
    %v3153 = vld [vmem:[%s5 + $0x5c] sm:$0xf]
    %v3154 = vld [vmem:[%s5 + $0x60] sm:$0xf]
    %v3155 = vld [vmem:[%s5 + $0x64] sm:$0xf]
    %v3156 = vld [vmem:[%s5 + $0x68] sm:$0xf]
    %v3157 = vld [vmem:[%s5 + $0x6c] sm:$0xf]
    %v3158 = vld [vmem:[%s5 + $0x70] sm:$0xf]
    %v3159 = vld [vmem:[%s5 + $0x74] sm:$0xf]
    %v3160 = vld [vmem:[%s5 + $0x78] sm:$0xf]
    %v3161 = vld [vmem:[%s5 + $0x7c] sm:$0xf]
    %v3162 = vld [vmem:[%s5 + $0x80] sm:$0xf]
    %v3163 = vld [vmem:[%s5 + $0x84] sm:$0xf]
    %v3164 = vld [vmem:[%s5 + $0x88] sm:$0xf]
    %v3165 = vld [vmem:[%s5 + $0x8c] sm:$0xf]
    %v3166 = vld [vmem:[%s5 + $0x90] sm:$0xf]
    %v3167 = vld [vmem:[%s5 + $0x94] sm:$0xf]
    %v3168 = vld [vmem:[%s5 + $0x98] sm:$0xf]
    %v3169 = vld [vmem:[%s5 + $0x9c] sm:$0xf]
    %v3170 = vld [vmem:[%s5 + $0xa0] sm:$0xf]
    %v3171 = vld [vmem:[%s5 + $0xa4] sm:$0xf]
    %v3172 = vld [vmem:[%s5 + $0xa8] sm:$0xf]
    %v3173 = vld [vmem:[%s5 + $0xac] sm:$0xf]
    %v3174 = vld [vmem:[%s5 + $0xb0] sm:$0xf]
    %v3175 = vld [vmem:[%s5 + $0xb4] sm:$0xf]
    %v3176 = vld [vmem:[%s5 + $0xb8] sm:$0xf]
    %v3177 = vld [vmem:[%s5 + $0xbc] sm:$0xf]
    %v3178 = vld [vmem:[%s5 + $0xc0] sm:$0xf]
    %v3179 = vld [vmem:[%s5 + $0xc4] sm:$0xf]
    %v3180 = vld [vmem:[%s5 + $0xc8] sm:$0xf]
    %v3181 = vld [vmem:[%s5 + $0xcc] sm:$0xf]
    %v3182 = vld [vmem:[%s5 + $0xd0] sm:$0xf]
    %v3183 = vld [vmem:[%s5 + $0xd4] sm:$0xf]
    %v3184 = vld [vmem:[%s6] sm:$0x1]
    %v3186 = vlaneseq
    %v3187 = vshrl.u32 %v3186, 7
    %v3188 = vsub.s32 0, %v3187
    %v3189 = vrot.slane %v3184, %v3188
    %v3245 = vunpack.c.l.b16 %v3130
    %v3246 = vunpack.c.l.b16 %v3131
    %v3247 = vunpack.c.l.b16 %v3132
    %v3248 = vunpack.c.l.b16 %v3133
    %v3249 = vunpack.c.l.b16 %v3134
    %v3250 = vunpack.c.l.b16 %v3135
    %v3251 = vunpack.c.l.b16 %v3136
    %v3252 = vunpack.c.l.b16 %v3137
    %v3253 = vunpack.c.l.b16 %v3138
    %v3254 = vunpack.c.l.b16 %v3139
    %v3255 = vunpack.c.l.b16 %v3140
    %v3256 = vunpack.c.l.b16 %v3141
    %v3257 = vunpack.c.l.b16 %v3142
    %v3258 = vunpack.c.l.b16 %v3143
    %v3259 = vunpack.c.l.b16 %v3144
    %v3260 = vunpack.c.l.b16 %v3145
    %v3261 = vunpack.c.l.b16 %v3146
    %v3262 = vunpack.c.l.b16 %v3147
    %v3263 = vunpack.c.l.b16 %v3148
    %v3264 = vunpack.c.l.b16 %v3149
    %v3265 = vunpack.c.l.b16 %v3150
    %v3266 = vunpack.c.l.b16 %v3151
    %v3267 = vunpack.c.l.b16 %v3152
    %v3268 = vunpack.c.l.b16 %v3153
    %v3269 = vunpack.c.l.b16 %v3154
    %v3270 = vunpack.c.l.b16 %v3155
    %v3271 = vunpack.c.l.b16 %v3156
    %v3272 = vunpack.c.l.b16 %v3157
    %v3273 = vunpack.c.l.b16 %v3158
    %v3274 = vunpack.c.l.b16 %v3159
    %v3275 = vunpack.c.l.b16 %v3160
    %v3276 = vunpack.c.l.b16 %v3161
    %v3277 = vunpack.c.l.b16 %v3162
    %v3278 = vunpack.c.l.b16 %v3163
    %v3279 = vunpack.c.l.b16 %v3164
    %v3280 = vunpack.c.l.b16 %v3165
    %v3281 = vunpack.c.l.b16 %v3166
    %v3282 = vunpack.c.l.b16 %v3167
    %v3283 = vunpack.c.l.b16 %v3168
    %v3284 = vunpack.c.l.b16 %v3169
    %v3285 = vunpack.c.l.b16 %v3170
    %v3286 = vunpack.c.l.b16 %v3171
    %v3287 = vunpack.c.l.b16 %v3172
    %v3288 = vunpack.c.l.b16 %v3173
    %v3289 = vunpack.c.l.b16 %v3174
    %v3290 = vunpack.c.l.b16 %v3175
    %v3291 = vunpack.c.l.b16 %v3176
    %v3292 = vunpack.c.l.b16 %v3177
    %v3293 = vunpack.c.l.b16 %v3178
    %v3294 = vunpack.c.l.b16 %v3179
    %v3295 = vunpack.c.l.b16 %v3180
    %v3296 = vunpack.c.l.b16 %v3181
    %v3297 = vunpack.c.l.b16 %v3182
    %v3298 = vunpack.c.l.b16 %v3183
    %v3299 = vpack.c.b16 %v3246, %v3245
    %v3300 = vpack.c.b16 %v3248, %v3247
    %v3301 = vpack.c.b16 %v3250, %v3249
    %v3302 = vpack.c.b16 %v3252, %v3251
    %v3303 = vpack.c.b16 %v3254, %v3253
    %v3304 = vpack.c.b16 %v3256, %v3255
    %v3305 = vpack.c.b16 %v3258, %v3257
    %v3306 = vpack.c.b16 %v3260, %v3259
    %v3307 = vpack.c.b16 %v3262, %v3261
    %v3308 = vpack.c.b16 %v3264, %v3263
    %v3309 = vpack.c.b16 %v3266, %v3265
    %v3310 = vpack.c.b16 %v3268, %v3267
    %v3311 = vpack.c.b16 %v3270, %v3269
    %v3312 = vpack.c.b16 %v3272, %v3271
    %v3313 = vpack.c.b16 %v3274, %v3273
    %v3314 = vpack.c.b16 %v3276, %v3275
    %v3315 = vpack.c.b16 %v3278, %v3277
    %v3316 = vpack.c.b16 %v3280, %v3279
    %v3317 = vpack.c.b16 %v3282, %v3281
    %v3318 = vpack.c.b16 %v3284, %v3283
    %v3319 = vpack.c.b16 %v3286, %v3285
    %v3320 = vpack.c.b16 %v3288, %v3287
    %v3321 = vpack.c.b16 %v3290, %v3289
    %v3322 = vpack.c.b16 %v3292, %v3291
    %v3323 = vpack.c.b16 %v3294, %v3293
    %v3324 = vpack.c.b16 %v3296, %v3295
    %v3325 = vpack.c.b16 %v3298, %v3297
    %v3354 = vsel %vm3090, %v3072, 0
    %v3357 = vsel %vm3090, %v3089, 0
    %3359 = vmatprep.subr.bf16.mxu0 0
    %3360 = vmatpush1.bf16.msra.mxu0 %v3299
    %3361 = vmatprep.subr.bf16.mxu0 0
    %3362 = vmatpush1.bf16.msra.mxu0 %v3300
    %3363 = vmatprep.subr.bf16.mxu0 0
    %3364 = vmatpush1.bf16.msra.mxu0 %v3301
    %3365 = vmatprep.subr.bf16.mxu0 0
    %3366 = vmatpush1.bf16.msra.mxu0 %v3302
    %3367 = vmatprep.subr.bf16.mxu0 0
    %3368 = vmatpush1.bf16.msra.mxu0 %v3303
    %3369 = vmatprep.subr.bf16.mxu0 0
    %3370 = vmatpush1.bf16.msra.mxu0 %v3304
    %3371 = vmatprep.subr.bf16.mxu0 0
    %3372 = vmatpush1.bf16.msra.mxu0 %v3305
    %3373 = vmatprep.subr.bf16.mxu0 0
    %3374 = vmatpush1.bf16.msra.mxu0 %v3306
    %3375 = vmatprep.subr.bf16.mxu0 0
    %3376 = vmatpush1.bf16.msra.mxu0 %v3307
    %3377 = vmatprep.subr.bf16.mxu0 0
    %3378 = vmatpush1.bf16.msra.mxu0 %v3308
    %3379 = vmatprep.subr.bf16.mxu0 0
    %3380 = vmatpush1.bf16.msra.mxu0 %v3309
    %3381 = vmatprep.subr.bf16.mxu0 0
    %3382 = vmatpush1.bf16.msra.mxu0 %v3310
    %3383 = vmatprep.subr.bf16.mxu0 0
    %3384 = vmatpush1.bf16.msra.mxu0 %v3311
    %3385 = vmatprep.subr.bf16.mxu0 0
    %3386 = vmatpush1.bf16.msra.mxu0 %v3312
    %3387 = vmatprep.subr.bf16.mxu0 0
    %3388 = vmatpush1.bf16.msra.mxu0 %v3313
    %3389 = vmatprep.subr.bf16.mxu0 0
    %3390 = vmatpush1.bf16.msra.mxu0 %v3314
    %3391 = vmatprep.mubr.bf16.mxu0 %v3114
    %3392 = vmatmul.mubr.bf16.gmra.mrb[0].mxu0 %v3098
    %v3393 = vpop.f32.mrb[0].mxu0
    %v3394 = vadd.f32 %v3189, %v3393
    %v3395 = vpop.f32.mrb[0].mxu0
    %v3396 = vpop.f32.mrb[0].mxu0
    %v3397 = vadd.f32 %v3189, %v3396
    %v3398 = vpop.f32.mrb[0].mxu0
    %3399 = vmatprep.mubr.bf16.mxu0 %v3117
    %3400 = vmatmul.mubr.bf16.gmra.mrb[0].mxu0 %v3101
    %v3401 = vpop.f32.mrb[0].mxu0
    %v3402 = vadd.f32 %v3189, %v3401
    %v3403 = vpop.f32.mrb[0].mxu0
    %v3404 = vpop.f32.mrb[0].mxu0
    %v3405 = vadd.f32 %v3189, %v3404
    %v3406 = vpop.f32.mrb[0].mxu0
    %3407 = vdwg.mxu0
    %3408 = vmatprep.subr.bf16.mxu0 0
    %3409 = vmatpush1.bf16.msra.mxu0 %v3315
    %3410 = vmatprep.subr.bf16.mxu0 0
    %3411 = vmatpush1.bf16.msra.mxu0 %v3316
    %3412 = vmatprep.subr.bf16.mxu0 0
    %3413 = vmatpush1.bf16.msra.mxu0 %v3317
    %3414 = vmatprep.subr.bf16.mxu0 0
    %3415 = vmatpush1.bf16.msra.mxu0 %v3318
    %3416 = vmatprep.subr.bf16.mxu0 0
    %3417 = vmatpush1.bf16.msra.mxu0 %v3319
    %3418 = vmatprep.subr.bf16.mxu0 0
    %3419 = vmatpush1.bf16.msra.mxu0 %v3320
    %3420 = vmatprep.subr.bf16.mxu0 0
    %3421 = vmatpush1.bf16.msra.mxu0 %v3321
    %3422 = vmatprep.subr.bf16.mxu0 0
    %3423 = vmatpush1.bf16.msra.mxu0 %v3322
    %3424 = vmatprep.subr.bf16.mxu0 0
    %3425 = vmatpush1.bf16.msra.mxu0 %v3323
    %3426 = vmatprep.subr.bf16.mxu0 0
    %3427 = vmatpush1.bf16.msra.mxu0 %v3324
    %3428 = vmatprep.subr.bf16.mxu0 0
    %3429 = vmatpush1.bf16.msra.mxu0 %v3325
    %3430 = vmatprep.subr.bf16.mxu0 0
    %3431 = vmatpush1.bf16.msra.mxu0 0
    %3432 = vmatprep.subr.bf16.mxu0 0
    %3433 = vmatpush1.bf16.msra.mxu0 0
    %3434 = vmatprep.subr.bf16.mxu0 0
    %3435 = vmatpush1.bf16.msra.mxu0 0
    %3436 = vmatprep.subr.bf16.mxu0 0
    %3437 = vmatpush1.bf16.msra.mxu0 0
    %3438 = vmatprep.subr.bf16.mxu0 0
    %3439 = vmatpush1.bf16.msra.mxu0 0
    %3440 = vmatprep.mubr.bf16.mxu0 %v3354
    %3441 = vmatmul.mubr.bf16.gmra.mrb[0].mxu0 %v3125
    %v3442 = vpop.f32.mrb[0].mxu0
    %v3443 = vadd.f32 %v3394, %v3442
    %v3444 = vpop.f32.mrb[0].mxu0
    %v3445 = vpop.f32.mrb[0].mxu0
    %v3446 = vadd.f32 %v3397, %v3445
    %v3447 = vpop.f32.mrb[0].mxu0
    %3448 = vmatprep.mubr.bf16.mxu0 %v3357
    %3449 = vmatmul.mubr.bf16.gmra.mrb[0].mxu0 %v3128
    %v3450 = vpop.f32.mrb[0].mxu0
    %v3451 = vadd.f32 %v3402, %v3450
    %v3452 = vpop.f32.mrb[0].mxu0
    %v3453 = vpop.f32.mrb[0].mxu0
    %v3454 = vadd.f32 %v3405, %v3453
    %v3455 = vpop.f32.mrb[0].mxu0
    %3456 = vdwg.mxu0
    %vm3457 = vcmp.ge.f32.partialorder %v3443, 0.0
    %vm3458 = vcmp.ge.f32.partialorder %v3446, 0.0
    %vm3459 = vcmp.ge.f32.partialorder %v3451, 0.0
    %vm3460 = vcmp.ge.f32.partialorder %v3454, 0.0
    %v3461 = vmul.f32 %v3443, 0.2
    %v3462 = vmul.f32 %v3446, 0.2
    %v3463 = vmul.f32 %v3451, 0.2
    %v3464 = vmul.f32 %v3454, 0.2
    %v3465 = vsel %vm3457, %v3443, %v3461
    %v3466 = vsel %vm3458, %v3446, %v3462
    %v3467 = vsel %vm3459, %v3451, %v3463
    %v3468 = vsel %vm3460, %v3454, %v3464
    %v3473 = vcombine.high %v3465, %v3465
    %v3474 = vcombine.high %v3466, %v3466
    %v3475 = vcombine.high %v3467, %v3467
    %v3476 = vcombine.high %v3468, %v3468
    %v3481 = vmul.f32 %v3465, 16.887417
    %v3482 = vmul.f32 %v3473, 16.887417
    %v3483 = vmul.f32 %v3466, 16.887417
    %v3484 = vmul.f32 %v3474, 16.887417
    %v3485 = vmul.f32 %v3467, 16.887417
    %v3486 = vmul.f32 %v3475, 16.887417
    %v3487 = vmul.f32 %v3468, 16.887417
    %v3488 = vmul.f32 %v3476, 16.887417
    %v3489 = vround.ne.pseudo %v3481
    %v3490 = vround.ne.pseudo %v3482
    %v3491 = vround.ne.pseudo %v3483
    %v3492 = vround.ne.pseudo %v3484
    %v3493 = vround.ne.pseudo %v3485
    %v3494 = vround.ne.pseudo %v3486
    %v3495 = vround.ne.pseudo %v3487
    %v3496 = vround.ne.pseudo %v3488
    %v3497 = vrcp.pop 16.887417
    %v3498 = vmul.f32 %v3489, %v3497
    %v3499 = vmul.f32 %v3490, %v3497
    %v3500 = vmul.f32 %v3491, %v3497
    %v3501 = vmul.f32 %v3492, %v3497
    %v3502 = vmul.f32 %v3493, %v3497
    %v3503 = vmul.f32 %v3494, %v3497
    %v3504 = vmul.f32 %v3495, %v3497
    %v3505 = vmul.f32 %v3496, %v3497
    %vm3506 = vcmask 519168
    %3507 = vst.msk [vmem:[#allocation5] sm:$0xf] %vm3506, %v3498
    %3508 = vst.msk [vmem:[#allocation5 + $0x4] sm:$0xf] %vm3506, %v3499
    %3509 = vst.msk [vmem:[#allocation5 + $0x8] sm:$0xf] %vm3506, %v3500
    %3510 = vst.msk [vmem:[#allocation5 + $0xc] sm:$0xf] %vm3506, %v3501
    %3511 = vst.msk [vmem:[#allocation5 + $0x10] sm:$0xf] %vm3506, %v3502
    %3512 = vst.msk [vmem:[#allocation5 + $0x14] sm:$0xf] %vm3506, %v3503
    %3513 = vst.msk [vmem:[#allocation5 + $0x18] sm:$0xf] %vm3506, %v3504
    %3514 = vst.msk [vmem:[#allocation5 + $0x1c] sm:$0xf] %vm3506, %v3505
    %v3515 = vand.u32 2147483647, %v3498
    %v3516 = vand.u32 2147483647, %v3499
    %v3517 = vand.u32 2147483647, %v3500
    %v3518 = vand.u32 2147483647, %v3501
    %v3519 = vsel %vm3506, %v3515, 0.0
    %v3520 = vsel %vm3506, %v3516, 0.0
    %v3521 = vadd.f32 %v3519, %v3520
    %v3522 = vsel %vm3506, %v3517, 0.0
    %v3523 = vadd.f32 %v3521, %v3522
    %v3524 = vsel %vm3506, %v3518, 0.0
    %v3525 = vadd.f32 %v3523, %v3524
    %3526 = vadd.xlane.f32.xlu0 %v3525
    %v3527 = vpop.xlane.xlu0 %3526
    %v3528 = vrot.slane %v3527, 4
    %v3529 = vadd.f32 %v3527, %v3528
    %v3530 = vrot.slane %v3529, 2
    %v3531 = vadd.f32 %v3529, %v3530
    %v3532 = vrot.slane %v3531, 1
    %v3533 = vadd.f32 %v3531, %v3532
    %s3534 = vtos %v3533
    %v3535 = vrcp.pop 256.0
    %s3536 = vtos %v3535
    %s3537 = smul.f32 %s3534, %s3536
    %s3538 = smul.f32 %s3537, 0.1
    %s3539 = smax.f32 %s3538, 0.01
    %s3540 = smin.f32 %s3539, 2.0
    %s3541 = scalar_lea.smem [#allocation8], 0
    %3542 = sst [smem:[%s3541]] %s3540
    %v3543 = vand.u32 2147483647, %v3502
    %v3544 = vand.u32 2147483647, %v3503
    %v3545 = vand.u32 2147483647, %v3504
    %v3546 = vand.u32 2147483647, %v3505
    %v3547 = vsel %vm3506, %v3543, 0.0
    %v3548 = vsel %vm3506, %v3544, 0.0
    %v3549 = vadd.f32 %v3547, %v3548
    %v3550 = vsel %vm3506, %v3545, 0.0
    %v3551 = vadd.f32 %v3549, %v3550
    %v3552 = vsel %vm3506, %v3546, 0.0
    %v3553 = vadd.f32 %v3551, %v3552
    %3554 = vadd.xlane.f32.xlu0 %v3553
    %v3555 = vpop.xlane.xlu0 %3554
    %v3556 = vrot.slane %v3555, 4
    %v3557 = vadd.f32 %v3555, %v3556
    %v3558 = vrot.slane %v3557, 2
    %v3559 = vadd.f32 %v3557, %v3558
    %v3560 = vrot.slane %v3559, 1
    %v3561 = vadd.f32 %v3559, %v3560
    %s3562 = vtos %v3561
    %v3563 = vrcp.pop 256.0
    %s3564 = vtos %v3563
    %s3565 = smul.f32 %s3562, %s3564
    %s3566 = smul.f32 %s3565, 0.1
    %s3567 = smax.f32 %s3566, 0.01
    %s3568 = smin.f32 %s3567, 2.0
    %s3569 = scalar_lea.smem [#allocation8], 128
    %3570 = sst [smem:[%s3569]] %s3568
    // Predicated region
    $region30: #{tpu_custom_call.1} parent=1 // pred_check
      _
    $region31: #{tpu_custom_call.1} parent=1 // pred_check_branch
      %3572 = sbr.rel (0) target = $region33
    $region32: #{tpu_custom_call.1} parent=1 // pred_region
      %s3574 = ssub.s32 512, 512
      %3575 = vsyncadd [#allocation6], %s3574
      %s3576 = sshll.u32 [#allocation5], 4
      %s3577 = int_to_ptr.vmem [resolvable:$true] %s3576
      %3582 = dma.vmem_to_hbm [thread:$0]  %s3577, 512, %s7, [#allocation6], 64, 64, 4
    $region33: #{tpu_custom_call.1} parent=1 // pred_fallthru
      _
    // Predicated region
    $region34: #{tpu_custom_call.1} parent=1 // pred_check
      _
    $region35: #{tpu_custom_call.1} parent=1 // pred_check_branch
      %3584 = sbr.rel (0) target = $region37
    $region36: #{tpu_custom_call.1} parent=1 // pred_region
      %s3586 = ssub.s32 32, 32
      %3587 = vsyncadd [#allocation7], %s3586
      %s3589 = sshll.u32 %s8, 4
      %s3590 = int_to_ptr.vmem [resolvable:$true] %s3589
      %3592 = dma.smem_to_vmem [#allocation8], 32, %s3590, [#allocation7]
    $region37: #{tpu_custom_call.1} parent=1 // pred_fallthru
      _
    // Predicated region
    $region38: #{tpu_custom_call.1} parent=1 // pred_check
      _
    $region39: #{tpu_custom_call.1} parent=1 // pred_check_branch
      %3594 = sbr.rel (0) target = $region41
    $region40: #{tpu_custom_call.1} parent=1 // pred_region
      %3595 = dma.done [#allocation6], 512
    $region41: #{tpu_custom_call.1} parent=1 // pred_fallthru
      _
    // Predicated region
    $region42: #{tpu_custom_call.1} parent=1 // pred_check
      _
    $region43: #{tpu_custom_call.1} parent=1 // pred_check_branch
      %3597 = sbr.rel (0) target = $region45
    $region44: #{tpu_custom_call.1} parent=1 // pred_region
      %3598 = dma.done [#allocation7], 32
    $region45: #{tpu_custom_call.1} parent=1 // pred_fallthru
      _
    %3599 = sfence
    %3600 = vsyncpa [#allocation6], 1
    %3601 = vsyncpa [#allocation7], 1

</llo_original>
